<compile_context>
chip_gen: v7x
topology: tpu7x:2x2x1
jax: 0.10.0
libtpu: 0.0.40
codegen_flags: <defaults>
</compile_context>

<pallas_src>
import math

import jax
import jax.numpy as jnp
from jax import lax
from jax.experimental import pallas as pl
from jax.experimental.pallas import tpu as pltpu

_LANE = 128
_MASK_VALUE = -1e30


def _vmem_capacity_bytes():
    """Per-core VMEM capacity; conservative 64 MiB fallback (v7x per-TC size)."""
    try:
        info = pltpu.get_tpu_info()
        cap = getattr(info, "vmem_capacity_bytes", None)
        if cap:
            return int(cap)
    except Exception:
        pass
    return 64 * 1024 * 1024


def _round_up(x, m):
    return ((x + m - 1) // m) * m


def _pick_tile(s_pad, target):
    """Largest MXU/lane-friendly tile <= target that divides s_pad (x128)."""
    if s_pad <= target:
        return s_pad
    for t in (512, 384, 256, 128):
        if t <= target and s_pad % t == 0:
            return t
    return _LANE


def _choose_group(bh, d, tq, tk):
    """Heads packed per grid step.  Only group when D < 128 (lane-dense output);
    cap G so the f32 score working set (~3 tiles) stays in the low MiB range."""
    if d >= _LANE:
        return 1
    best = 1
    for g in range(1, min(bh, 8) + 1):
        if bh % g != 0:
            continue
        if 3 * g * tq * tk * 4 > 12 * 1024 * 1024:
            break
        best = g
        if g * d >= _LANE:
            break
    return best


def _flash_kernel(scale, G, D, tk, s_real, resident, mask_pad):
    def kernel(q_ref, k_ref, v_ref, o_ref, m_ref, l_ref, acc_ref):
        kv = pl.program_id(2)

        @pl.when(kv == 0)
        def _init():
            m_ref[...] = jnp.full(m_ref.shape, -jnp.inf, dtype=m_ref.dtype)
            l_ref[...] = jnp.zeros(l_ref.shape, dtype=l_ref.dtype)
            acc_ref[...] = jnp.zeros(acc_ref.shape, dtype=acc_ref.dtype)

        # Fold the softmax scale into q (G*tq*D elements) instead of scaling the
        # (G,tq,tk) score tile: tk/D x less VALU work per kv step.
        q = q_ref[...] * jnp.asarray(scale, dtype=q_ref.dtype)   # (G, tq, D)

        if resident:
            # K/V are VMEM-resident for the whole head group; slice the current
            # tk chunk in-kernel (no HBM refetch per q tile).
            start = pl.multiple_of(kv * tk, tk)
            k = k_ref[:, pl.ds(start, tk), :]                    # (G, tk, D)
            v = v_ref[:, pl.ds(start, tk), :]                    # (G, tk, D)
        else:
            k = k_ref[...]
            v = v_ref[...]

        # scores = (q*scale) @ k^T, contracting D against k's stored layout.
        s = lax.dot_general(
            q, k,
            dimension_numbers=(((2,), (2,)), ((0,), (0,))),
            preferred_element_type=jnp.float32,
        )                                                        # (G, tq, tk) f32

        if mask_pad:
            key_pos = kv * tk + lax.broadcasted_iota(jnp.int32, s.shape, 2)
            s = jnp.where(key_pos < s_real, s, _MASK_VALUE)

        m_prev = m_ref[...]                                      # (G, tq, 1)
        m_new = jnp.maximum(m_prev, jnp.max(s, axis=-1, keepdims=True))
        alpha = jnp.exp(m_prev - m_new)                          # (G, tq, 1)
        p = jnp.exp(s - m_new)                                   # (G, tq, tk) f32
        # TODO(synk): if a bundle dump shows the XLU row-sum as the binding slot,
        # fold it into the P@V matmul by appending a ones column to V.
        l_ref[...] = alpha * l_ref[...] + jnp.sum(p, axis=-1, keepdims=True)
        m_ref[...] = m_new

        pv = lax.dot_general(
            p.astype(v.dtype), v,
            dimension_numbers=(((2,), (1,)), ((0,), (0,))),
            preferred_element_type=jnp.float32,
        )                                                        # (G, tq, D) f32

        # Lane-dense (tq, G*D) accumulator: per-head static slices, no concat.
        for g in range(G):
            sl = pl.ds(g * D, D)
            acc_ref[:, sl] = alpha[g] * acc_ref[:, sl] + pv[g]

        @pl.when(kv == pl.num_programs(2) - 1)
        def _finalize():
            inv_l = pl.reciprocal(l_ref[...], approx=False)      # (G, tq, 1)
            for g in range(G):
                sl = pl.ds(g * D, D)
                acc_ref[:, sl] = acc_ref[:, sl] * inv_l[g]
            # Single unmasked, lane-dense store of the packed head slab.
            o_ref[0] = acc_ref[...].astype(o_ref.dtype)

    return kernel


def sdpa_pallas(q, k, v, mask, dim):
    """Forward pass of the PyTorch Model: softmax(q k^T / sqrt(dim)) @ v."""
    del mask  # unused in the reference module's forward
    B, H, S, D = q.shape
    BH = B * H
    itemsize = jnp.dtype(q.dtype).itemsize

    # Pad S to a multiple of 128 (lane width) and mask padded keys in-kernel;
    # avoids tiny tiles / full-odd-S score blocks for awkward S.
    S_pad = max(_LANE, _round_up(S, _LANE))
    tq = _pick_tile(S_pad, target=512)     # bigger q tile -> fewer K/V re-reads
    tk = _pick_tile(S_pad, target=256)     # 256-aligned contraction for P@V
    G = _choose_group(BH, D, tq, tk)
    NG = BH // G
    mask_pad = S_pad != S

    qf = q.reshape(BH, S, D)
    kf = k.reshape(BH, S, D)
    vf = v.reshape(BH, S, D)
    if mask_pad:
        pad = ((0, 0), (0, S_pad - S), (0, 0))
        qf = jnp.pad(qf, pad)
        kf = jnp.pad(kf, pad)
        vf = jnp.pad(vf, pad)

    # VMEM budgeting: resident K/V only if everything fits comfortably; never
    # request more than 75% of per-core capacity (v7x: 64 MiB/TC, v5e/v6e: 128).
    cap = _vmem_capacity_bytes()
    blk_q = 2 * G * tq * D * itemsize                    # double-buffered q block
    blk_o = 2 * tq * G * D * itemsize                    # output block
    scratch = (2 * G * tq + tq * G * D) * 4              # m, l, acc
    interm = 4 * G * tq * tk * 4                         # score-tile temporaries
    resident_kv = 2 * 2 * G * S_pad * D * itemsize       # k+v, double-buffered
    streamed_kv = 2 * 2 * G * tk * D * itemsize
    resident = blk_q + blk_o + scratch + interm + resident_kv <= int(0.6 * cap)
    kv_bytes = resident_kv if resident else streamed_kv
    vmem_est = blk_q + blk_o + scratch + interm + kv_bytes
    vmem_limit = int(min(max(2 * vmem_est, 32 * 1024 * 1024), int(0.75 * cap)))
    vmem_limit = max(vmem_limit, vmem_est)

    grid = (NG, S_pad // tq, S_pad // tk)
    scale = 1.0 / math.sqrt(dim)
    kernel = _flash_kernel(scale, G, D, tk, S, resident, mask_pad)

    if resident:
        # Constant block index across qi/ki -> K/V DMA'd from HBM once per group.
        kv_spec = pl.BlockSpec((G, S_pad, D), lambda g, qi, ki: (g, 0, 0))
    else:
        kv_spec = pl.BlockSpec((G, tk, D), lambda g, qi, ki: (g, ki, 0))

    kv_refetch = 1 if resident else (S_pad // tq)
    cost = pl.CostEstimate(
        flops=4 * BH * S_pad * S_pad * D,
        transcendentals=BH * S_pad * S_pad,
        bytes_accessed=(BH * S_pad * D * itemsize                    # q read
                        + 2 * BH * S_pad * D * itemsize * kv_refetch  # k/v reads
                        + BH * S_pad * D * itemsize),                 # out write
    )

    out_packed = pl.pallas_call(
        kernel,
        out_shape=jax.ShapeDtypeStruct((NG, S_pad, G * D), q.dtype),
        grid_spec=pltpu.PrefetchScalarGridSpec(
            num_scalar_prefetch=0,
            grid=grid,
            in_specs=[
                pl.BlockSpec((G, tq, D), lambda g, qi, ki: (g, qi, 0)),
                kv_spec,
                kv_spec,
            ],
            out_specs=pl.BlockSpec((1, tq, G * D), lambda g, qi, ki: (g, qi, 0)),
            scratch_shapes=[
                pltpu.VMEM((G, tq, 1), jnp.float32),     # running max
                pltpu.VMEM((G, tq, 1), jnp.float32),     # running denominator
                pltpu.VMEM((tq, G * D), jnp.float32),    # running numerator (lane-dense)
            ],
        ),
        compiler_params=pltpu.CompilerParams(
            # v7x megacore: NG and qi axes are sharded across the 2 TCs.
            dimension_semantics=("parallel", "parallel", "arbitrary"),
            vmem_limit_bytes=vmem_limit,
        ),
        cost_estimate=cost,
    )(qf, kf, vf)

    # Unpack heads from the lane-packed slab and drop sequence padding
    # (wrapper-side layout plumbing only).
    out = (
        out_packed.reshape(NG, S_pad, G, D)
        .transpose(0, 2, 1, 3)
        .reshape(BH, S_pad, D)[:, :S, :]
        .reshape(B, H, S, D)
    )
    return out


def sdpa_reference(q, k, v, mask, dim):
    """Pure-JAX reference for correctness checking."""
    del mask
    qk = jnp.einsum("bhsd,bhtd->bhst",
                    q.astype(jnp.float32), k.astype(jnp.float32))
    p = jax.nn.softmax(qk * (1.0 / math.sqrt(dim)), axis=-1)
    return jnp.einsum("bhst,bhtd->bhsd", p, v.astype(jnp.float32))


if __name__ == "__main__":
    B, H, S, D = 2, 2, 8, 32
    dim = D  # scale factor 1/sqrt(dim)

    key = jax.random.PRNGKey(0)
    kq, kk, kv_, km = jax.random.split(key, 4)
    q = jax.random.normal(kq, (B, H, S, D), dtype=jnp.float32)
    k = jax.random.normal(kk, (B, H, S, D), dtype=jnp.float32)
    v = jax.random.normal(kv_, (B, H, S, D), dtype=jnp.float32)
    mask = jax.random.normal(km, (B, H, S, S), dtype=jnp.float32)  # unused, like torch

    out = jax.block_until_ready(sdpa_pallas(q, k, v, mask, dim))
    ref = sdpa_reference(q, k, v, mask, dim)
    assert out.shape == (B, H, S, D)
    assert jnp.allclose(out, ref, atol=5e-3, rtol=5e-3), "f32 mismatch vs reference"

    # bf16 path: native-dtype MXU inputs with f32 accumulation inside the kernel.
    qb, kb, vb = (x.astype(jnp.bfloat16) for x in (q, k, v))
    out_bf16 = jax.block_until_ready(sdpa_pallas(qb, kb, vb, mask, dim))
    ref_bf16 = sdpa_reference(qb, kb, vb, mask, dim)
    assert jnp.allclose(out_bf16.astype(jnp.float32), ref_bf16,
                        atol=3e-2, rtol=3e-2), "bf16 mismatch vs reference"

    print("KERNEL_OK")
</pallas_src>

<mosaic_0001>
module attributes {stable_mosaic.version = 11 : i64} {
  func.func @kernel(%arg0: i32, %arg1: i32, %arg2: i32, %arg3: memref<4x128x32xf32, #tpu.memory_space<vmem>>, %arg4: memref<4x128x32xf32, #tpu.memory_space<vmem>>, %arg5: memref<4x128x32xf32, #tpu.memory_space<vmem>>, %arg6: memref<1x128x128xf32, #tpu.memory_space<vmem>>, %arg7: memref<4x128x1xf32, #tpu.memory_space<vmem>>, %arg8: memref<4x128x1xf32, #tpu.memory_space<vmem>>, %arg9: memref<128x128xf32, #tpu.memory_space<vmem>>) attributes {dimension_semantics = [#tpu.dimension_semantics<parallel>, #tpu.dimension_semantics<parallel>, #tpu.dimension_semantics<arbitrary>], iteration_bounds = array<i64: 1, 1, 1>, scalar_prefetch = 0 : i64, scratch_operands = 3 : i64, tpu.core_type = #tpu.core_type<tc>, window_params = [{transform_indices = @transform_0, window_bounds = array<i64: 4, 128, 32>}, {transform_indices = @transform_1, window_bounds = array<i64: 4, 128, 32>}, {transform_indices = @transform_2, window_bounds = array<i64: 4, 128, 32>}, {transform_indices = @transform_3, window_bounds = array<i64: 1, 128, 128>}]} {
    %c0_i32 = arith.constant 0 : i32
    %0 = arith.cmpi eq, %arg2, %c0_i32 : i32
    %1 = arith.extui %0 : i1 to i32
    %c0_i32_0 = arith.constant 0 : i32
    %2 = arith.cmpi ne, %1, %c0_i32_0 : i32
    scf.if %2 {
      %cst_40 = arith.constant 0xFF800000 : f32
      %77 = vector.broadcast %cst_40 : f32 to vector<4x128x1xf32>
      %c0_41 = arith.constant 0 : index
      %c0_42 = arith.constant 0 : index
      %c0_43 = arith.constant 0 : index
      %78 = vector.load %arg7[%c0_41, %c0_42, %c0_43] : memref<4x128x1xf32, #tpu.memory_space<vmem>>, vector<4x128x1xf32>
      tpu.vector_store %arg7[%c0_41, %c0_42, %c0_43], %77 {strides = array<i32>} : memref<4x128x1xf32, #tpu.memory_space<vmem>>, vector<4x128x1xf32>,
      %cst_44 = arith.constant 0.000000e+00 : f32
      %79 = vector.broadcast %cst_44 : f32 to vector<4x128x1xf32>
      %c0_45 = arith.constant 0 : index
      %c0_46 = arith.constant 0 : index
      %c0_47 = arith.constant 0 : index
      %80 = vector.load %arg8[%c0_45, %c0_46, %c0_47] : memref<4x128x1xf32, #tpu.memory_space<vmem>>, vector<4x128x1xf32>
      tpu.vector_store %arg8[%c0_45, %c0_46, %c0_47], %79 {strides = array<i32>} : memref<4x128x1xf32, #tpu.memory_space<vmem>>, vector<4x128x1xf32>,
      %cst_48 = arith.constant 0.000000e+00 : f32
      %81 = vector.broadcast %cst_48 : f32 to vector<128x128xf32>
      %c0_49 = arith.constant 0 : index
      %c0_50 = arith.constant 0 : index
      %82 = vector.load %arg9[%c0_49, %c0_50] : memref<128x128xf32, #tpu.memory_space<vmem>>, vector<128x128xf32>
      tpu.vector_store %arg9[%c0_49, %c0_50], %81 {strides = array<i32>} : memref<128x128xf32, #tpu.memory_space<vmem>>, vector<128x128xf32>,
    } else {
    }
    %c0 = arith.constant 0 : index
    %c0_1 = arith.constant 0 : index
    %c0_2 = arith.constant 0 : index
    %3 = vector.load %arg3[%c0, %c0_1, %c0_2] : memref<4x128x32xf32, #tpu.memory_space<vmem>>, vector<4x128x32xf32>
    %cst = arith.constant 0.176776692 : f32
    %4 = vector.broadcast %cst : f32 to vector<4x128x32xf32>
    %5 = arith.mulf %3, %4 : vector<4x128x32xf32>
    %c128_i32 = arith.constant 128 : i32
    %6 = arith.muli %arg2, %c128_i32 : i32
    %7 = tpu.assume_multiple %6, 128 : i32
    %c0_3 = arith.constant 0 : index
    %8 = arith.index_cast %7 : i32 to index
    %c0_4 = arith.constant 0 : index
    %9 = vector.load %arg4[%c0_3, %8, %c0_4] : memref<4x128x32xf32, #tpu.memory_space<vmem>>, vector<4x128x32xf32>
    %c0_5 = arith.constant 0 : index
    %10 = arith.index_cast %7 : i32 to index
    %c0_6 = arith.constant 0 : index
    %11 = vector.load %arg5[%c0_5, %10, %c0_6] : memref<4x128x32xf32, #tpu.memory_space<vmem>>, vector<4x128x32xf32>
    %cst_7 = arith.constant dense<0.000000e+00> : vector<4x128x128xf32>
    %12 = tpu.matmul %5, %9, %cst_7 {dimension_numbers = #tpu.dot_dimension_numbers<[2], [2], [1], [1], [0, 0, 0, 1, 1, 1], [0], [0]>} : vector<4x128x32xf32>, vector<4x128x32xf32>, vector<4x128x128xf32> -> vector<4x128x128xf32>
    %c128_i32_8 = arith.constant 128 : i32
    %13 = arith.muli %arg2, %c128_i32_8 : i32
    %14 = tpu.iota {dimensions = array<i32: 2>} : vector<4x128x128xi32>
    %15 = vector.broadcast %13 : i32 to vector<4x128x128xi32>
    %16 = arith.addi %15, %14 : vector<4x128x128xi32>
    %c8_i32 = arith.constant 8 : i32
    %17 = vector.broadcast %c8_i32 : i32 to vector<4x128x128xi32>
    %18 = arith.cmpi slt, %16, %17 : vector<4x128x128xi32>
    %cst_9 = arith.constant -1.000000e+30 : f32
    %19 = vector.broadcast %cst_9 : f32 to vector<4x128x128xf32>
    %20 = arith.select %18, %12, %19 : vector<4x128x128xi1>, vector<4x128x128xf32>
    %c0_10 = arith.constant 0 : index
    %c0_11 = arith.constant 0 : index
    %c0_12 = arith.constant 0 : index
    %21 = vector.load %arg7[%c0_10, %c0_11, %c0_12] : memref<4x128x1xf32, #tpu.memory_space<vmem>>, vector<4x128x1xf32>
    %cst_13 = arith.constant dense<0xFF800000> : vector<4x128xf32>
    %22 = vector.multi_reduction <maximumf>, %20, %cst_13 [2] : vector<4x128x128xf32> to vector<4x128xf32>
    %23 = vector.shape_cast %22 : vector<4x128xf32> to vector<4x128x1xf32>
    %24 = arith.maximumf %21, %23 : vector<4x128x1xf32>
    %25 = arith.subf %21, %24 : vector<4x128x1xf32>
    %26 = math.exp %25 : vector<4x128x1xf32>
    %27 = vector.broadcast %24 : vector<4x128x1xf32> to vector<4x128x128xf32>
    %28 = arith.subf %20, %27 : vector<4x128x128xf32>
    %29 = math.exp %28 : vector<4x128x128xf32>
    %c0_14 = arith.constant 0 : index
    %c0_15 = arith.constant 0 : index
    %c0_16 = arith.constant 0 : index
    %30 = vector.load %arg8[%c0_14, %c0_15, %c0_16] : memref<4x128x1xf32, #tpu.memory_space<vmem>>, vector<4x128x1xf32>
    %31 = arith.mulf %26, %30 : vector<4x128x1xf32>
    %cst_17 = arith.constant dense<0.000000e+00> : vector<4x128xf32>
    %32 = vector.multi_reduction <add>, %29, %cst_17 [2] : vector<4x128x128xf32> to vector<4x128xf32>
    %33 = vector.shape_cast %32 : vector<4x128xf32> to vector<4x128x1xf32>
    %34 = arith.addf %31, %33 : vector<4x128x1xf32>
    %c0_18 = arith.constant 0 : index
    %c0_19 = arith.constant 0 : index
    %c0_20 = arith.constant 0 : index
    %35 = vector.load %arg8[%c0_18, %c0_19, %c0_20] : memref<4x128x1xf32, #tpu.memory_space<vmem>>, vector<4x128x1xf32>
    tpu.vector_store %arg8[%c0_18, %c0_19, %c0_20], %34 {strides = array<i32>} : memref<4x128x1xf32, #tpu.memory_space<vmem>>, vector<4x128x1xf32>,
    %c0_21 = arith.constant 0 : index
    %c0_22 = arith.constant 0 : index
    %c0_23 = arith.constant 0 : index
    %36 = vector.load %arg7[%c0_21, %c0_22, %c0_23] : memref<4x128x1xf32, #tpu.memory_space<vmem>>, vector<4x128x1xf32>
    tpu.vector_store %arg7[%c0_21, %c0_22, %c0_23], %24 {strides = array<i32>} : memref<4x128x1xf32, #tpu.memory_space<vmem>>, vector<4x128x1xf32>,
    %cst_24 = arith.constant dense<0.000000e+00> : vector<4x128x32xf32>
    %37 = tpu.matmul %29, %11, %cst_24 {dimension_numbers = #tpu.dot_dimension_numbers<[2], [1], [1], [2], [0, 0, 0, 1, 1, 2], [0], [0]>} : vector<4x128x128xf32>, vector<4x128x32xf32>, vector<4x128x32xf32> -> vector<4x128x32xf32>
    %38 = vector.extract_strided_slice %26 {offsets = [0, 0, 0], sizes = [1, 128, 1], strides = [1, 1, 1]} : vector<4x128x1xf32> to vector<1x128x1xf32>
    %39 = vector.shape_cast %38 : vector<1x128x1xf32> to vector<128x1xf32>
    %c0_25 = arith.constant 0 : index
    %c0_26 = arith.constant 0 : index
    %40 = vector.load %arg9[%c0_25, %c0_26] : memref<128x128xf32, #tpu.memory_space<vmem>>, vector<128x32xf32>
    %41 = vector.broadcast %39 : vector<128x1xf32> to vector<128x32xf32>
    %42 = arith.mulf %41, %40 : vector<128x32xf32>
    %43 = vector.extract_strided_slice %37 {offsets = [0, 0, 0], sizes = [1, 128, 32], strides = [1, 1, 1]} : vector<4x128x32xf32> to vector<1x128x32xf32>
    %44 = vector.shape_cast %43 : vector<1x128x32xf32> to vector<128x32xf32>
    %45 = arith.addf %42, %44 : vector<128x32xf32>
    %c0_27 = arith.constant 0 : index
    %c0_28 = arith.constant 0 : index
    %46 = vector.load %arg9[%c0_27, %c0_28] : memref<128x128xf32, #tpu.memory_space<vmem>>, vector<128x32xf32>
    tpu.vector_store %arg9[%c0_27, %c0_28], %45 {strides = array<i32>} : memref<128x128xf32, #tpu.memory_space<vmem>>, vector<128x32xf32>,
    %47 = vector.extract_strided_slice %26 {offsets = [1, 0, 0], sizes = [1, 128, 1], strides = [1, 1, 1]} : vector<4x128x1xf32> to vector<1x128x1xf32>
    %48 = vector.shape_cast %47 : vector<1x128x1xf32> to vector<128x1xf32>
    %c0_29 = arith.constant 0 : index
    %c32 = arith.constant 32 : index
    %49 = vector.load %arg9[%c0_29, %c32] : memref<128x128xf32, #tpu.memory_space<vmem>>, vector<128x32xf32>
    %50 = vector.broadcast %48 : vector<128x1xf32> to vector<128x32xf32>
    %51 = arith.mulf %50, %49 : vector<128x32xf32>
    %52 = vector.extract_strided_slice %37 {offsets = [1, 0, 0], sizes = [1, 128, 32], strides = [1, 1, 1]} : vector<4x128x32xf32> to vector<1x128x32xf32>
    %53 = vector.shape_cast %52 : vector<1x128x32xf32> to vector<128x32xf32>
    %54 = arith.addf %51, %53 : vector<128x32xf32>
    %c0_30 = arith.constant 0 : index
    %c32_31 = arith.constant 32 : index
    %55 = vector.load %arg9[%c0_30, %c32_31] : memref<128x128xf32, #tpu.memory_space<vmem>>, vector<128x32xf32>
    tpu.vector_store %arg9[%c0_30, %c32_31], %54 {strides = array<i32>} : memref<128x128xf32, #tpu.memory_space<vmem>>, vector<128x32xf32>,
    %56 = vector.extract_strided_slice %26 {offsets = [2, 0, 0], sizes = [1, 128, 1], strides = [1, 1, 1]} : vector<4x128x1xf32> to vector<1x128x1xf32>
    %57 = vector.shape_cast %56 : vector<1x128x1xf32> to vector<128x1xf32>
    %c0_32 = arith.constant 0 : index
    %c64 = arith.constant 64 : index
    %58 = vector.load %arg9[%c0_32, %c64] : memref<128x128xf32, #tpu.memory_space<vmem>>, vector<128x32xf32>
    %59 = vector.broadcast %57 : vector<128x1xf32> to vector<128x32xf32>
    %60 = arith.mulf %59, %58 : vector<128x32xf32>
    %61 = vector.extract_strided_slice %37 {offsets = [2, 0, 0], sizes = [1, 128, 32], strides = [1, 1, 1]} : vector<4x128x32xf32> to vector<1x128x32xf32>
    %62 = vector.shape_cast %61 : vector<1x128x32xf32> to vector<128x32xf32>
    %63 = arith.addf %60, %62 : vector<128x32xf32>
    %c0_33 = arith.constant 0 : index
    %c64_34 = arith.constant 64 : index
    %64 = vector.load %arg9[%c0_33, %c64_34] : memref<128x128xf32, #tpu.memory_space<vmem>>, vector<128x32xf32>
    tpu.vector_store %arg9[%c0_33, %c64_34], %63 {strides = array<i32>} : memref<128x128xf32, #tpu.memory_space<vmem>>, vector<128x32xf32>,
    %65 = vector.extract_strided_slice %26 {offsets = [3, 0, 0], sizes = [1, 128, 1], strides = [1, 1, 1]} : vector<4x128x1xf32> to vector<1x128x1xf32>
    %66 = vector.shape_cast %65 : vector<1x128x1xf32> to vector<128x1xf32>
    %c0_35 = arith.constant 0 : index
    %c96 = arith.constant 96 : index
    %67 = vector.load %arg9[%c0_35, %c96] : memref<128x128xf32, #tpu.memory_space<vmem>>, vector<128x32xf32>
    %68 = vector.broadcast %66 : vector<128x1xf32> to vector<128x32xf32>
    %69 = arith.mulf %68, %67 : vector<128x32xf32>
    %70 = vector.extract_strided_slice %37 {offsets = [3, 0, 0], sizes = [1, 128, 32], strides = [1, 1, 1]} : vector<4x128x32xf32> to vector<1x128x32xf32>
    %71 = vector.shape_cast %70 : vector<1x128x32xf32> to vector<128x32xf32>
    %72 = arith.addf %69, %71 : vector<128x32xf32>
    %c0_36 = arith.constant 0 : index
    %c96_37 = arith.constant 96 : index
    %73 = vector.load %arg9[%c0_36, %c96_37] : memref<128x128xf32, #tpu.memory_space<vmem>>, vector<128x32xf32>
    tpu.vector_store %arg9[%c0_36, %c96_37], %72 {strides = array<i32>} : memref<128x128xf32, #tpu.memory_space<vmem>>, vector<128x32xf32>,
    %c0_i32_38 = arith.constant 0 : i32
    %74 = arith.cmpi eq, %arg2, %c0_i32_38 : i32
    %75 = arith.extui %74 : i1 to i32
    %c0_i32_39 = arith.constant 0 : i32
    %76 = arith.cmpi ne, %75, %c0_i32_39 : i32
    scf.if %76 {
      %c0_40 = arith.constant 0 : index
      %c0_41 = arith.constant 0 : index
      %c0_42 = arith.constant 0 : index
      %77 = vector.load %arg8[%c0_40, %c0_41, %c0_42] : memref<4x128x1xf32, #tpu.memory_space<vmem>>, vector<4x128x1xf32>
      %78 = tpu.reciprocal %77 : vector<4x128x1xf32> -> vector<4x128x1xf32>
      %c0_43 = arith.constant 0 : index
      %c0_44 = arith.constant 0 : index
      %79 = vector.load %arg9[%c0_43, %c0_44] : memref<128x128xf32, #tpu.memory_space<vmem>>, vector<128x32xf32>
      %80 = vector.extract_strided_slice %78 {offsets = [0, 0, 0], sizes = [1, 128, 1], strides = [1, 1, 1]} : vector<4x128x1xf32> to vector<1x128x1xf32>
      %81 = vector.shape_cast %80 : vector<1x128x1xf32> to vector<128x1xf32>
      %82 = vector.broadcast %81 : vector<128x1xf32> to vector<128x32xf32>
      %83 = arith.mulf %79, %82 : vector<128x32xf32>
      %c0_45 = arith.constant 0 : index
      %c0_46 = arith.constant 0 : index
      %84 = vector.load %arg9[%c0_45, %c0_46] : memref<128x128xf32, #tpu.memory_space<vmem>>, vector<128x32xf32>
      tpu.vector_store %arg9[%c0_45, %c0_46], %83 {strides = array<i32>} : memref<128x128xf32, #tpu.memory_space<vmem>>, vector<128x32xf32>,
      %c0_47 = arith.constant 0 : index
      %c32_48 = arith.constant 32 : index
      %85 = vector.load %arg9[%c0_47, %c32_48] : memref<128x128xf32, #tpu.memory_space<vmem>>, vector<128x32xf32>
      %86 = vector.extract_strided_slice %78 {offsets = [1, 0, 0], sizes = [1, 128, 1], strides = [1, 1, 1]} : vector<4x128x1xf32> to vector<1x128x1xf32>
      %87 = vector.shape_cast %86 : vector<1x128x1xf32> to vector<128x1xf32>
      %88 = vector.broadcast %87 : vector<128x1xf32> to vector<128x32xf32>
      %89 = arith.mulf %85, %88 : vector<128x32xf32>
      %c0_49 = arith.constant 0 : index
      %c32_50 = arith.constant 32 : index
      %90 = vector.load %arg9[%c0_49, %c32_50] : memref<128x128xf32, #tpu.memory_space<vmem>>, vector<128x32xf32>
      tpu.vector_store %arg9[%c0_49, %c32_50], %89 {strides = array<i32>} : memref<128x128xf32, #tpu.memory_space<vmem>>, vector<128x32xf32>,
      %c0_51 = arith.constant 0 : index
      %c64_52 = arith.constant 64 : index
      %91 = vector.load %arg9[%c0_51, %c64_52] : memref<128x128xf32, #tpu.memory_space<vmem>>, vector<128x32xf32>
      %92 = vector.extract_strided_slice %78 {offsets = [2, 0, 0], sizes = [1, 128, 1], strides = [1, 1, 1]} : vector<4x128x1xf32> to vector<1x128x1xf32>
      %93 = vector.shape_cast %92 : vector<1x128x1xf32> to vector<128x1xf32>
      %94 = vector.broadcast %93 : vector<128x1xf32> to vector<128x32xf32>
      %95 = arith.mulf %91, %94 : vector<128x32xf32>
      %c0_53 = arith.constant 0 : index
      %c64_54 = arith.constant 64 : index
      %96 = vector.load %arg9[%c0_53, %c64_54] : memref<128x128xf32, #tpu.memory_space<vmem>>, vector<128x32xf32>
      tpu.vector_store %arg9[%c0_53, %c64_54], %95 {strides = array<i32>} : memref<128x128xf32, #tpu.memory_space<vmem>>, vector<128x32xf32>,
      %c0_55 = arith.constant 0 : index
      %c96_56 = arith.constant 96 : index
      %97 = vector.load %arg9[%c0_55, %c96_56] : memref<128x128xf32, #tpu.memory_space<vmem>>, vector<128x32xf32>
      %98 = vector.extract_strided_slice %78 {offsets = [3, 0, 0], sizes = [1, 128, 1], strides = [1, 1, 1]} : vector<4x128x1xf32> to vector<1x128x1xf32>
      %99 = vector.shape_cast %98 : vector<1x128x1xf32> to vector<128x1xf32>
      %100 = vector.broadcast %99 : vector<128x1xf32> to vector<128x32xf32>
      %101 = arith.mulf %97, %100 : vector<128x32xf32>
      %c0_57 = arith.constant 0 : index
      %c96_58 = arith.constant 96 : index
      %102 = vector.load %arg9[%c0_57, %c96_58] : memref<128x128xf32, #tpu.memory_space<vmem>>, vector<128x32xf32>
      tpu.vector_store %arg9[%c0_57, %c96_58], %101 {strides = array<i32>} : memref<128x128xf32, #tpu.memory_space<vmem>>, vector<128x32xf32>,
      %c0_59 = arith.constant 0 : index
      %c0_60 = arith.constant 0 : index
      %103 = vector.load %arg9[%c0_59, %c0_60] : memref<128x128xf32, #tpu.memory_space<vmem>>, vector<128x128xf32>
      %c0_61 = arith.constant 0 : index
      %c0_62 = arith.constant 0 : index
      %c0_63 = arith.constant 0 : index
      %104 = vector.load %arg6[%c0_61, %c0_62, %c0_63] : memref<1x128x128xf32, #tpu.memory_space<vmem>>, vector<1x128x128xf32>
      %105 = vector.shape_cast %104 : vector<1x128x128xf32> to vector<128x128xf32>
      %106 = vector.shape_cast %103 : vector<128x128xf32> to vector<1x128x128xf32>
      tpu.vector_store %arg6[%c0_61, %c0_62, %c0_63], %106 {strides = array<i32>} : memref<1x128x128xf32, #tpu.memory_space<vmem>>, vector<1x128x128xf32>,
    } else {
    }
    return
  }
  func.func @transform_0(%arg0: i32, %arg1: i32, %arg2: i32) -> (i32, i32, i32) {
    %c0_i32 = arith.constant 0 : i32
    %c0_i32_0 = arith.constant 0 : i32
    return %arg0, %arg1, %c0_i32 : i32, i32, i32
  }
  func.func @transform_1(%arg0: i32, %arg1: i32, %arg2: i32) -> (i32, i32, i32) {
    %c0_i32 = arith.constant 0 : i32
    %c0_i32_0 = arith.constant 0 : i32
    %c0_i32_1 = arith.constant 0 : i32
    return %arg0, %c0_i32, %c0_i32_0 : i32, i32, i32
  }
  func.func @transform_2(%arg0: i32, %arg1: i32, %arg2: i32) -> (i32, i32, i32) {
    %c0_i32 = arith.constant 0 : i32
    %c0_i32_0 = arith.constant 0 : i32
    %c0_i32_1 = arith.constant 0 : i32
    return %arg0, %c0_i32, %c0_i32_0 : i32, i32, i32
  }
  func.func @transform_3(%arg0: i32, %arg1: i32, %arg2: i32) -> (i32, i32, i32) {
    %c0_i32 = arith.constant 0 : i32
    %c0_i32_0 = arith.constant 0 : i32
    return %arg0, %arg1, %c0_i32 : i32, i32, i32
  }
}

</mosaic_0001>

<llo_original>
// kernel: tpu_custom_call.1
$region0: #{tpu_custom_call.1}
  #allocation0 [shape = 'u32[]', space=smem, size = 0x4, offset = 0x4, fixed_abs, tag = 'smem constant byte address 0x4 - core index']
  #allocation1 [shape = 'u32[144,128]{1,0:T(1,128)}', space=vmem, size = 0x12000, scoped, tag = 'internal scratch']
  #allocation2 [shape = 'f32[4,128,1]{2,1,0:T(8,128)}', space=vmem, size = 0x40000, scoped, tag = 'scratch operand']
  #allocation3 [shape = 'f32[4,128,1]{2,1,0:T(8,128)}', space=vmem, size = 0x40000, scoped, tag = 'scratch operand']
  #allocation4 [shape = 'f32[128,128]{1,0:T(8,128)}', space=vmem, size = 0x10000, scoped, tag = 'scratch operand']
  %s0 = inlined_call_operand.vmem [shape: f32[4,128,32], index: 0, kind: input, shape index: {}]
  %s1 = inlined_call_operand.vmem [shape: f32[4,128,32], index: 1, kind: input, shape index: {}]
  %s2 = inlined_call_operand.vmem [shape: f32[4,128,32], index: 2, kind: input, shape index: {}]
  %s3 = inlined_call_operand.hbm [shape: f32[1,128,128], index: 3, kind: output, shape index: {}]
  %s4 = sld [smem:[#allocation0]]
  $region30: #{tpu_custom_call.1} parent=0
    _
  %s6 = ssub.s32 1, %s4
  %s7 = scalar_select 0, %s6, %s4
  $region1: #{tpu_custom_call.1} parent=0
    #allocation5 [shape = 'u8[65536]{0}', space=vmem, size = 0x10000, scoped, tag = 'output window, operand 0, single buffered']
    #allocation6 [shape = 's32[1]{0}', space=sflag, size = 0x4, scoped, tag = 'scoped memory for tpu_custom_call.1']
    %8 = vsyncpa [#allocation6], 0
    // Predicated region
    $region2: #{tpu_custom_call.1} parent=1 // pred_check
      _
    $region3: #{tpu_custom_call.1} parent=1 // pred_check_branch
      %10 = sbr.rel (0) target = $region5
    $region4: #{tpu_custom_call.1} parent=1 // pred_region
      _
    $region5: #{tpu_custom_call.1} parent=1 // pred_fallthru
      _
    // Predicated region
    $region6: #{tpu_custom_call.1} parent=1 // pred_check
      _
    $region7: #{tpu_custom_call.1} parent=1 // pred_check_branch
      %12 = sbr.rel (0) target = $region9
    $region8: #{tpu_custom_call.1} parent=1 // pred_region
      _
    $region9: #{tpu_custom_call.1} parent=1 // pred_fallthru
      _
    // Predicated region
    $region10: #{tpu_custom_call.1} parent=1 // pred_check
      _
    $region11: #{tpu_custom_call.1} parent=1 // pred_check_branch
      %14 = sbr.rel (0) target = $region13
    $region12: #{tpu_custom_call.1} parent=1 // pred_region
      _
    $region13: #{tpu_custom_call.1} parent=1 // pred_fallthru
      _
    %p15 = scmp.eq.s32.totalorder 0, 0
    // Predicated region
    $region14: #{tpu_custom_call.1} parent=1 // pred_check
      %p16 = pneg %p15
    $region15: #{tpu_custom_call.1} parent=1 // pred_check_branch
      %18 = sbr.rel (%p16) target = $region17
    $region16: #{tpu_custom_call.1} parent=1 // pred_region
      %vm19 = vcmask 7168
      %20 = vst.msk [vmem:[#allocation2] sm:$0xff] %vm19, -inf
      %21 = vst.msk [vmem:[#allocation2 + $0x8] sm:$0xff] %vm19, -inf
      %22 = vst.msk [vmem:[#allocation2 + $0x10] sm:$0xff] %vm19, -inf
      %23 = vst.msk [vmem:[#allocation2 + $0x18] sm:$0xff] %vm19, -inf
      %24 = vst.msk [vmem:[#allocation2 + $0x20] sm:$0xff] %vm19, -inf
      %25 = vst.msk [vmem:[#allocation2 + $0x28] sm:$0xff] %vm19, -inf
      %26 = vst.msk [vmem:[#allocation2 + $0x30] sm:$0xff] %vm19, -inf
      %27 = vst.msk [vmem:[#allocation2 + $0x38] sm:$0xff] %vm19, -inf
      %28 = vst.msk [vmem:[#allocation2 + $0x40] sm:$0xff] %vm19, -inf
      %29 = vst.msk [vmem:[#allocation2 + $0x48] sm:$0xff] %vm19, -inf
      %30 = vst.msk [vmem:[#allocation2 + $0x50] sm:$0xff] %vm19, -inf
      %31 = vst.msk [vmem:[#allocation2 + $0x58] sm:$0xff] %vm19, -inf
      %32 = vst.msk [vmem:[#allocation2 + $0x60] sm:$0xff] %vm19, -inf
      %33 = vst.msk [vmem:[#allocation2 + $0x68] sm:$0xff] %vm19, -inf
      %34 = vst.msk [vmem:[#allocation2 + $0x70] sm:$0xff] %vm19, -inf
      %35 = vst.msk [vmem:[#allocation2 + $0x78] sm:$0xff] %vm19, -inf
      %36 = vst.msk [vmem:[#allocation2 + $0x80] sm:$0xff] %vm19, -inf
      %37 = vst.msk [vmem:[#allocation2 + $0x88] sm:$0xff] %vm19, -inf
      %38 = vst.msk [vmem:[#allocation2 + $0x90] sm:$0xff] %vm19, -inf
      %39 = vst.msk [vmem:[#allocation2 + $0x98] sm:$0xff] %vm19, -inf
      %40 = vst.msk [vmem:[#allocation2 + $0xa0] sm:$0xff] %vm19, -inf
      %41 = vst.msk [vmem:[#allocation2 + $0xa8] sm:$0xff] %vm19, -inf
      %42 = vst.msk [vmem:[#allocation2 + $0xb0] sm:$0xff] %vm19, -inf
      %43 = vst.msk [vmem:[#allocation2 + $0xb8] sm:$0xff] %vm19, -inf
      %44 = vst.msk [vmem:[#allocation2 + $0xc0] sm:$0xff] %vm19, -inf
      %45 = vst.msk [vmem:[#allocation2 + $0xc8] sm:$0xff] %vm19, -inf
      %46 = vst.msk [vmem:[#allocation2 + $0xd0] sm:$0xff] %vm19, -inf
      %47 = vst.msk [vmem:[#allocation2 + $0xd8] sm:$0xff] %vm19, -inf
      %48 = vst.msk [vmem:[#allocation2 + $0xe0] sm:$0xff] %vm19, -inf
      %49 = vst.msk [vmem:[#allocation2 + $0xe8] sm:$0xff] %vm19, -inf
      %50 = vst.msk [vmem:[#allocation2 + $0xf0] sm:$0xff] %vm19, -inf
      %51 = vst.msk [vmem:[#allocation2 + $0xf8] sm:$0xff] %vm19, -inf
      %52 = vst.msk [vmem:[#allocation2 + $0x100] sm:$0xff] %vm19, -inf
      %53 = vst.msk [vmem:[#allocation2 + $0x108] sm:$0xff] %vm19, -inf
      %54 = vst.msk [vmem:[#allocation2 + $0x110] sm:$0xff] %vm19, -inf
      %55 = vst.msk [vmem:[#allocation2 + $0x118] sm:$0xff] %vm19, -inf
      %56 = vst.msk [vmem:[#allocation2 + $0x120] sm:$0xff] %vm19, -inf
      %57 = vst.msk [vmem:[#allocation2 + $0x128] sm:$0xff] %vm19, -inf
      %58 = vst.msk [vmem:[#allocation2 + $0x130] sm:$0xff] %vm19, -inf
      %59 = vst.msk [vmem:[#allocation2 + $0x138] sm:$0xff] %vm19, -inf
      %60 = vst.msk [vmem:[#allocation2 + $0x140] sm:$0xff] %vm19, -inf
      %61 = vst.msk [vmem:[#allocation2 + $0x148] sm:$0xff] %vm19, -inf
      %62 = vst.msk [vmem:[#allocation2 + $0x150] sm:$0xff] %vm19, -inf
      %63 = vst.msk [vmem:[#allocation2 + $0x158] sm:$0xff] %vm19, -inf
      %64 = vst.msk [vmem:[#allocation2 + $0x160] sm:$0xff] %vm19, -inf
      %65 = vst.msk [vmem:[#allocation2 + $0x168] sm:$0xff] %vm19, -inf
      %66 = vst.msk [vmem:[#allocation2 + $0x170] sm:$0xff] %vm19, -inf
      %67 = vst.msk [vmem:[#allocation2 + $0x178] sm:$0xff] %vm19, -inf
      %68 = vst.msk [vmem:[#allocation2 + $0x180] sm:$0xff] %vm19, -inf
      %69 = vst.msk [vmem:[#allocation2 + $0x188] sm:$0xff] %vm19, -inf
      %70 = vst.msk [vmem:[#allocation2 + $0x190] sm:$0xff] %vm19, -inf
      %71 = vst.msk [vmem:[#allocation2 + $0x198] sm:$0xff] %vm19, -inf
      %72 = vst.msk [vmem:[#allocation2 + $0x1a0] sm:$0xff] %vm19, -inf
      %73 = vst.msk [vmem:[#allocation2 + $0x1a8] sm:$0xff] %vm19, -inf
      %74 = vst.msk [vmem:[#allocation2 + $0x1b0] sm:$0xff] %vm19, -inf
      %75 = vst.msk [vmem:[#allocation2 + $0x1b8] sm:$0xff] %vm19, -inf
      %76 = vst.msk [vmem:[#allocation2 + $0x1c0] sm:$0xff] %vm19, -inf
      %77 = vst.msk [vmem:[#allocation2 + $0x1c8] sm:$0xff] %vm19, -inf
      %78 = vst.msk [vmem:[#allocation2 + $0x1d0] sm:$0xff] %vm19, -inf
      %79 = vst.msk [vmem:[#allocation2 + $0x1d8] sm:$0xff] %vm19, -inf
      %80 = vst.msk [vmem:[#allocation2 + $0x1e0] sm:$0xff] %vm19, -inf
      %81 = vst.msk [vmem:[#allocation2 + $0x1e8] sm:$0xff] %vm19, -inf
      %82 = vst.msk [vmem:[#allocation2 + $0x1f0] sm:$0xff] %vm19, -inf
      %83 = vst.msk [vmem:[#allocation2 + $0x1f8] sm:$0xff] %vm19, -inf
      %84 = vst.msk [vmem:[#allocation3] sm:$0xff] %vm19, 0.0
      %85 = vst.msk [vmem:[#allocation3 + $0x8] sm:$0xff] %vm19, 0.0
      %86 = vst.msk [vmem:[#allocation3 + $0x10] sm:$0xff] %vm19, 0.0
      %87 = vst.msk [vmem:[#allocation3 + $0x18] sm:$0xff] %vm19, 0.0
      %88 = vst.msk [vmem:[#allocation3 + $0x20] sm:$0xff] %vm19, 0.0
      %89 = vst.msk [vmem:[#allocation3 + $0x28] sm:$0xff] %vm19, 0.0
      %90 = vst.msk [vmem:[#allocation3 + $0x30] sm:$0xff] %vm19, 0.0
      %91 = vst.msk [vmem:[#allocation3 + $0x38] sm:$0xff] %vm19, 0.0
      %92 = vst.msk [vmem:[#allocation3 + $0x40] sm:$0xff] %vm19, 0.0
      %93 = vst.msk [vmem:[#allocation3 + $0x48] sm:$0xff] %vm19, 0.0
      %94 = vst.msk [vmem:[#allocation3 + $0x50] sm:$0xff] %vm19, 0.0
      %95 = vst.msk [vmem:[#allocation3 + $0x58] sm:$0xff] %vm19, 0.0
      %96 = vst.msk [vmem:[#allocation3 + $0x60] sm:$0xff] %vm19, 0.0
      %97 = vst.msk [vmem:[#allocation3 + $0x68] sm:$0xff] %vm19, 0.0
      %98 = vst.msk [vmem:[#allocation3 + $0x70] sm:$0xff] %vm19, 0.0
      %99 = vst.msk [vmem:[#allocation3 + $0x78] sm:$0xff] %vm19, 0.0
      %100 = vst.msk [vmem:[#allocation3 + $0x80] sm:$0xff] %vm19, 0.0
      %101 = vst.msk [vmem:[#allocation3 + $0x88] sm:$0xff] %vm19, 0.0
      %102 = vst.msk [vmem:[#allocation3 + $0x90] sm:$0xff] %vm19, 0.0
      %103 = vst.msk [vmem:[#allocation3 + $0x98] sm:$0xff] %vm19, 0.0
      %104 = vst.msk [vmem:[#allocation3 + $0xa0] sm:$0xff] %vm19, 0.0
      %105 = vst.msk [vmem:[#allocation3 + $0xa8] sm:$0xff] %vm19, 0.0
      %106 = vst.msk [vmem:[#allocation3 + $0xb0] sm:$0xff] %vm19, 0.0
      %107 = vst.msk [vmem:[#allocation3 + $0xb8] sm:$0xff] %vm19, 0.0
      %108 = vst.msk [vmem:[#allocation3 + $0xc0] sm:$0xff] %vm19, 0.0
      %109 = vst.msk [vmem:[#allocation3 + $0xc8] sm:$0xff] %vm19, 0.0
      %110 = vst.msk [vmem:[#allocation3 + $0xd0] sm:$0xff] %vm19, 0.0
      %111 = vst.msk [vmem:[#allocation3 + $0xd8] sm:$0xff] %vm19, 0.0
      %112 = vst.msk [vmem:[#allocation3 + $0xe0] sm:$0xff] %vm19, 0.0
      %113 = vst.msk [vmem:[#allocation3 + $0xe8] sm:$0xff] %vm19, 0.0
      %114 = vst.msk [vmem:[#allocation3 + $0xf0] sm:$0xff] %vm19, 0.0
      %115 = vst.msk [vmem:[#allocation3 + $0xf8] sm:$0xff] %vm19, 0.0
      %116 = vst.msk [vmem:[#allocation3 + $0x100] sm:$0xff] %vm19, 0.0
      %117 = vst.msk [vmem:[#allocation3 + $0x108] sm:$0xff] %vm19, 0.0
      %118 = vst.msk [vmem:[#allocation3 + $0x110] sm:$0xff] %vm19, 0.0
      %119 = vst.msk [vmem:[#allocation3 + $0x118] sm:$0xff] %vm19, 0.0
      %120 = vst.msk [vmem:[#allocation3 + $0x120] sm:$0xff] %vm19, 0.0
      %121 = vst.msk [vmem:[#allocation3 + $0x128] sm:$0xff] %vm19, 0.0
      %122 = vst.msk [vmem:[#allocation3 + $0x130] sm:$0xff] %vm19, 0.0
      %123 = vst.msk [vmem:[#allocation3 + $0x138] sm:$0xff] %vm19, 0.0
      %124 = vst.msk [vmem:[#allocation3 + $0x140] sm:$0xff] %vm19, 0.0
      %125 = vst.msk [vmem:[#allocation3 + $0x148] sm:$0xff] %vm19, 0.0
      %126 = vst.msk [vmem:[#allocation3 + $0x150] sm:$0xff] %vm19, 0.0
      %127 = vst.msk [vmem:[#allocation3 + $0x158] sm:$0xff] %vm19, 0.0
      %128 = vst.msk [vmem:[#allocation3 + $0x160] sm:$0xff] %vm19, 0.0
      %129 = vst.msk [vmem:[#allocation3 + $0x168] sm:$0xff] %vm19, 0.0
      %130 = vst.msk [vmem:[#allocation3 + $0x170] sm:$0xff] %vm19, 0.0
      %131 = vst.msk [vmem:[#allocation3 + $0x178] sm:$0xff] %vm19, 0.0
      %132 = vst.msk [vmem:[#allocation3 + $0x180] sm:$0xff] %vm19, 0.0
      %133 = vst.msk [vmem:[#allocation3 + $0x188] sm:$0xff] %vm19, 0.0
      %134 = vst.msk [vmem:[#allocation3 + $0x190] sm:$0xff] %vm19, 0.0
      %135 = vst.msk [vmem:[#allocation3 + $0x198] sm:$0xff] %vm19, 0.0
      %136 = vst.msk [vmem:[#allocation3 + $0x1a0] sm:$0xff] %vm19, 0.0
      %137 = vst.msk [vmem:[#allocation3 + $0x1a8] sm:$0xff] %vm19, 0.0
      %138 = vst.msk [vmem:[#allocation3 + $0x1b0] sm:$0xff] %vm19, 0.0
      %139 = vst.msk [vmem:[#allocation3 + $0x1b8] sm:$0xff] %vm19, 0.0
      %140 = vst.msk [vmem:[#allocation3 + $0x1c0] sm:$0xff] %vm19, 0.0
      %141 = vst.msk [vmem:[#allocation3 + $0x1c8] sm:$0xff] %vm19, 0.0
      %142 = vst.msk [vmem:[#allocation3 + $0x1d0] sm:$0xff] %vm19, 0.0
      %143 = vst.msk [vmem:[#allocation3 + $0x1d8] sm:$0xff] %vm19, 0.0
      %144 = vst.msk [vmem:[#allocation3 + $0x1e0] sm:$0xff] %vm19, 0.0
      %145 = vst.msk [vmem:[#allocation3 + $0x1e8] sm:$0xff] %vm19, 0.0
      %146 = vst.msk [vmem:[#allocation3 + $0x1f0] sm:$0xff] %vm19, 0.0
      %147 = vst.msk [vmem:[#allocation3 + $0x1f8] sm:$0xff] %vm19, 0.0
      %148 = vst [vmem:[#allocation4] sm:$0xff] 0.0
      %149 = vst [vmem:[#allocation4 + $0x8] sm:$0xff] 0.0
      %150 = vst [vmem:[#allocation4 + $0x10] sm:$0xff] 0.0
      %151 = vst [vmem:[#allocation4 + $0x18] sm:$0xff] 0.0
      %152 = vst [vmem:[#allocation4 + $0x20] sm:$0xff] 0.0
      %153 = vst [vmem:[#allocation4 + $0x28] sm:$0xff] 0.0
      %154 = vst [vmem:[#allocation4 + $0x30] sm:$0xff] 0.0
      %155 = vst [vmem:[#allocation4 + $0x38] sm:$0xff] 0.0
      %156 = vst [vmem:[#allocation4 + $0x40] sm:$0xff] 0.0
      %157 = vst [vmem:[#allocation4 + $0x48] sm:$0xff] 0.0
      %158 = vst [vmem:[#allocation4 + $0x50] sm:$0xff] 0.0
      %159 = vst [vmem:[#allocation4 + $0x58] sm:$0xff] 0.0
      %160 = vst [vmem:[#allocation4 + $0x60] sm:$0xff] 0.0
      %161 = vst [vmem:[#allocation4 + $0x68] sm:$0xff] 0.0
      %162 = vst [vmem:[#allocation4 + $0x70] sm:$0xff] 0.0
      %163 = vst [vmem:[#allocation4 + $0x78] sm:$0xff] 0.0
    $region17: #{tpu_custom_call.1} parent=1 // pred_fallthru
      _
    %v164 = vld [vmem:[%s0] sm:$0xff]
    %v165 = vld [vmem:[%s0 + $0x8] sm:$0xff]
    %v166 = vld [vmem:[%s0 + $0x10] sm:$0xff]
    %v167 = vld [vmem:[%s0 + $0x18] sm:$0xff]
    %v168 = vld [vmem:[%s0 + $0x20] sm:$0xff]
    %v169 = vld [vmem:[%s0 + $0x28] sm:$0xff]
    %v170 = vld [vmem:[%s0 + $0x30] sm:$0xff]
    %v171 = vld [vmem:[%s0 + $0x38] sm:$0xff]
    %v172 = vld [vmem:[%s0 + $0x40] sm:$0xff]
    %v173 = vld [vmem:[%s0 + $0x48] sm:$0xff]
    %v174 = vld [vmem:[%s0 + $0x50] sm:$0xff]
    %v175 = vld [vmem:[%s0 + $0x58] sm:$0xff]
    %v176 = vld [vmem:[%s0 + $0x60] sm:$0xff]
    %v177 = vld [vmem:[%s0 + $0x68] sm:$0xff]
    %v178 = vld [vmem:[%s0 + $0x70] sm:$0xff]
    %v179 = vld [vmem:[%s0 + $0x78] sm:$0xff]
    %v180 = vld [vmem:[%s0 + $0x80] sm:$0xff]
    %v181 = vld [vmem:[%s0 + $0x88] sm:$0xff]
    %v182 = vld [vmem:[%s0 + $0x90] sm:$0xff]
    %v183 = vld [vmem:[%s0 + $0x98] sm:$0xff]
    %v184 = vld [vmem:[%s0 + $0xa0] sm:$0xff]
    %v185 = vld [vmem:[%s0 + $0xa8] sm:$0xff]
    %v186 = vld [vmem:[%s0 + $0xb0] sm:$0xff]
    %v187 = vld [vmem:[%s0 + $0xb8] sm:$0xff]
    %v188 = vld [vmem:[%s0 + $0xc0] sm:$0xff]
    %v189 = vld [vmem:[%s0 + $0xc8] sm:$0xff]
    %v190 = vld [vmem:[%s0 + $0xd0] sm:$0xff]
    %v191 = vld [vmem:[%s0 + $0xd8] sm:$0xff]
    %v192 = vld [vmem:[%s0 + $0xe0] sm:$0xff]
    %v193 = vld [vmem:[%s0 + $0xe8] sm:$0xff]
    %v194 = vld [vmem:[%s0 + $0xf0] sm:$0xff]
    %v195 = vld [vmem:[%s0 + $0xf8] sm:$0xff]
    %v196 = vld [vmem:[%s0 + $0x100] sm:$0xff]
    %v197 = vld [vmem:[%s0 + $0x108] sm:$0xff]
    %v198 = vld [vmem:[%s0 + $0x110] sm:$0xff]
    %v199 = vld [vmem:[%s0 + $0x118] sm:$0xff]
    %v200 = vld [vmem:[%s0 + $0x120] sm:$0xff]
    %v201 = vld [vmem:[%s0 + $0x128] sm:$0xff]
    %v202 = vld [vmem:[%s0 + $0x130] sm:$0xff]
    %v203 = vld [vmem:[%s0 + $0x138] sm:$0xff]
    %v204 = vld [vmem:[%s0 + $0x140] sm:$0xff]
    %v205 = vld [vmem:[%s0 + $0x148] sm:$0xff]
    %v206 = vld [vmem:[%s0 + $0x150] sm:$0xff]
    %v207 = vld [vmem:[%s0 + $0x158] sm:$0xff]
    %v208 = vld [vmem:[%s0 + $0x160] sm:$0xff]
    %v209 = vld [vmem:[%s0 + $0x168] sm:$0xff]
    %v210 = vld [vmem:[%s0 + $0x170] sm:$0xff]
    %v211 = vld [vmem:[%s0 + $0x178] sm:$0xff]
    %v212 = vld [vmem:[%s0 + $0x180] sm:$0xff]
    %v213 = vld [vmem:[%s0 + $0x188] sm:$0xff]
    %v214 = vld [vmem:[%s0 + $0x190] sm:$0xff]
    %v215 = vld [vmem:[%s0 + $0x198] sm:$0xff]
    %v216 = vld [vmem:[%s0 + $0x1a0] sm:$0xff]
    %v217 = vld [vmem:[%s0 + $0x1a8] sm:$0xff]
    %v218 = vld [vmem:[%s0 + $0x1b0] sm:$0xff]
    %v219 = vld [vmem:[%s0 + $0x1b8] sm:$0xff]
    %v220 = vld [vmem:[%s0 + $0x1c0] sm:$0xff]
    %v221 = vld [vmem:[%s0 + $0x1c8] sm:$0xff]
    %v222 = vld [vmem:[%s0 + $0x1d0] sm:$0xff]
    %v223 = vld [vmem:[%s0 + $0x1d8] sm:$0xff]
    %v224 = vld [vmem:[%s0 + $0x1e0] sm:$0xff]
    %v225 = vld [vmem:[%s0 + $0x1e8] sm:$0xff]
    %v226 = vld [vmem:[%s0 + $0x1f0] sm:$0xff]
    %v227 = vld [vmem:[%s0 + $0x1f8] sm:$0xff]
    %v228 = vmul.f32 %v164, 0.17677669
    %v229 = vmul.f32 %v165, 0.17677669
    %v230 = vmul.f32 %v166, 0.17677669
    %v231 = vmul.f32 %v167, 0.17677669
    %v232 = vmul.f32 %v168, 0.17677669
    %v233 = vmul.f32 %v169, 0.17677669
    %v234 = vmul.f32 %v170, 0.17677669
    %v235 = vmul.f32 %v171, 0.17677669
    %v236 = vmul.f32 %v172, 0.17677669
    %v237 = vmul.f32 %v173, 0.17677669
    %v238 = vmul.f32 %v174, 0.17677669
    %v239 = vmul.f32 %v175, 0.17677669
    %v240 = vmul.f32 %v176, 0.17677669
    %v241 = vmul.f32 %v177, 0.17677669
    %v242 = vmul.f32 %v178, 0.17677669
    %v243 = vmul.f32 %v179, 0.17677669
    %v244 = vmul.f32 %v180, 0.17677669
    %v245 = vmul.f32 %v181, 0.17677669
    %v246 = vmul.f32 %v182, 0.17677669
    %v247 = vmul.f32 %v183, 0.17677669
    %v248 = vmul.f32 %v184, 0.17677669
    %v249 = vmul.f32 %v185, 0.17677669
    %v250 = vmul.f32 %v186, 0.17677669
    %v251 = vmul.f32 %v187, 0.17677669
    %v252 = vmul.f32 %v188, 0.17677669
    %v253 = vmul.f32 %v189, 0.17677669
    %v254 = vmul.f32 %v190, 0.17677669
    %v255 = vmul.f32 %v191, 0.17677669
    %v256 = vmul.f32 %v192, 0.17677669
    %v257 = vmul.f32 %v193, 0.17677669
    %v258 = vmul.f32 %v194, 0.17677669
    %v259 = vmul.f32 %v195, 0.17677669
    %v260 = vmul.f32 %v196, 0.17677669
    %v261 = vmul.f32 %v197, 0.17677669
    %v262 = vmul.f32 %v198, 0.17677669
    %v263 = vmul.f32 %v199, 0.17677669
    %v264 = vmul.f32 %v200, 0.17677669
    %v265 = vmul.f32 %v201, 0.17677669
    %v266 = vmul.f32 %v202, 0.17677669
    %v267 = vmul.f32 %v203, 0.17677669
    %v268 = vmul.f32 %v204, 0.17677669
    %v269 = vmul.f32 %v205, 0.17677669
    %v270 = vmul.f32 %v206, 0.17677669
    %v271 = vmul.f32 %v207, 0.17677669
    %v272 = vmul.f32 %v208, 0.17677669
    %v273 = vmul.f32 %v209, 0.17677669
    %v274 = vmul.f32 %v210, 0.17677669
    %v275 = vmul.f32 %v211, 0.17677669
    %v276 = vmul.f32 %v212, 0.17677669
    %v277 = vmul.f32 %v213, 0.17677669
    %v278 = vmul.f32 %v214, 0.17677669
    %v279 = vmul.f32 %v215, 0.17677669
    %v280 = vmul.f32 %v216, 0.17677669
    %v281 = vmul.f32 %v217, 0.17677669
    %v282 = vmul.f32 %v218, 0.17677669
    %v283 = vmul.f32 %v219, 0.17677669
    %v284 = vmul.f32 %v220, 0.17677669
    %v285 = vmul.f32 %v221, 0.17677669
    %v286 = vmul.f32 %v222, 0.17677669
    %v287 = vmul.f32 %v223, 0.17677669
    %v288 = vmul.f32 %v224, 0.17677669
    %v289 = vmul.f32 %v225, 0.17677669
    %v290 = vmul.f32 %v226, 0.17677669
    %v291 = vmul.f32 %v227, 0.17677669
    %s292 = smul.u32 0, 128
    %s293 = scalar_lea.vmem %s1, %s292
    %v294 = vld [vmem:[%s293] sm:$0xff]
    %v295 = vld [vmem:[%s293 + $0x8] sm:$0xff]
    %v296 = vld [vmem:[%s293 + $0x10] sm:$0xff]
    %v297 = vld [vmem:[%s293 + $0x18] sm:$0xff]
    %v298 = vld [vmem:[%s293 + $0x20] sm:$0xff]
    %v299 = vld [vmem:[%s293 + $0x28] sm:$0xff]
    %v300 = vld [vmem:[%s293 + $0x30] sm:$0xff]
    %v301 = vld [vmem:[%s293 + $0x38] sm:$0xff]
    %v302 = vld [vmem:[%s293 + $0x40] sm:$0xff]
    %v303 = vld [vmem:[%s293 + $0x48] sm:$0xff]
    %v304 = vld [vmem:[%s293 + $0x50] sm:$0xff]
    %v305 = vld [vmem:[%s293 + $0x58] sm:$0xff]
    %v306 = vld [vmem:[%s293 + $0x60] sm:$0xff]
    %v307 = vld [vmem:[%s293 + $0x68] sm:$0xff]
    %v308 = vld [vmem:[%s293 + $0x70] sm:$0xff]
    %v309 = vld [vmem:[%s293 + $0x78] sm:$0xff]
    %v310 = vld [vmem:[%s293 + $0x80] sm:$0xff]
    %v311 = vld [vmem:[%s293 + $0x88] sm:$0xff]
    %v312 = vld [vmem:[%s293 + $0x90] sm:$0xff]
    %v313 = vld [vmem:[%s293 + $0x98] sm:$0xff]
    %v314 = vld [vmem:[%s293 + $0xa0] sm:$0xff]
    %v315 = vld [vmem:[%s293 + $0xa8] sm:$0xff]
    %v316 = vld [vmem:[%s293 + $0xb0] sm:$0xff]
    %v317 = vld [vmem:[%s293 + $0xb8] sm:$0xff]
    %v318 = vld [vmem:[%s293 + $0xc0] sm:$0xff]
    %v319 = vld [vmem:[%s293 + $0xc8] sm:$0xff]
    %v320 = vld [vmem:[%s293 + $0xd0] sm:$0xff]
    %v321 = vld [vmem:[%s293 + $0xd8] sm:$0xff]
    %v322 = vld [vmem:[%s293 + $0xe0] sm:$0xff]
    %v323 = vld [vmem:[%s293 + $0xe8] sm:$0xff]
    %v324 = vld [vmem:[%s293 + $0xf0] sm:$0xff]
    %v325 = vld [vmem:[%s293 + $0xf8] sm:$0xff]
    %v326 = vld [vmem:[%s293 + $0x100] sm:$0xff]
    %v327 = vld [vmem:[%s293 + $0x108] sm:$0xff]
    %v328 = vld [vmem:[%s293 + $0x110] sm:$0xff]
    %v329 = vld [vmem:[%s293 + $0x118] sm:$0xff]
    %v330 = vld [vmem:[%s293 + $0x120] sm:$0xff]
    %v331 = vld [vmem:[%s293 + $0x128] sm:$0xff]
    %v332 = vld [vmem:[%s293 + $0x130] sm:$0xff]
    %v333 = vld [vmem:[%s293 + $0x138] sm:$0xff]
    %v334 = vld [vmem:[%s293 + $0x140] sm:$0xff]
    %v335 = vld [vmem:[%s293 + $0x148] sm:$0xff]
    %v336 = vld [vmem:[%s293 + $0x150] sm:$0xff]
    %v337 = vld [vmem:[%s293 + $0x158] sm:$0xff]
    %v338 = vld [vmem:[%s293 + $0x160] sm:$0xff]
    %v339 = vld [vmem:[%s293 + $0x168] sm:$0xff]
    %v340 = vld [vmem:[%s293 + $0x170] sm:$0xff]
    %v341 = vld [vmem:[%s293 + $0x178] sm:$0xff]
    %v342 = vld [vmem:[%s293 + $0x180] sm:$0xff]
    %v343 = vld [vmem:[%s293 + $0x188] sm:$0xff]
    %v344 = vld [vmem:[%s293 + $0x190] sm:$0xff]
    %v345 = vld [vmem:[%s293 + $0x198] sm:$0xff]
    %v346 = vld [vmem:[%s293 + $0x1a0] sm:$0xff]
    %v347 = vld [vmem:[%s293 + $0x1a8] sm:$0xff]
    %v348 = vld [vmem:[%s293 + $0x1b0] sm:$0xff]
    %v349 = vld [vmem:[%s293 + $0x1b8] sm:$0xff]
    %v350 = vld [vmem:[%s293 + $0x1c0] sm:$0xff]
    %v351 = vld [vmem:[%s293 + $0x1c8] sm:$0xff]
    %v352 = vld [vmem:[%s293 + $0x1d0] sm:$0xff]
    %v353 = vld [vmem:[%s293 + $0x1d8] sm:$0xff]
    %v354 = vld [vmem:[%s293 + $0x1e0] sm:$0xff]
    %v355 = vld [vmem:[%s293 + $0x1e8] sm:$0xff]
    %v356 = vld [vmem:[%s293 + $0x1f0] sm:$0xff]
    %v357 = vld [vmem:[%s293 + $0x1f8] sm:$0xff]
    %s358 = scalar_lea.vmem %s2, %s292
    %v359 = vld [vmem:[%s358] sm:$0xff]
    %v360 = vld [vmem:[%s358 + $0x8] sm:$0xff]
    %v361 = vld [vmem:[%s358 + $0x10] sm:$0xff]
    %v362 = vld [vmem:[%s358 + $0x18] sm:$0xff]
    %v363 = vld [vmem:[%s358 + $0x20] sm:$0xff]
    %v364 = vld [vmem:[%s358 + $0x28] sm:$0xff]
    %v365 = vld [vmem:[%s358 + $0x30] sm:$0xff]
    %v366 = vld [vmem:[%s358 + $0x38] sm:$0xff]
    %v367 = vld [vmem:[%s358 + $0x40] sm:$0xff]
    %v368 = vld [vmem:[%s358 + $0x48] sm:$0xff]
    %v369 = vld [vmem:[%s358 + $0x50] sm:$0xff]
    %v370 = vld [vmem:[%s358 + $0x58] sm:$0xff]
    %v371 = vld [vmem:[%s358 + $0x60] sm:$0xff]
    %v372 = vld [vmem:[%s358 + $0x68] sm:$0xff]
    %v373 = vld [vmem:[%s358 + $0x70] sm:$0xff]
    %v374 = vld [vmem:[%s358 + $0x78] sm:$0xff]
    %v375 = vld [vmem:[%s358 + $0x80] sm:$0xff]
    %v376 = vld [vmem:[%s358 + $0x88] sm:$0xff]
    %v377 = vld [vmem:[%s358 + $0x90] sm:$0xff]
    %v378 = vld [vmem:[%s358 + $0x98] sm:$0xff]
    %v379 = vld [vmem:[%s358 + $0xa0] sm:$0xff]
    %v380 = vld [vmem:[%s358 + $0xa8] sm:$0xff]
    %v381 = vld [vmem:[%s358 + $0xb0] sm:$0xff]
    %v382 = vld [vmem:[%s358 + $0xb8] sm:$0xff]
    %v383 = vld [vmem:[%s358 + $0xc0] sm:$0xff]
    %v384 = vld [vmem:[%s358 + $0xc8] sm:$0xff]
    %v385 = vld [vmem:[%s358 + $0xd0] sm:$0xff]
    %v386 = vld [vmem:[%s358 + $0xd8] sm:$0xff]
    %v387 = vld [vmem:[%s358 + $0xe0] sm:$0xff]
    %v388 = vld [vmem:[%s358 + $0xe8] sm:$0xff]
    %v389 = vld [vmem:[%s358 + $0xf0] sm:$0xff]
    %v390 = vld [vmem:[%s358 + $0xf8] sm:$0xff]
    %v391 = vld [vmem:[%s358 + $0x100] sm:$0xff]
    %v392 = vld [vmem:[%s358 + $0x108] sm:$0xff]
    %v393 = vld [vmem:[%s358 + $0x110] sm:$0xff]
    %v394 = vld [vmem:[%s358 + $0x118] sm:$0xff]
    %v395 = vld [vmem:[%s358 + $0x120] sm:$0xff]
    %v396 = vld [vmem:[%s358 + $0x128] sm:$0xff]
    %v397 = vld [vmem:[%s358 + $0x130] sm:$0xff]
    %v398 = vld [vmem:[%s358 + $0x138] sm:$0xff]
    %v399 = vld [vmem:[%s358 + $0x140] sm:$0xff]
    %v400 = vld [vmem:[%s358 + $0x148] sm:$0xff]
    %v401 = vld [vmem:[%s358 + $0x150] sm:$0xff]
    %v402 = vld [vmem:[%s358 + $0x158] sm:$0xff]
    %v403 = vld [vmem:[%s358 + $0x160] sm:$0xff]
    %v404 = vld [vmem:[%s358 + $0x168] sm:$0xff]
    %v405 = vld [vmem:[%s358 + $0x170] sm:$0xff]
    %v406 = vld [vmem:[%s358 + $0x178] sm:$0xff]
    %v407 = vld [vmem:[%s358 + $0x180] sm:$0xff]
    %v408 = vld [vmem:[%s358 + $0x188] sm:$0xff]
    %v409 = vld [vmem:[%s358 + $0x190] sm:$0xff]
    %v410 = vld [vmem:[%s358 + $0x198] sm:$0xff]
    %v411 = vld [vmem:[%s358 + $0x1a0] sm:$0xff]
    %v412 = vld [vmem:[%s358 + $0x1a8] sm:$0xff]
    %v413 = vld [vmem:[%s358 + $0x1b0] sm:$0xff]
    %v414 = vld [vmem:[%s358 + $0x1b8] sm:$0xff]
    %v415 = vld [vmem:[%s358 + $0x1c0] sm:$0xff]
    %v416 = vld [vmem:[%s358 + $0x1c8] sm:$0xff]
    %v417 = vld [vmem:[%s358 + $0x1d0] sm:$0xff]
    %v418 = vld [vmem:[%s358 + $0x1d8] sm:$0xff]
    %v419 = vld [vmem:[%s358 + $0x1e0] sm:$0xff]
    %v420 = vld [vmem:[%s358 + $0x1e8] sm:$0xff]
    %v421 = vld [vmem:[%s358 + $0x1f0] sm:$0xff]
    %v422 = vld [vmem:[%s358 + $0x1f8] sm:$0xff]
    %vm423 = vcmask 261120
    %v425 = vsel %vm423, %v228, 0
    %v428 = vsel %vm423, %v229, 0
    %v431 = vsel %vm423, %v230, 0
    %v434 = vsel %vm423, %v231, 0
    %v437 = vsel %vm423, %v232, 0
    %v440 = vsel %vm423, %v233, 0
    %v443 = vsel %vm423, %v234, 0
    %v446 = vsel %vm423, %v235, 0
    %v449 = vsel %vm423, %v236, 0
    %v452 = vsel %vm423, %v237, 0
    %v455 = vsel %vm423, %v238, 0
    %v458 = vsel %vm423, %v239, 0
    %v461 = vsel %vm423, %v240, 0
    %v464 = vsel %vm423, %v241, 0
    %v467 = vsel %vm423, %v242, 0
    %v470 = vsel %vm423, %v243, 0
    %v473 = vsel %vm423, %v294, 0
    %v476 = vsel %vm423, %v295, 0
    %v479 = vsel %vm423, %v296, 0
    %v482 = vsel %vm423, %v297, 0
    %v485 = vsel %vm423, %v298, 0
    %v488 = vsel %vm423, %v299, 0
    %v491 = vsel %vm423, %v300, 0
    %v494 = vsel %vm423, %v301, 0
    %v497 = vsel %vm423, %v302, 0
    %v500 = vsel %vm423, %v303, 0
    %v503 = vsel %vm423, %v304, 0
    %v506 = vsel %vm423, %v305, 0
    %v509 = vsel %vm423, %v306, 0
    %v512 = vsel %vm423, %v307, 0
    %v515 = vsel %vm423, %v308, 0
    %v518 = vsel %vm423, %v309, 0
    %520 = vmatprep.subr.mxu0 0.0
    %521 = vmatpush1.xpose.msra.mxu0 %v473
    %522 = vmatprep.subr.mxu0 0.0
    %523 = vmatpush1.xpose.msra.mxu0 %v476
    %524 = vmatprep.subr.mxu0 0.0
    %525 = vmatpush1.xpose.msra.mxu0 %v479
    %526 = vmatprep.subr.mxu0 0.0
    %527 = vmatpush1.xpose.msra.mxu0 %v482
    %528 = vmatprep.subr.mxu0 0.0
    %529 = vmatpush1.xpose.msra.mxu0 %v485
    %530 = vmatprep.subr.mxu0 0.0
    %531 = vmatpush1.xpose.msra.mxu0 %v488
    %532 = vmatprep.subr.mxu0 0.0
    %533 = vmatpush1.xpose.msra.mxu0 %v491
    %534 = vmatprep.subr.mxu0 0.0
    %535 = vmatpush1.xpose.msra.mxu0 %v494
    %536 = vmatprep.subr.mxu0 0.0
    %537 = vmatpush1.xpose.msra.mxu0 %v497
    %538 = vmatprep.subr.mxu0 0.0
    %539 = vmatpush1.xpose.msra.mxu0 %v500
    %540 = vmatprep.subr.mxu0 0.0
    %541 = vmatpush1.xpose.msra.mxu0 %v503
    %542 = vmatprep.subr.mxu0 0.0
    %543 = vmatpush1.xpose.msra.mxu0 %v506
    %544 = vmatprep.subr.mxu0 0.0
    %545 = vmatpush1.xpose.msra.mxu0 %v509
    %546 = vmatprep.subr.mxu0 0.0
    %547 = vmatpush1.xpose.msra.mxu0 %v512
    %548 = vmatprep.subr.mxu0 0.0
    %549 = vmatpush1.xpose.msra.mxu0 %v515
    %550 = vmatprep.subr.mxu0 0.0
    %551 = vmatpush1.xpose.msra.mxu0 %v518
    %552 = vmatprep.subr.mxu0 0.0
    %553 = vmatpush1.xpose.msra.mxu0 0.0
    %554 = vmatprep.subr.mxu0 0.0
    %555 = vmatpush1.xpose.msra.mxu0 0.0
    %556 = vmatprep.subr.mxu0 0.0
    %557 = vmatpush1.xpose.msra.mxu0 0.0
    %558 = vmatprep.subr.mxu0 0.0
    %559 = vmatpush1.xpose.msra.mxu0 0.0
    %560 = vmatprep.subr.mxu0 0.0
    %561 = vmatpush1.xpose.msra.mxu0 0.0
    %562 = vmatprep.subr.mxu0 0.0
    %563 = vmatpush1.xpose.msra.mxu0 0.0
    %564 = vmatprep.subr.mxu0 0.0
    %565 = vmatpush1.xpose.msra.mxu0 0.0
    %566 = vmatprep.subr.mxu0 0.0
    %567 = vmatpush1.xpose.msra.mxu0 0.0
    %568 = vmatprep.subr.mxu0 0.0
    %569 = vmatpush1.xpose.msra.mxu0 0.0
    %570 = vmatprep.subr.mxu0 0.0
    %571 = vmatpush1.xpose.msra.mxu0 0.0
    %572 = vmatprep.subr.mxu0 0.0
    %573 = vmatpush1.xpose.msra.mxu0 0.0
    %574 = vmatprep.subr.mxu0 0.0
    %575 = vmatpush1.xpose.msra.mxu0 0.0
    %576 = vmatprep.subr.mxu0 0.0
    %577 = vmatpush1.xpose.msra.mxu0 0.0
    %578 = vmatprep.subr.mxu0 0.0
    %579 = vmatpush1.xpose.msra.mxu0 0.0
    %580 = vmatprep.subr.mxu0 0.0
    %581 = vmatpush1.xpose.msra.mxu0 0.0
    %582 = vmatprep.subr.mxu0 0.0
    %583 = vmatpush1.xpose.msra.mxu0 0.0
    %584 = vmatprep.mubr.f32.mxu0 0.0
    %585 = vmatmul.mubr.f32.gmra.mrb[0].mxu0 %v425
    %v586 = vpop.f32.mrb[0].mxu0
    %v587 = vadd.f32 0.0, %v586
    %v588 = vpop.f32.mrb[0].mxu0
    %589 = vmatprep.mubr.f32.mxu0 0.0
    %590 = vmatmul.mubr.f32.gmra.mrb[0].mxu0 %v428
    %v591 = vpop.f32.mrb[0].mxu0
    %v592 = vadd.f32 0.0, %v591
    %v593 = vpop.f32.mrb[0].mxu0
    %594 = vmatprep.mubr.f32.mxu0 0.0
    %595 = vmatmul.mubr.f32.gmra.mrb[0].mxu0 %v431
    %v596 = vpop.f32.mrb[0].mxu0
    %v597 = vadd.f32 0.0, %v596
    %v598 = vpop.f32.mrb[0].mxu0
    %599 = vmatprep.mubr.f32.mxu0 0.0
    %600 = vmatmul.mubr.f32.gmra.mrb[0].mxu0 %v434
    %v601 = vpop.f32.mrb[0].mxu0
    %v602 = vadd.f32 0.0, %v601
    %v603 = vpop.f32.mrb[0].mxu0
    %604 = vmatprep.mubr.f32.mxu0 0.0
    %605 = vmatmul.mubr.f32.gmra.mrb[0].mxu0 %v437
    %v606 = vpop.f32.mrb[0].mxu0
    %v607 = vadd.f32 0.0, %v606
    %v608 = vpop.f32.mrb[0].mxu0
    %609 = vmatprep.mubr.f32.mxu0 0.0
    %610 = vmatmul.mubr.f32.gmra.mrb[0].mxu0 %v440
    %v611 = vpop.f32.mrb[0].mxu0
    %v612 = vadd.f32 0.0, %v611
    %v613 = vpop.f32.mrb[0].mxu0
    %614 = vmatprep.mubr.f32.mxu0 0.0
    %615 = vmatmul.mubr.f32.gmra.mrb[0].mxu0 %v443
    %v616 = vpop.f32.mrb[0].mxu0
    %v617 = vadd.f32 0.0, %v616
    %v618 = vpop.f32.mrb[0].mxu0
    %619 = vmatprep.mubr.f32.mxu0 0.0
    %620 = vmatmul.mubr.f32.gmra.mrb[0].mxu0 %v446
    %v621 = vpop.f32.mrb[0].mxu0
    %v622 = vadd.f32 0.0, %v621
    %v623 = vpop.f32.mrb[0].mxu0
    %624 = vmatprep.mubr.f32.mxu0 0.0
    %625 = vmatmul.mubr.f32.gmra.mrb[0].mxu0 %v449
    %v626 = vpop.f32.mrb[0].mxu0
    %v627 = vadd.f32 0.0, %v626
    %v628 = vpop.f32.mrb[0].mxu0
    %629 = vmatprep.mubr.f32.mxu0 0.0
    %630 = vmatmul.mubr.f32.gmra.mrb[0].mxu0 %v452
    %v631 = vpop.f32.mrb[0].mxu0
    %v632 = vadd.f32 0.0, %v631
    %v633 = vpop.f32.mrb[0].mxu0
    %634 = vmatprep.mubr.f32.mxu0 0.0
    %635 = vmatmul.mubr.f32.gmra.mrb[0].mxu0 %v455
    %v636 = vpop.f32.mrb[0].mxu0
    %v637 = vadd.f32 0.0, %v636
    %v638 = vpop.f32.mrb[0].mxu0
    %639 = vmatprep.mubr.f32.mxu0 0.0
    %640 = vmatmul.mubr.f32.gmra.mrb[0].mxu0 %v458
    %v641 = vpop.f32.mrb[0].mxu0
    %v642 = vadd.f32 0.0, %v641
    %v643 = vpop.f32.mrb[0].mxu0
    %644 = vmatprep.mubr.f32.mxu0 0.0
    %645 = vmatmul.mubr.f32.gmra.mrb[0].mxu0 %v461
    %v646 = vpop.f32.mrb[0].mxu0
    %v647 = vadd.f32 0.0, %v646
    %v648 = vpop.f32.mrb[0].mxu0
    %649 = vmatprep.mubr.f32.mxu0 0.0
    %650 = vmatmul.mubr.f32.gmra.mrb[0].mxu0 %v464
    %v651 = vpop.f32.mrb[0].mxu0
    %v652 = vadd.f32 0.0, %v651
    %v653 = vpop.f32.mrb[0].mxu0
    %654 = vmatprep.mubr.f32.mxu0 0.0
    %655 = vmatmul.mubr.f32.gmra.mrb[0].mxu0 %v467
    %v656 = vpop.f32.mrb[0].mxu0
    %v657 = vadd.f32 0.0, %v656
    %v658 = vpop.f32.mrb[0].mxu0
    %659 = vmatprep.mubr.f32.mxu0 0.0
    %660 = vmatmul.mubr.f32.gmra.mrb[0].mxu0 %v470
    %v661 = vpop.f32.mrb[0].mxu0
    %v662 = vadd.f32 0.0, %v661
    %v663 = vpop.f32.mrb[0].mxu0
    %664 = vdwg.mxu0
    %v666 = vsel %vm423, %v244, 0
    %v669 = vsel %vm423, %v245, 0
    %v672 = vsel %vm423, %v246, 0
    %v675 = vsel %vm423, %v247, 0
    %v678 = vsel %vm423, %v248, 0
    %v681 = vsel %vm423, %v249, 0
    %v684 = vsel %vm423, %v250, 0
    %v687 = vsel %vm423, %v251, 0
    %v690 = vsel %vm423, %v252, 0
    %v693 = vsel %vm423, %v253, 0
    %v696 = vsel %vm423, %v254, 0
    %v699 = vsel %vm423, %v255, 0
    %v702 = vsel %vm423, %v256, 0
    %v705 = vsel %vm423, %v257, 0
    %v708 = vsel %vm423, %v258, 0
    %v711 = vsel %vm423, %v259, 0
    %v714 = vsel %vm423, %v310, 0
    %v717 = vsel %vm423, %v311, 0
    %v720 = vsel %vm423, %v312, 0
    %v723 = vsel %vm423, %v313, 0
    %v726 = vsel %vm423, %v314, 0
    %v729 = vsel %vm423, %v315, 0
    %v732 = vsel %vm423, %v316, 0
    %v735 = vsel %vm423, %v317, 0
    %v738 = vsel %vm423, %v318, 0
    %v741 = vsel %vm423, %v319, 0
    %v744 = vsel %vm423, %v320, 0
    %v747 = vsel %vm423, %v321, 0
    %v750 = vsel %vm423, %v322, 0
    %v753 = vsel %vm423, %v323, 0
    %v756 = vsel %vm423, %v324, 0
    %v759 = vsel %vm423, %v325, 0
    %761 = vmatprep.subr.mxu0 0.0
    %762 = vmatpush1.xpose.msra.mxu0 %v714
    %763 = vmatprep.subr.mxu0 0.0
    %764 = vmatpush1.xpose.msra.mxu0 %v717
    %765 = vmatprep.subr.mxu0 0.0
    %766 = vmatpush1.xpose.msra.mxu0 %v720
    %767 = vmatprep.subr.mxu0 0.0
    %768 = vmatpush1.xpose.msra.mxu0 %v723
    %769 = vmatprep.subr.mxu0 0.0
    %770 = vmatpush1.xpose.msra.mxu0 %v726
    %771 = vmatprep.subr.mxu0 0.0
    %772 = vmatpush1.xpose.msra.mxu0 %v729
    %773 = vmatprep.subr.mxu0 0.0
    %774 = vmatpush1.xpose.msra.mxu0 %v732
    %775 = vmatprep.subr.mxu0 0.0
    %776 = vmatpush1.xpose.msra.mxu0 %v735
    %777 = vmatprep.subr.mxu0 0.0
    %778 = vmatpush1.xpose.msra.mxu0 %v738
    %779 = vmatprep.subr.mxu0 0.0
    %780 = vmatpush1.xpose.msra.mxu0 %v741
    %781 = vmatprep.subr.mxu0 0.0
    %782 = vmatpush1.xpose.msra.mxu0 %v744
    %783 = vmatprep.subr.mxu0 0.0
    %784 = vmatpush1.xpose.msra.mxu0 %v747
    %785 = vmatprep.subr.mxu0 0.0
    %786 = vmatpush1.xpose.msra.mxu0 %v750
    %787 = vmatprep.subr.mxu0 0.0
    %788 = vmatpush1.xpose.msra.mxu0 %v753
    %789 = vmatprep.subr.mxu0 0.0
    %790 = vmatpush1.xpose.msra.mxu0 %v756
    %791 = vmatprep.subr.mxu0 0.0
    %792 = vmatpush1.xpose.msra.mxu0 %v759
    %793 = vmatprep.subr.mxu0 0.0
    %794 = vmatpush1.xpose.msra.mxu0 0.0
    %795 = vmatprep.subr.mxu0 0.0
    %796 = vmatpush1.xpose.msra.mxu0 0.0
    %797 = vmatprep.subr.mxu0 0.0
    %798 = vmatpush1.xpose.msra.mxu0 0.0
    %799 = vmatprep.subr.mxu0 0.0
    %800 = vmatpush1.xpose.msra.mxu0 0.0
    %801 = vmatprep.subr.mxu0 0.0
    %802 = vmatpush1.xpose.msra.mxu0 0.0
    %803 = vmatprep.subr.mxu0 0.0
    %804 = vmatpush1.xpose.msra.mxu0 0.0
    %805 = vmatprep.subr.mxu0 0.0
    %806 = vmatpush1.xpose.msra.mxu0 0.0
    %807 = vmatprep.subr.mxu0 0.0
    %808 = vmatpush1.xpose.msra.mxu0 0.0
    %809 = vmatprep.subr.mxu0 0.0
    %810 = vmatpush1.xpose.msra.mxu0 0.0
    %811 = vmatprep.subr.mxu0 0.0
    %812 = vmatpush1.xpose.msra.mxu0 0.0
    %813 = vmatprep.subr.mxu0 0.0
    %814 = vmatpush1.xpose.msra.mxu0 0.0
    %815 = vmatprep.subr.mxu0 0.0
    %816 = vmatpush1.xpose.msra.mxu0 0.0
    %817 = vmatprep.subr.mxu0 0.0
    %818 = vmatpush1.xpose.msra.mxu0 0.0
    %819 = vmatprep.subr.mxu0 0.0
    %820 = vmatpush1.xpose.msra.mxu0 0.0
    %821 = vmatprep.subr.mxu0 0.0
    %822 = vmatpush1.xpose.msra.mxu0 0.0
    %823 = vmatprep.subr.mxu0 0.0
    %824 = vmatpush1.xpose.msra.mxu0 0.0
    %825 = vmatprep.mubr.f32.mxu0 0.0
    %826 = vmatmul.mubr.f32.gmra.mrb[0].mxu0 %v666
    %v827 = vpop.f32.mrb[0].mxu0
    %v828 = vadd.f32 0.0, %v827
    %v829 = vpop.f32.mrb[0].mxu0
    %830 = vmatprep.mubr.f32.mxu0 0.0
    %831 = vmatmul.mubr.f32.gmra.mrb[0].mxu0 %v669
    %v832 = vpop.f32.mrb[0].mxu0
    %v833 = vadd.f32 0.0, %v832
    %v834 = vpop.f32.mrb[0].mxu0
    %835 = vmatprep.mubr.f32.mxu0 0.0
    %836 = vmatmul.mubr.f32.gmra.mrb[0].mxu0 %v672
    %v837 = vpop.f32.mrb[0].mxu0
    %v838 = vadd.f32 0.0, %v837
    %v839 = vpop.f32.mrb[0].mxu0
    %840 = vmatprep.mubr.f32.mxu0 0.0
    %841 = vmatmul.mubr.f32.gmra.mrb[0].mxu0 %v675
    %v842 = vpop.f32.mrb[0].mxu0
    %v843 = vadd.f32 0.0, %v842
    %v844 = vpop.f32.mrb[0].mxu0
    %845 = vmatprep.mubr.f32.mxu0 0.0
    %846 = vmatmul.mubr.f32.gmra.mrb[0].mxu0 %v678
    %v847 = vpop.f32.mrb[0].mxu0
    %v848 = vadd.f32 0.0, %v847
    %v849 = vpop.f32.mrb[0].mxu0
    %850 = vmatprep.mubr.f32.mxu0 0.0
    %851 = vmatmul.mubr.f32.gmra.mrb[0].mxu0 %v681
    %v852 = vpop.f32.mrb[0].mxu0
    %v853 = vadd.f32 0.0, %v852
    %v854 = vpop.f32.mrb[0].mxu0
    %855 = vmatprep.mubr.f32.mxu0 0.0
    %856 = vmatmul.mubr.f32.gmra.mrb[0].mxu0 %v684
    %v857 = vpop.f32.mrb[0].mxu0
    %v858 = vadd.f32 0.0, %v857
    %v859 = vpop.f32.mrb[0].mxu0
    %860 = vmatprep.mubr.f32.mxu0 0.0
    %861 = vmatmul.mubr.f32.gmra.mrb[0].mxu0 %v687
    %v862 = vpop.f32.mrb[0].mxu0
    %v863 = vadd.f32 0.0, %v862
    %v864 = vpop.f32.mrb[0].mxu0
    %865 = vmatprep.mubr.f32.mxu0 0.0
    %866 = vmatmul.mubr.f32.gmra.mrb[0].mxu0 %v690
    %v867 = vpop.f32.mrb[0].mxu0
    %v868 = vadd.f32 0.0, %v867
    %v869 = vpop.f32.mrb[0].mxu0
    %870 = vmatprep.mubr.f32.mxu0 0.0
    %871 = vmatmul.mubr.f32.gmra.mrb[0].mxu0 %v693
    %v872 = vpop.f32.mrb[0].mxu0
    %v873 = vadd.f32 0.0, %v872
    %v874 = vpop.f32.mrb[0].mxu0
    %875 = vmatprep.mubr.f32.mxu0 0.0
    %876 = vmatmul.mubr.f32.gmra.mrb[0].mxu0 %v696
    %v877 = vpop.f32.mrb[0].mxu0
    %v878 = vadd.f32 0.0, %v877
    %v879 = vpop.f32.mrb[0].mxu0
    %880 = vmatprep.mubr.f32.mxu0 0.0
    %881 = vmatmul.mubr.f32.gmra.mrb[0].mxu0 %v699
    %v882 = vpop.f32.mrb[0].mxu0
    %v883 = vadd.f32 0.0, %v882
    %v884 = vpop.f32.mrb[0].mxu0
    %885 = vmatprep.mubr.f32.mxu0 0.0
    %886 = vmatmul.mubr.f32.gmra.mrb[0].mxu0 %v702
    %v887 = vpop.f32.mrb[0].mxu0
    %v888 = vadd.f32 0.0, %v887
    %v889 = vpop.f32.mrb[0].mxu0
    %890 = vmatprep.mubr.f32.mxu0 0.0
    %891 = vmatmul.mubr.f32.gmra.mrb[0].mxu0 %v705
    %v892 = vpop.f32.mrb[0].mxu0
    %v893 = vadd.f32 0.0, %v892
    %v894 = vpop.f32.mrb[0].mxu0
    %895 = vmatprep.mubr.f32.mxu0 0.0
    %896 = vmatmul.mubr.f32.gmra.mrb[0].mxu0 %v708
    %v897 = vpop.f32.mrb[0].mxu0
    %v898 = vadd.f32 0.0, %v897
    %v899 = vpop.f32.mrb[0].mxu0
    %900 = vmatprep.mubr.f32.mxu0 0.0
    %901 = vmatmul.mubr.f32.gmra.mrb[0].mxu0 %v711
    %v902 = vpop.f32.mrb[0].mxu0
    %v903 = vadd.f32 0.0, %v902
    %v904 = vpop.f32.mrb[0].mxu0
    %905 = vdwg.mxu0
    %v907 = vsel %vm423, %v260, 0
    %v910 = vsel %vm423, %v261, 0
    %v913 = vsel %vm423, %v262, 0
    %v916 = vsel %vm423, %v263, 0
    %v919 = vsel %vm423, %v264, 0
    %v922 = vsel %vm423, %v265, 0
    %v925 = vsel %vm423, %v266, 0
    %v928 = vsel %vm423, %v267, 0
    %v931 = vsel %vm423, %v268, 0
    %v934 = vsel %vm423, %v269, 0
    %v937 = vsel %vm423, %v270, 0
    %v940 = vsel %vm423, %v271, 0
    %v943 = vsel %vm423, %v272, 0
    %v946 = vsel %vm423, %v273, 0
    %v949 = vsel %vm423, %v274, 0
    %v952 = vsel %vm423, %v275, 0
    %v955 = vsel %vm423, %v326, 0
    %v958 = vsel %vm423, %v327, 0
    %v961 = vsel %vm423, %v328, 0
    %v964 = vsel %vm423, %v329, 0
    %v967 = vsel %vm423, %v330, 0
    %v970 = vsel %vm423, %v331, 0
    %v973 = vsel %vm423, %v332, 0
    %v976 = vsel %vm423, %v333, 0
    %v979 = vsel %vm423, %v334, 0
    %v982 = vsel %vm423, %v335, 0
    %v985 = vsel %vm423, %v336, 0
    %v988 = vsel %vm423, %v337, 0
    %v991 = vsel %vm423, %v338, 0
    %v994 = vsel %vm423, %v339, 0
    %v997 = vsel %vm423, %v340, 0
    %v1000 = vsel %vm423, %v341, 0
    %1002 = vmatprep.subr.mxu0 0.0
    %1003 = vmatpush1.xpose.msra.mxu0 %v955
    %1004 = vmatprep.subr.mxu0 0.0
    %1005 = vmatpush1.xpose.msra.mxu0 %v958
    %1006 = vmatprep.subr.mxu0 0.0
    %1007 = vmatpush1.xpose.msra.mxu0 %v961
    %1008 = vmatprep.subr.mxu0 0.0
    %1009 = vmatpush1.xpose.msra.mxu0 %v964
    %1010 = vmatprep.subr.mxu0 0.0
    %1011 = vmatpush1.xpose.msra.mxu0 %v967
    %1012 = vmatprep.subr.mxu0 0.0
    %1013 = vmatpush1.xpose.msra.mxu0 %v970
    %1014 = vmatprep.subr.mxu0 0.0
    %1015 = vmatpush1.xpose.msra.mxu0 %v973
    %1016 = vmatprep.subr.mxu0 0.0
    %1017 = vmatpush1.xpose.msra.mxu0 %v976
    %1018 = vmatprep.subr.mxu0 0.0
    %1019 = vmatpush1.xpose.msra.mxu0 %v979
    %1020 = vmatprep.subr.mxu0 0.0
    %1021 = vmatpush1.xpose.msra.mxu0 %v982
    %1022 = vmatprep.subr.mxu0 0.0
    %1023 = vmatpush1.xpose.msra.mxu0 %v985
    %1024 = vmatprep.subr.mxu0 0.0
    %1025 = vmatpush1.xpose.msra.mxu0 %v988
    %1026 = vmatprep.subr.mxu0 0.0
    %1027 = vmatpush1.xpose.msra.mxu0 %v991
    %1028 = vmatprep.subr.mxu0 0.0
    %1029 = vmatpush1.xpose.msra.mxu0 %v994
    %1030 = vmatprep.subr.mxu0 0.0
    %1031 = vmatpush1.xpose.msra.mxu0 %v997
    %1032 = vmatprep.subr.mxu0 0.0
    %1033 = vmatpush1.xpose.msra.mxu0 %v1000
    %1034 = vmatprep.subr.mxu0 0.0
    %1035 = vmatpush1.xpose.msra.mxu0 0.0
    %1036 = vmatprep.subr.mxu0 0.0
    %1037 = vmatpush1.xpose.msra.mxu0 0.0
    %1038 = vmatprep.subr.mxu0 0.0
    %1039 = vmatpush1.xpose.msra.mxu0 0.0
    %1040 = vmatprep.subr.mxu0 0.0
    %1041 = vmatpush1.xpose.msra.mxu0 0.0
    %1042 = vmatprep.subr.mxu0 0.0
    %1043 = vmatpush1.xpose.msra.mxu0 0.0
    %1044 = vmatprep.subr.mxu0 0.0
    %1045 = vmatpush1.xpose.msra.mxu0 0.0
    %1046 = vmatprep.subr.mxu0 0.0
    %1047 = vmatpush1.xpose.msra.mxu0 0.0
    %1048 = vmatprep.subr.mxu0 0.0
    %1049 = vmatpush1.xpose.msra.mxu0 0.0
    %1050 = vmatprep.subr.mxu0 0.0
    %1051 = vmatpush1.xpose.msra.mxu0 0.0
    %1052 = vmatprep.subr.mxu0 0.0
    %1053 = vmatpush1.xpose.msra.mxu0 0.0
    %1054 = vmatprep.subr.mxu0 0.0
    %1055 = vmatpush1.xpose.msra.mxu0 0.0
    %1056 = vmatprep.subr.mxu0 0.0
    %1057 = vmatpush1.xpose.msra.mxu0 0.0
    %1058 = vmatprep.subr.mxu0 0.0
    %1059 = vmatpush1.xpose.msra.mxu0 0.0
    %1060 = vmatprep.subr.mxu0 0.0
    %1061 = vmatpush1.xpose.msra.mxu0 0.0
    %1062 = vmatprep.subr.mxu0 0.0
    %1063 = vmatpush1.xpose.msra.mxu0 0.0
    %1064 = vmatprep.subr.mxu0 0.0
    %1065 = vmatpush1.xpose.msra.mxu0 0.0
    %1066 = vmatprep.mubr.f32.mxu0 0.0
    %1067 = vmatmul.mubr.f32.gmra.mrb[0].mxu0 %v907
    %v1068 = vpop.f32.mrb[0].mxu0
    %v1069 = vadd.f32 0.0, %v1068
    %v1070 = vpop.f32.mrb[0].mxu0
    %1071 = vmatprep.mubr.f32.mxu0 0.0
    %1072 = vmatmul.mubr.f32.gmra.mrb[0].mxu0 %v910
    %v1073 = vpop.f32.mrb[0].mxu0
    %v1074 = vadd.f32 0.0, %v1073
    %v1075 = vpop.f32.mrb[0].mxu0
    %1076 = vmatprep.mubr.f32.mxu0 0.0
    %1077 = vmatmul.mubr.f32.gmra.mrb[0].mxu0 %v913
    %v1078 = vpop.f32.mrb[0].mxu0
    %v1079 = vadd.f32 0.0, %v1078
    %v1080 = vpop.f32.mrb[0].mxu0
    %1081 = vmatprep.mubr.f32.mxu0 0.0
    %1082 = vmatmul.mubr.f32.gmra.mrb[0].mxu0 %v916
    %v1083 = vpop.f32.mrb[0].mxu0
    %v1084 = vadd.f32 0.0, %v1083
    %v1085 = vpop.f32.mrb[0].mxu0
    %1086 = vmatprep.mubr.f32.mxu0 0.0
    %1087 = vmatmul.mubr.f32.gmra.mrb[0].mxu0 %v919
    %v1088 = vpop.f32.mrb[0].mxu0
    %v1089 = vadd.f32 0.0, %v1088
    %v1090 = vpop.f32.mrb[0].mxu0
    %1091 = vmatprep.mubr.f32.mxu0 0.0
    %1092 = vmatmul.mubr.f32.gmra.mrb[0].mxu0 %v922
    %v1093 = vpop.f32.mrb[0].mxu0
    %v1094 = vadd.f32 0.0, %v1093
    %v1095 = vpop.f32.mrb[0].mxu0
    %1096 = vmatprep.mubr.f32.mxu0 0.0
    %1097 = vmatmul.mubr.f32.gmra.mrb[0].mxu0 %v925
    %v1098 = vpop.f32.mrb[0].mxu0
    %v1099 = vadd.f32 0.0, %v1098
    %v1100 = vpop.f32.mrb[0].mxu0
    %1101 = vmatprep.mubr.f32.mxu0 0.0
    %1102 = vmatmul.mubr.f32.gmra.mrb[0].mxu0 %v928
    %v1103 = vpop.f32.mrb[0].mxu0
    %v1104 = vadd.f32 0.0, %v1103
    %v1105 = vpop.f32.mrb[0].mxu0
    %1106 = vmatprep.mubr.f32.mxu0 0.0
    %1107 = vmatmul.mubr.f32.gmra.mrb[0].mxu0 %v931
    %v1108 = vpop.f32.mrb[0].mxu0
    %v1109 = vadd.f32 0.0, %v1108
    %v1110 = vpop.f32.mrb[0].mxu0
    %1111 = vmatprep.mubr.f32.mxu0 0.0
    %1112 = vmatmul.mubr.f32.gmra.mrb[0].mxu0 %v934
    %v1113 = vpop.f32.mrb[0].mxu0
    %v1114 = vadd.f32 0.0, %v1113
    %v1115 = vpop.f32.mrb[0].mxu0
    %1116 = vmatprep.mubr.f32.mxu0 0.0
    %1117 = vmatmul.mubr.f32.gmra.mrb[0].mxu0 %v937
    %v1118 = vpop.f32.mrb[0].mxu0
    %v1119 = vadd.f32 0.0, %v1118
    %v1120 = vpop.f32.mrb[0].mxu0
    %1121 = vmatprep.mubr.f32.mxu0 0.0
    %1122 = vmatmul.mubr.f32.gmra.mrb[0].mxu0 %v940
    %v1123 = vpop.f32.mrb[0].mxu0
    %v1124 = vadd.f32 0.0, %v1123
    %v1125 = vpop.f32.mrb[0].mxu0
    %1126 = vmatprep.mubr.f32.mxu0 0.0
    %1127 = vmatmul.mubr.f32.gmra.mrb[0].mxu0 %v943
    %v1128 = vpop.f32.mrb[0].mxu0
    %v1129 = vadd.f32 0.0, %v1128
    %v1130 = vpop.f32.mrb[0].mxu0
    %1131 = vmatprep.mubr.f32.mxu0 0.0
    %1132 = vmatmul.mubr.f32.gmra.mrb[0].mxu0 %v946
    %v1133 = vpop.f32.mrb[0].mxu0
    %v1134 = vadd.f32 0.0, %v1133
    %v1135 = vpop.f32.mrb[0].mxu0
    %1136 = vmatprep.mubr.f32.mxu0 0.0
    %1137 = vmatmul.mubr.f32.gmra.mrb[0].mxu0 %v949
    %v1138 = vpop.f32.mrb[0].mxu0
    %v1139 = vadd.f32 0.0, %v1138
    %v1140 = vpop.f32.mrb[0].mxu0
    %1141 = vmatprep.mubr.f32.mxu0 0.0
    %1142 = vmatmul.mubr.f32.gmra.mrb[0].mxu0 %v952
    %v1143 = vpop.f32.mrb[0].mxu0
    %v1144 = vadd.f32 0.0, %v1143
    %v1145 = vpop.f32.mrb[0].mxu0
    %1146 = vdwg.mxu0
    %v1148 = vsel %vm423, %v276, 0
    %v1151 = vsel %vm423, %v277, 0
    %v1154 = vsel %vm423, %v278, 0
    %v1157 = vsel %vm423, %v279, 0
    %v1160 = vsel %vm423, %v280, 0
    %v1163 = vsel %vm423, %v281, 0
    %v1166 = vsel %vm423, %v282, 0
    %v1169 = vsel %vm423, %v283, 0
    %v1172 = vsel %vm423, %v284, 0
    %v1175 = vsel %vm423, %v285, 0
    %v1178 = vsel %vm423, %v286, 0
    %v1181 = vsel %vm423, %v287, 0
    %v1184 = vsel %vm423, %v288, 0
    %v1187 = vsel %vm423, %v289, 0
    %v1190 = vsel %vm423, %v290, 0
    %v1193 = vsel %vm423, %v291, 0
    %v1196 = vsel %vm423, %v342, 0
    %v1199 = vsel %vm423, %v343, 0
    %v1202 = vsel %vm423, %v344, 0
    %v1205 = vsel %vm423, %v345, 0
    %v1208 = vsel %vm423, %v346, 0
    %v1211 = vsel %vm423, %v347, 0
    %v1214 = vsel %vm423, %v348, 0
    %v1217 = vsel %vm423, %v349, 0
    %v1220 = vsel %vm423, %v350, 0
    %v1223 = vsel %vm423, %v351, 0
    %v1226 = vsel %vm423, %v352, 0
    %v1229 = vsel %vm423, %v353, 0
    %v1232 = vsel %vm423, %v354, 0
    %v1235 = vsel %vm423, %v355, 0
    %v1238 = vsel %vm423, %v356, 0
    %v1241 = vsel %vm423, %v357, 0
    %1243 = vmatprep.subr.mxu0 0.0
    %1244 = vmatpush1.xpose.msra.mxu0 %v1196
    %1245 = vmatprep.subr.mxu0 0.0
    %1246 = vmatpush1.xpose.msra.mxu0 %v1199
    %1247 = vmatprep.subr.mxu0 0.0
    %1248 = vmatpush1.xpose.msra.mxu0 %v1202
    %1249 = vmatprep.subr.mxu0 0.0
    %1250 = vmatpush1.xpose.msra.mxu0 %v1205
    %1251 = vmatprep.subr.mxu0 0.0
    %1252 = vmatpush1.xpose.msra.mxu0 %v1208
    %1253 = vmatprep.subr.mxu0 0.0
    %1254 = vmatpush1.xpose.msra.mxu0 %v1211
    %1255 = vmatprep.subr.mxu0 0.0
    %1256 = vmatpush1.xpose.msra.mxu0 %v1214
    %1257 = vmatprep.subr.mxu0 0.0
    %1258 = vmatpush1.xpose.msra.mxu0 %v1217
    %1259 = vmatprep.subr.mxu0 0.0
    %1260 = vmatpush1.xpose.msra.mxu0 %v1220
    %1261 = vmatprep.subr.mxu0 0.0
    %1262 = vmatpush1.xpose.msra.mxu0 %v1223
    %1263 = vmatprep.subr.mxu0 0.0
    %1264 = vmatpush1.xpose.msra.mxu0 %v1226
    %1265 = vmatprep.subr.mxu0 0.0
    %1266 = vmatpush1.xpose.msra.mxu0 %v1229
    %1267 = vmatprep.subr.mxu0 0.0
    %1268 = vmatpush1.xpose.msra.mxu0 %v1232
    %1269 = vmatprep.subr.mxu0 0.0
    %1270 = vmatpush1.xpose.msra.mxu0 %v1235
    %1271 = vmatprep.subr.mxu0 0.0
    %1272 = vmatpush1.xpose.msra.mxu0 %v1238
    %1273 = vmatprep.subr.mxu0 0.0
    %1274 = vmatpush1.xpose.msra.mxu0 %v1241
    %1275 = vmatprep.subr.mxu0 0.0
    %1276 = vmatpush1.xpose.msra.mxu0 0.0
    %1277 = vmatprep.subr.mxu0 0.0
    %1278 = vmatpush1.xpose.msra.mxu0 0.0
    %1279 = vmatprep.subr.mxu0 0.0
    %1280 = vmatpush1.xpose.msra.mxu0 0.0
    %1281 = vmatprep.subr.mxu0 0.0
    %1282 = vmatpush1.xpose.msra.mxu0 0.0
    %1283 = vmatprep.subr.mxu0 0.0
    %1284 = vmatpush1.xpose.msra.mxu0 0.0
    %1285 = vmatprep.subr.mxu0 0.0
    %1286 = vmatpush1.xpose.msra.mxu0 0.0
    %1287 = vmatprep.subr.mxu0 0.0
    %1288 = vmatpush1.xpose.msra.mxu0 0.0
    %1289 = vmatprep.subr.mxu0 0.0
    %1290 = vmatpush1.xpose.msra.mxu0 0.0
    %1291 = vmatprep.subr.mxu0 0.0
    %1292 = vmatpush1.xpose.msra.mxu0 0.0
    %1293 = vmatprep.subr.mxu0 0.0
    %1294 = vmatpush1.xpose.msra.mxu0 0.0
    %1295 = vmatprep.subr.mxu0 0.0
    %1296 = vmatpush1.xpose.msra.mxu0 0.0
    %1297 = vmatprep.subr.mxu0 0.0
    %1298 = vmatpush1.xpose.msra.mxu0 0.0
    %1299 = vmatprep.subr.mxu0 0.0
    %1300 = vmatpush1.xpose.msra.mxu0 0.0
    %1301 = vmatprep.subr.mxu0 0.0
    %1302 = vmatpush1.xpose.msra.mxu0 0.0
    %1303 = vmatprep.subr.mxu0 0.0
    %1304 = vmatpush1.xpose.msra.mxu0 0.0
    %1305 = vmatprep.subr.mxu0 0.0
    %1306 = vmatpush1.xpose.msra.mxu0 0.0
    %1307 = vmatprep.mubr.f32.mxu0 0.0
    %1308 = vmatmul.mubr.f32.gmra.mrb[0].mxu0 %v1148
    %v1309 = vpop.f32.mrb[0].mxu0
    %v1310 = vadd.f32 0.0, %v1309
    %v1311 = vpop.f32.mrb[0].mxu0
    %1312 = vmatprep.mubr.f32.mxu0 0.0
    %1313 = vmatmul.mubr.f32.gmra.mrb[0].mxu0 %v1151
    %v1314 = vpop.f32.mrb[0].mxu0
    %v1315 = vadd.f32 0.0, %v1314
    %v1316 = vpop.f32.mrb[0].mxu0
    %1317 = vmatprep.mubr.f32.mxu0 0.0
    %1318 = vmatmul.mubr.f32.gmra.mrb[0].mxu0 %v1154
    %v1319 = vpop.f32.mrb[0].mxu0
    %v1320 = vadd.f32 0.0, %v1319
    %v1321 = vpop.f32.mrb[0].mxu0
    %1322 = vmatprep.mubr.f32.mxu0 0.0
    %1323 = vmatmul.mubr.f32.gmra.mrb[0].mxu0 %v1157
    %v1324 = vpop.f32.mrb[0].mxu0
    %v1325 = vadd.f32 0.0, %v1324
    %v1326 = vpop.f32.mrb[0].mxu0
    %1327 = vmatprep.mubr.f32.mxu0 0.0
    %1328 = vmatmul.mubr.f32.gmra.mrb[0].mxu0 %v1160
    %v1329 = vpop.f32.mrb[0].mxu0
    %v1330 = vadd.f32 0.0, %v1329
    %v1331 = vpop.f32.mrb[0].mxu0
    %1332 = vmatprep.mubr.f32.mxu0 0.0
    %1333 = vmatmul.mubr.f32.gmra.mrb[0].mxu0 %v1163
    %v1334 = vpop.f32.mrb[0].mxu0
    %v1335 = vadd.f32 0.0, %v1334
    %v1336 = vpop.f32.mrb[0].mxu0
    %1337 = vmatprep.mubr.f32.mxu0 0.0
    %1338 = vmatmul.mubr.f32.gmra.mrb[0].mxu0 %v1166
    %v1339 = vpop.f32.mrb[0].mxu0
    %v1340 = vadd.f32 0.0, %v1339
    %v1341 = vpop.f32.mrb[0].mxu0
    %1342 = vmatprep.mubr.f32.mxu0 0.0
    %1343 = vmatmul.mubr.f32.gmra.mrb[0].mxu0 %v1169
    %v1344 = vpop.f32.mrb[0].mxu0
    %v1345 = vadd.f32 0.0, %v1344
    %v1346 = vpop.f32.mrb[0].mxu0
    %1347 = vmatprep.mubr.f32.mxu0 0.0
    %1348 = vmatmul.mubr.f32.gmra.mrb[0].mxu0 %v1172
    %v1349 = vpop.f32.mrb[0].mxu0
    %v1350 = vadd.f32 0.0, %v1349
    %v1351 = vpop.f32.mrb[0].mxu0
    %1352 = vmatprep.mubr.f32.mxu0 0.0
    %1353 = vmatmul.mubr.f32.gmra.mrb[0].mxu0 %v1175
    %v1354 = vpop.f32.mrb[0].mxu0
    %v1355 = vadd.f32 0.0, %v1354
    %v1356 = vpop.f32.mrb[0].mxu0
    %1357 = vmatprep.mubr.f32.mxu0 0.0
    %1358 = vmatmul.mubr.f32.gmra.mrb[0].mxu0 %v1178
    %v1359 = vpop.f32.mrb[0].mxu0
    %v1360 = vadd.f32 0.0, %v1359
    %v1361 = vpop.f32.mrb[0].mxu0
    %1362 = vmatprep.mubr.f32.mxu0 0.0
    %1363 = vmatmul.mubr.f32.gmra.mrb[0].mxu0 %v1181
    %v1364 = vpop.f32.mrb[0].mxu0
    %v1365 = vadd.f32 0.0, %v1364
    %v1366 = vpop.f32.mrb[0].mxu0
    %1367 = vmatprep.mubr.f32.mxu0 0.0
    %1368 = vmatmul.mubr.f32.gmra.mrb[0].mxu0 %v1184
    %v1369 = vpop.f32.mrb[0].mxu0
    %v1370 = vadd.f32 0.0, %v1369
    %v1371 = vpop.f32.mrb[0].mxu0
    %1372 = vmatprep.mubr.f32.mxu0 0.0
    %1373 = vmatmul.mubr.f32.gmra.mrb[0].mxu0 %v1187
    %v1374 = vpop.f32.mrb[0].mxu0
    %v1375 = vadd.f32 0.0, %v1374
    %v1376 = vpop.f32.mrb[0].mxu0
    %1377 = vmatprep.mubr.f32.mxu0 0.0
    %1378 = vmatmul.mubr.f32.gmra.mrb[0].mxu0 %v1190
    %v1379 = vpop.f32.mrb[0].mxu0
    %v1380 = vadd.f32 0.0, %v1379
    %v1381 = vpop.f32.mrb[0].mxu0
    %1382 = vmatprep.mubr.f32.mxu0 0.0
    %1383 = vmatmul.mubr.f32.gmra.mrb[0].mxu0 %v1193
    %v1384 = vpop.f32.mrb[0].mxu0
    %v1385 = vadd.f32 0.0, %v1384
    %v1386 = vpop.f32.mrb[0].mxu0
    %1387 = vdwg.mxu0
    %v1388 = vlaneseq
    %v1389 = vand.u32 %v1388, 127
    %v1390 = vstv %s292
    %v1391 = vadd.s32 %v1390, %v1389
    %vm1392 = vcmp.lt.s32.totalorder %v1391, 8
    %v1393 = vsel %vm1392, %v587, -1e+30
    %v1394 = vsel %vm1392, %v592, -1e+30
    %v1395 = vsel %vm1392, %v597, -1e+30
    %v1396 = vsel %vm1392, %v602, -1e+30
    %v1397 = vsel %vm1392, %v607, -1e+30
    %v1398 = vsel %vm1392, %v612, -1e+30
    %v1399 = vsel %vm1392, %v617, -1e+30
    %v1400 = vsel %vm1392, %v622, -1e+30
    %v1401 = vsel %vm1392, %v627, -1e+30
    %v1402 = vsel %vm1392, %v632, -1e+30
    %v1403 = vsel %vm1392, %v637, -1e+30
    %v1404 = vsel %vm1392, %v642, -1e+30
    %v1405 = vsel %vm1392, %v647, -1e+30
    %v1406 = vsel %vm1392, %v652, -1e+30
    %v1407 = vsel %vm1392, %v657, -1e+30
    %v1408 = vsel %vm1392, %v662, -1e+30
    %v1409 = vsel %vm1392, %v828, -1e+30
    %v1410 = vsel %vm1392, %v833, -1e+30
    %v1411 = vsel %vm1392, %v838, -1e+30
    %v1412 = vsel %vm1392, %v843, -1e+30
    %v1413 = vsel %vm1392, %v848, -1e+30
    %v1414 = vsel %vm1392, %v853, -1e+30
    %v1415 = vsel %vm1392, %v858, -1e+30
    %v1416 = vsel %vm1392, %v863, -1e+30
    %v1417 = vsel %vm1392, %v868, -1e+30
    %v1418 = vsel %vm1392, %v873, -1e+30
    %v1419 = vsel %vm1392, %v878, -1e+30
    %v1420 = vsel %vm1392, %v883, -1e+30
    %v1421 = vsel %vm1392, %v888, -1e+30
    %v1422 = vsel %vm1392, %v893, -1e+30
    %v1423 = vsel %vm1392, %v898, -1e+30
    %v1424 = vsel %vm1392, %v903, -1e+30
    %v1425 = vsel %vm1392, %v1069, -1e+30
    %v1426 = vsel %vm1392, %v1074, -1e+30
    %v1427 = vsel %vm1392, %v1079, -1e+30
    %v1428 = vsel %vm1392, %v1084, -1e+30
    %v1429 = vsel %vm1392, %v1089, -1e+30
    %v1430 = vsel %vm1392, %v1094, -1e+30
    %v1431 = vsel %vm1392, %v1099, -1e+30
    %v1432 = vsel %vm1392, %v1104, -1e+30
    %v1433 = vsel %vm1392, %v1109, -1e+30
    %v1434 = vsel %vm1392, %v1114, -1e+30
    %v1435 = vsel %vm1392, %v1119, -1e+30
    %v1436 = vsel %vm1392, %v1124, -1e+30
    %v1437 = vsel %vm1392, %v1129, -1e+30
    %v1438 = vsel %vm1392, %v1134, -1e+30
    %v1439 = vsel %vm1392, %v1139, -1e+30
    %v1440 = vsel %vm1392, %v1144, -1e+30
    %v1441 = vsel %vm1392, %v1310, -1e+30
    %v1442 = vsel %vm1392, %v1315, -1e+30
    %v1443 = vsel %vm1392, %v1320, -1e+30
    %v1444 = vsel %vm1392, %v1325, -1e+30
    %v1445 = vsel %vm1392, %v1330, -1e+30
    %v1446 = vsel %vm1392, %v1335, -1e+30
    %v1447 = vsel %vm1392, %v1340, -1e+30
    %v1448 = vsel %vm1392, %v1345, -1e+30
    %v1449 = vsel %vm1392, %v1350, -1e+30
    %v1450 = vsel %vm1392, %v1355, -1e+30
    %v1451 = vsel %vm1392, %v1360, -1e+30
    %v1452 = vsel %vm1392, %v1365, -1e+30
    %v1453 = vsel %vm1392, %v1370, -1e+30
    %v1454 = vsel %vm1392, %v1375, -1e+30
    %v1455 = vsel %vm1392, %v1380, -1e+30
    %v1456 = vsel %vm1392, %v1385, -1e+30
    %v1457 = vld [vmem:[#allocation2] sm:$0xff]
    %v1458 = vld [vmem:[#allocation2 + $0x8] sm:$0xff]
    %v1459 = vld [vmem:[#allocation2 + $0x10] sm:$0xff]
    %v1460 = vld [vmem:[#allocation2 + $0x18] sm:$0xff]
    %v1461 = vld [vmem:[#allocation2 + $0x20] sm:$0xff]
    %v1462 = vld [vmem:[#allocation2 + $0x28] sm:$0xff]
    %v1463 = vld [vmem:[#allocation2 + $0x30] sm:$0xff]
    %v1464 = vld [vmem:[#allocation2 + $0x38] sm:$0xff]
    %v1465 = vld [vmem:[#allocation2 + $0x40] sm:$0xff]
    %v1466 = vld [vmem:[#allocation2 + $0x48] sm:$0xff]
    %v1467 = vld [vmem:[#allocation2 + $0x50] sm:$0xff]
    %v1468 = vld [vmem:[#allocation2 + $0x58] sm:$0xff]
    %v1469 = vld [vmem:[#allocation2 + $0x60] sm:$0xff]
    %v1470 = vld [vmem:[#allocation2 + $0x68] sm:$0xff]
    %v1471 = vld [vmem:[#allocation2 + $0x70] sm:$0xff]
    %v1472 = vld [vmem:[#allocation2 + $0x78] sm:$0xff]
    %v1473 = vld [vmem:[#allocation2 + $0x80] sm:$0xff]
    %v1474 = vld [vmem:[#allocation2 + $0x88] sm:$0xff]
    %v1475 = vld [vmem:[#allocation2 + $0x90] sm:$0xff]
    %v1476 = vld [vmem:[#allocation2 + $0x98] sm:$0xff]
    %v1477 = vld [vmem:[#allocation2 + $0xa0] sm:$0xff]
    %v1478 = vld [vmem:[#allocation2 + $0xa8] sm:$0xff]
    %v1479 = vld [vmem:[#allocation2 + $0xb0] sm:$0xff]
    %v1480 = vld [vmem:[#allocation2 + $0xb8] sm:$0xff]
    %v1481 = vld [vmem:[#allocation2 + $0xc0] sm:$0xff]
    %v1482 = vld [vmem:[#allocation2 + $0xc8] sm:$0xff]
    %v1483 = vld [vmem:[#allocation2 + $0xd0] sm:$0xff]
    %v1484 = vld [vmem:[#allocation2 + $0xd8] sm:$0xff]
    %v1485 = vld [vmem:[#allocation2 + $0xe0] sm:$0xff]
    %v1486 = vld [vmem:[#allocation2 + $0xe8] sm:$0xff]
    %v1487 = vld [vmem:[#allocation2 + $0xf0] sm:$0xff]
    %v1488 = vld [vmem:[#allocation2 + $0xf8] sm:$0xff]
    %v1489 = vld [vmem:[#allocation2 + $0x100] sm:$0xff]
    %v1490 = vld [vmem:[#allocation2 + $0x108] sm:$0xff]
    %v1491 = vld [vmem:[#allocation2 + $0x110] sm:$0xff]
    %v1492 = vld [vmem:[#allocation2 + $0x118] sm:$0xff]
    %v1493 = vld [vmem:[#allocation2 + $0x120] sm:$0xff]
    %v1494 = vld [vmem:[#allocation2 + $0x128] sm:$0xff]
    %v1495 = vld [vmem:[#allocation2 + $0x130] sm:$0xff]
    %v1496 = vld [vmem:[#allocation2 + $0x138] sm:$0xff]
    %v1497 = vld [vmem:[#allocation2 + $0x140] sm:$0xff]
    %v1498 = vld [vmem:[#allocation2 + $0x148] sm:$0xff]
    %v1499 = vld [vmem:[#allocation2 + $0x150] sm:$0xff]
    %v1500 = vld [vmem:[#allocation2 + $0x158] sm:$0xff]
    %v1501 = vld [vmem:[#allocation2 + $0x160] sm:$0xff]
    %v1502 = vld [vmem:[#allocation2 + $0x168] sm:$0xff]
    %v1503 = vld [vmem:[#allocation2 + $0x170] sm:$0xff]
    %v1504 = vld [vmem:[#allocation2 + $0x178] sm:$0xff]
    %v1505 = vld [vmem:[#allocation2 + $0x180] sm:$0xff]
    %v1506 = vld [vmem:[#allocation2 + $0x188] sm:$0xff]
    %v1507 = vld [vmem:[#allocation2 + $0x190] sm:$0xff]
    %v1508 = vld [vmem:[#allocation2 + $0x198] sm:$0xff]
    %v1509 = vld [vmem:[#allocation2 + $0x1a0] sm:$0xff]
    %v1510 = vld [vmem:[#allocation2 + $0x1a8] sm:$0xff]
    %v1511 = vld [vmem:[#allocation2 + $0x1b0] sm:$0xff]
    %v1512 = vld [vmem:[#allocation2 + $0x1b8] sm:$0xff]
    %v1513 = vld [vmem:[#allocation2 + $0x1c0] sm:$0xff]
    %v1514 = vld [vmem:[#allocation2 + $0x1c8] sm:$0xff]
    %v1515 = vld [vmem:[#allocation2 + $0x1d0] sm:$0xff]
    %v1516 = vld [vmem:[#allocation2 + $0x1d8] sm:$0xff]
    %v1517 = vld [vmem:[#allocation2 + $0x1e0] sm:$0xff]
    %v1518 = vld [vmem:[#allocation2 + $0x1e8] sm:$0xff]
    %v1519 = vld [vmem:[#allocation2 + $0x1f0] sm:$0xff]
    %v1520 = vld [vmem:[#allocation2 + $0x1f8] sm:$0xff]
    %1521 = vmax.xlane.f32.xlu0 %v1393
    %v1522 = vpop.xlane.xlu0 %1521
    %1523 = vmax.xlane.f32.xlu0 %v1394
    %v1524 = vpop.xlane.xlu0 %1523
    %1525 = vmax.xlane.f32.xlu0 %v1395
    %v1526 = vpop.xlane.xlu0 %1525
    %1527 = vmax.xlane.f32.xlu0 %v1396
    %v1528 = vpop.xlane.xlu0 %1527
    %1529 = vmax.xlane.f32.xlu0 %v1397
    %v1530 = vpop.xlane.xlu0 %1529
    %1531 = vmax.xlane.f32.xlu0 %v1398
    %v1532 = vpop.xlane.xlu0 %1531
    %1533 = vmax.xlane.f32.xlu0 %v1399
    %v1534 = vpop.xlane.xlu0 %1533
    %1535 = vmax.xlane.f32.xlu0 %v1400
    %v1536 = vpop.xlane.xlu0 %1535
    %1537 = vmax.xlane.f32.xlu0 %v1401
    %v1538 = vpop.xlane.xlu0 %1537
    %1539 = vmax.xlane.f32.xlu0 %v1402
    %v1540 = vpop.xlane.xlu0 %1539
    %1541 = vmax.xlane.f32.xlu0 %v1403
    %v1542 = vpop.xlane.xlu0 %1541
    %1543 = vmax.xlane.f32.xlu0 %v1404
    %v1544 = vpop.xlane.xlu0 %1543
    %1545 = vmax.xlane.f32.xlu0 %v1405
    %v1546 = vpop.xlane.xlu0 %1545
    %1547 = vmax.xlane.f32.xlu0 %v1406
    %v1548 = vpop.xlane.xlu0 %1547
    %1549 = vmax.xlane.f32.xlu0 %v1407
    %v1550 = vpop.xlane.xlu0 %1549
    %1551 = vmax.xlane.f32.xlu0 %v1408
    %v1552 = vpop.xlane.xlu0 %1551
    %1553 = vmax.xlane.f32.xlu0 %v1409
    %v1554 = vpop.xlane.xlu0 %1553
    %1555 = vmax.xlane.f32.xlu0 %v1410
    %v1556 = vpop.xlane.xlu0 %1555
    %1557 = vmax.xlane.f32.xlu0 %v1411
    %v1558 = vpop.xlane.xlu0 %1557
    %1559 = vmax.xlane.f32.xlu0 %v1412
    %v1560 = vpop.xlane.xlu0 %1559
    %1561 = vmax.xlane.f32.xlu0 %v1413
    %v1562 = vpop.xlane.xlu0 %1561
    %1563 = vmax.xlane.f32.xlu0 %v1414
    %v1564 = vpop.xlane.xlu0 %1563
    %1565 = vmax.xlane.f32.xlu0 %v1415
    %v1566 = vpop.xlane.xlu0 %1565
    %1567 = vmax.xlane.f32.xlu0 %v1416
    %v1568 = vpop.xlane.xlu0 %1567
    %1569 = vmax.xlane.f32.xlu0 %v1417
    %v1570 = vpop.xlane.xlu0 %1569
    %1571 = vmax.xlane.f32.xlu0 %v1418
    %v1572 = vpop.xlane.xlu0 %1571
    %1573 = vmax.xlane.f32.xlu0 %v1419
    %v1574 = vpop.xlane.xlu0 %1573
    %1575 = vmax.xlane.f32.xlu0 %v1420
    %v1576 = vpop.xlane.xlu0 %1575
    %1577 = vmax.xlane.f32.xlu0 %v1421
    %v1578 = vpop.xlane.xlu0 %1577
    %1579 = vmax.xlane.f32.xlu0 %v1422
    %v1580 = vpop.xlane.xlu0 %1579
    %1581 = vmax.xlane.f32.xlu0 %v1423
    %v1582 = vpop.xlane.xlu0 %1581
    %1583 = vmax.xlane.f32.xlu0 %v1424
    %v1584 = vpop.xlane.xlu0 %1583
    %1585 = vmax.xlane.f32.xlu0 %v1425
    %v1586 = vpop.xlane.xlu0 %1585
    %1587 = vmax.xlane.f32.xlu0 %v1426
    %v1588 = vpop.xlane.xlu0 %1587
    %1589 = vmax.xlane.f32.xlu0 %v1427
    %v1590 = vpop.xlane.xlu0 %1589
    %1591 = vmax.xlane.f32.xlu0 %v1428
    %v1592 = vpop.xlane.xlu0 %1591
    %1593 = vmax.xlane.f32.xlu0 %v1429
    %v1594 = vpop.xlane.xlu0 %1593
    %1595 = vmax.xlane.f32.xlu0 %v1430
    %v1596 = vpop.xlane.xlu0 %1595
    %1597 = vmax.xlane.f32.xlu0 %v1431
    %v1598 = vpop.xlane.xlu0 %1597
    %1599 = vmax.xlane.f32.xlu0 %v1432
    %v1600 = vpop.xlane.xlu0 %1599
    %1601 = vmax.xlane.f32.xlu0 %v1433
    %v1602 = vpop.xlane.xlu0 %1601
    %1603 = vmax.xlane.f32.xlu0 %v1434
    %v1604 = vpop.xlane.xlu0 %1603
    %1605 = vmax.xlane.f32.xlu0 %v1435
    %v1606 = vpop.xlane.xlu0 %1605
    %1607 = vmax.xlane.f32.xlu0 %v1436
    %v1608 = vpop.xlane.xlu0 %1607
    %1609 = vmax.xlane.f32.xlu0 %v1437
    %v1610 = vpop.xlane.xlu0 %1609
    %1611 = vmax.xlane.f32.xlu0 %v1438
    %v1612 = vpop.xlane.xlu0 %1611
    %1613 = vmax.xlane.f32.xlu0 %v1439
    %v1614 = vpop.xlane.xlu0 %1613
    %1615 = vmax.xlane.f32.xlu0 %v1440
    %v1616 = vpop.xlane.xlu0 %1615
    %1617 = vmax.xlane.f32.xlu0 %v1441
    %v1618 = vpop.xlane.xlu0 %1617
    %1619 = vmax.xlane.f32.xlu0 %v1442
    %v1620 = vpop.xlane.xlu0 %1619
    %1621 = vmax.xlane.f32.xlu0 %v1443
    %v1622 = vpop.xlane.xlu0 %1621
    %1623 = vmax.xlane.f32.xlu0 %v1444
    %v1624 = vpop.xlane.xlu0 %1623
    %1625 = vmax.xlane.f32.xlu0 %v1445
    %v1626 = vpop.xlane.xlu0 %1625
    %1627 = vmax.xlane.f32.xlu0 %v1446
    %v1628 = vpop.xlane.xlu0 %1627
    %1629 = vmax.xlane.f32.xlu0 %v1447
    %v1630 = vpop.xlane.xlu0 %1629
    %1631 = vmax.xlane.f32.xlu0 %v1448
    %v1632 = vpop.xlane.xlu0 %1631
    %1633 = vmax.xlane.f32.xlu0 %v1449
    %v1634 = vpop.xlane.xlu0 %1633
    %1635 = vmax.xlane.f32.xlu0 %v1450
    %v1636 = vpop.xlane.xlu0 %1635
    %1637 = vmax.xlane.f32.xlu0 %v1451
    %v1638 = vpop.xlane.xlu0 %1637
    %1639 = vmax.xlane.f32.xlu0 %v1452
    %v1640 = vpop.xlane.xlu0 %1639
    %1641 = vmax.xlane.f32.xlu0 %v1453
    %v1642 = vpop.xlane.xlu0 %1641
    %1643 = vmax.xlane.f32.xlu0 %v1454
    %v1644 = vpop.xlane.xlu0 %1643
    %1645 = vmax.xlane.f32.xlu0 %v1455
    %v1646 = vpop.xlane.xlu0 %1645
    %1647 = vmax.xlane.f32.xlu0 %v1456
    %v1648 = vpop.xlane.xlu0 %1647
    %v1649 = vmax.f32 %v1457, %v1522
    %v1650 = vmax.f32 %v1458, %v1524
    %v1651 = vmax.f32 %v1459, %v1526
    %v1652 = vmax.f32 %v1460, %v1528
    %v1653 = vmax.f32 %v1461, %v1530
    %v1654 = vmax.f32 %v1462, %v1532
    %v1655 = vmax.f32 %v1463, %v1534
    %v1656 = vmax.f32 %v1464, %v1536
    %v1657 = vmax.f32 %v1465, %v1538
    %v1658 = vmax.f32 %v1466, %v1540
    %v1659 = vmax.f32 %v1467, %v1542
    %v1660 = vmax.f32 %v1468, %v1544
    %v1661 = vmax.f32 %v1469, %v1546
    %v1662 = vmax.f32 %v1470, %v1548
    %v1663 = vmax.f32 %v1471, %v1550
    %v1664 = vmax.f32 %v1472, %v1552
    %v1665 = vmax.f32 %v1473, %v1554
    %v1666 = vmax.f32 %v1474, %v1556
    %v1667 = vmax.f32 %v1475, %v1558
    %v1668 = vmax.f32 %v1476, %v1560
    %v1669 = vmax.f32 %v1477, %v1562
    %v1670 = vmax.f32 %v1478, %v1564
    %v1671 = vmax.f32 %v1479, %v1566
    %v1672 = vmax.f32 %v1480, %v1568
    %v1673 = vmax.f32 %v1481, %v1570
    %v1674 = vmax.f32 %v1482, %v1572
    %v1675 = vmax.f32 %v1483, %v1574
    %v1676 = vmax.f32 %v1484, %v1576
    %v1677 = vmax.f32 %v1485, %v1578
    %v1678 = vmax.f32 %v1486, %v1580
    %v1679 = vmax.f32 %v1487, %v1582
    %v1680 = vmax.f32 %v1488, %v1584
    %v1681 = vmax.f32 %v1489, %v1586
    %v1682 = vmax.f32 %v1490, %v1588
    %v1683 = vmax.f32 %v1491, %v1590
    %v1684 = vmax.f32 %v1492, %v1592
    %v1685 = vmax.f32 %v1493, %v1594
    %v1686 = vmax.f32 %v1494, %v1596
    %v1687 = vmax.f32 %v1495, %v1598
    %v1688 = vmax.f32 %v1496, %v1600
    %v1689 = vmax.f32 %v1497, %v1602
    %v1690 = vmax.f32 %v1498, %v1604
    %v1691 = vmax.f32 %v1499, %v1606
    %v1692 = vmax.f32 %v1500, %v1608
    %v1693 = vmax.f32 %v1501, %v1610
    %v1694 = vmax.f32 %v1502, %v1612
    %v1695 = vmax.f32 %v1503, %v1614
    %v1696 = vmax.f32 %v1504, %v1616
    %v1697 = vmax.f32 %v1505, %v1618
    %v1698 = vmax.f32 %v1506, %v1620
    %v1699 = vmax.f32 %v1507, %v1622
    %v1700 = vmax.f32 %v1508, %v1624
    %v1701 = vmax.f32 %v1509, %v1626
    %v1702 = vmax.f32 %v1510, %v1628
    %v1703 = vmax.f32 %v1511, %v1630
    %v1704 = vmax.f32 %v1512, %v1632
    %v1705 = vmax.f32 %v1513, %v1634
    %v1706 = vmax.f32 %v1514, %v1636
    %v1707 = vmax.f32 %v1515, %v1638
    %v1708 = vmax.f32 %v1516, %v1640
    %v1709 = vmax.f32 %v1517, %v1642
    %v1710 = vmax.f32 %v1518, %v1644
    %v1711 = vmax.f32 %v1519, %v1646
    %v1712 = vmax.f32 %v1520, %v1648
    %v1713 = vsub.f32 %v1457, %v1649
    %v1714 = vsub.f32 %v1458, %v1650
    %v1715 = vsub.f32 %v1459, %v1651
    %v1716 = vsub.f32 %v1460, %v1652
    %v1717 = vsub.f32 %v1461, %v1653
    %v1718 = vsub.f32 %v1462, %v1654
    %v1719 = vsub.f32 %v1463, %v1655
    %v1720 = vsub.f32 %v1464, %v1656
    %v1721 = vsub.f32 %v1465, %v1657
    %v1722 = vsub.f32 %v1466, %v1658
    %v1723 = vsub.f32 %v1467, %v1659
    %v1724 = vsub.f32 %v1468, %v1660
    %v1725 = vsub.f32 %v1469, %v1661
    %v1726 = vsub.f32 %v1470, %v1662
    %v1727 = vsub.f32 %v1471, %v1663
    %v1728 = vsub.f32 %v1472, %v1664
    %v1729 = vsub.f32 %v1473, %v1665
    %v1730 = vsub.f32 %v1474, %v1666
    %v1731 = vsub.f32 %v1475, %v1667
    %v1732 = vsub.f32 %v1476, %v1668
    %v1733 = vsub.f32 %v1477, %v1669
    %v1734 = vsub.f32 %v1478, %v1670
    %v1735 = vsub.f32 %v1479, %v1671
    %v1736 = vsub.f32 %v1480, %v1672
    %v1737 = vsub.f32 %v1481, %v1673
    %v1738 = vsub.f32 %v1482, %v1674
    %v1739 = vsub.f32 %v1483, %v1675
    %v1740 = vsub.f32 %v1484, %v1676
    %v1741 = vsub.f32 %v1485, %v1677
    %v1742 = vsub.f32 %v1486, %v1678
    %v1743 = vsub.f32 %v1487, %v1679
    %v1744 = vsub.f32 %v1488, %v1680
    %v1745 = vsub.f32 %v1489, %v1681
    %v1746 = vsub.f32 %v1490, %v1682
    %v1747 = vsub.f32 %v1491, %v1683
    %v1748 = vsub.f32 %v1492, %v1684
    %v1749 = vsub.f32 %v1493, %v1685
    %v1750 = vsub.f32 %v1494, %v1686
    %v1751 = vsub.f32 %v1495, %v1687
    %v1752 = vsub.f32 %v1496, %v1688
    %v1753 = vsub.f32 %v1497, %v1689
    %v1754 = vsub.f32 %v1498, %v1690
    %v1755 = vsub.f32 %v1499, %v1691
    %v1756 = vsub.f32 %v1500, %v1692
    %v1757 = vsub.f32 %v1501, %v1693
    %v1758 = vsub.f32 %v1502, %v1694
    %v1759 = vsub.f32 %v1503, %v1695
    %v1760 = vsub.f32 %v1504, %v1696
    %v1761 = vsub.f32 %v1505, %v1697
    %v1762 = vsub.f32 %v1506, %v1698
    %v1763 = vsub.f32 %v1507, %v1699
    %v1764 = vsub.f32 %v1508, %v1700
    %v1765 = vsub.f32 %v1509, %v1701
    %v1766 = vsub.f32 %v1510, %v1702
    %v1767 = vsub.f32 %v1511, %v1703
    %v1768 = vsub.f32 %v1512, %v1704
    %v1769 = vsub.f32 %v1513, %v1705
    %v1770 = vsub.f32 %v1514, %v1706
    %v1771 = vsub.f32 %v1515, %v1707
    %v1772 = vsub.f32 %v1516, %v1708
    %v1773 = vsub.f32 %v1517, %v1709
    %v1774 = vsub.f32 %v1518, %v1710
    %v1775 = vsub.f32 %v1519, %v1711
    %v1776 = vsub.f32 %v1520, %v1712
    %v1777 = vmul.f32 %v1713, 1.442695
    %v1778 = vpow.pop %v1777
    %v1779 = vmul.f32 %v1714, 1.442695
    %v1780 = vpow.pop %v1779
    %v1781 = vmul.f32 %v1715, 1.442695
    %v1782 = vpow.pop %v1781
    %v1783 = vmul.f32 %v1716, 1.442695
    %v1784 = vpow.pop %v1783
    %v1785 = vmul.f32 %v1717, 1.442695
    %v1786 = vpow.pop %v1785
    %v1787 = vmul.f32 %v1718, 1.442695
    %v1788 = vpow.pop %v1787
    %v1789 = vmul.f32 %v1719, 1.442695
    %v1790 = vpow.pop %v1789
    %v1791 = vmul.f32 %v1720, 1.442695
    %v1792 = vpow.pop %v1791
    %v1793 = vmul.f32 %v1721, 1.442695
    %v1794 = vpow.pop %v1793
    %v1795 = vmul.f32 %v1722, 1.442695
    %v1796 = vpow.pop %v1795
    %v1797 = vmul.f32 %v1723, 1.442695
    %v1798 = vpow.pop %v1797
    %v1799 = vmul.f32 %v1724, 1.442695
    %v1800 = vpow.pop %v1799
    %v1801 = vmul.f32 %v1725, 1.442695
    %v1802 = vpow.pop %v1801
    %v1803 = vmul.f32 %v1726, 1.442695
    %v1804 = vpow.pop %v1803
    %v1805 = vmul.f32 %v1727, 1.442695
    %v1806 = vpow.pop %v1805
    %v1807 = vmul.f32 %v1728, 1.442695
    %v1808 = vpow.pop %v1807
    %v1809 = vmul.f32 %v1729, 1.442695
    %v1810 = vpow.pop %v1809
    %v1811 = vmul.f32 %v1730, 1.442695
    %v1812 = vpow.pop %v1811
    %v1813 = vmul.f32 %v1731, 1.442695
    %v1814 = vpow.pop %v1813
    %v1815 = vmul.f32 %v1732, 1.442695
    %v1816 = vpow.pop %v1815
    %v1817 = vmul.f32 %v1733, 1.442695
    %v1818 = vpow.pop %v1817
    %v1819 = vmul.f32 %v1734, 1.442695
    %v1820 = vpow.pop %v1819
    %v1821 = vmul.f32 %v1735, 1.442695
    %v1822 = vpow.pop %v1821
    %v1823 = vmul.f32 %v1736, 1.442695
    %v1824 = vpow.pop %v1823
    %v1825 = vmul.f32 %v1737, 1.442695
    %v1826 = vpow.pop %v1825
    %v1827 = vmul.f32 %v1738, 1.442695
    %v1828 = vpow.pop %v1827
    %v1829 = vmul.f32 %v1739, 1.442695
    %v1830 = vpow.pop %v1829
    %v1831 = vmul.f32 %v1740, 1.442695
    %v1832 = vpow.pop %v1831
    %v1833 = vmul.f32 %v1741, 1.442695
    %v1834 = vpow.pop %v1833
    %v1835 = vmul.f32 %v1742, 1.442695
    %v1836 = vpow.pop %v1835
    %v1837 = vmul.f32 %v1743, 1.442695
    %v1838 = vpow.pop %v1837
    %v1839 = vmul.f32 %v1744, 1.442695
    %v1840 = vpow.pop %v1839
    %v1841 = vmul.f32 %v1745, 1.442695
    %v1842 = vpow.pop %v1841
    %v1843 = vmul.f32 %v1746, 1.442695
    %v1844 = vpow.pop %v1843
    %v1845 = vmul.f32 %v1747, 1.442695
    %v1846 = vpow.pop %v1845
    %v1847 = vmul.f32 %v1748, 1.442695
    %v1848 = vpow.pop %v1847
    %v1849 = vmul.f32 %v1749, 1.442695
    %v1850 = vpow.pop %v1849
    %v1851 = vmul.f32 %v1750, 1.442695
    %v1852 = vpow.pop %v1851
    %v1853 = vmul.f32 %v1751, 1.442695
    %v1854 = vpow.pop %v1853
    %v1855 = vmul.f32 %v1752, 1.442695
    %v1856 = vpow.pop %v1855
    %v1857 = vmul.f32 %v1753, 1.442695
    %v1858 = vpow.pop %v1857
    %v1859 = vmul.f32 %v1754, 1.442695
    %v1860 = vpow.pop %v1859
    %v1861 = vmul.f32 %v1755, 1.442695
    %v1862 = vpow.pop %v1861
    %v1863 = vmul.f32 %v1756, 1.442695
    %v1864 = vpow.pop %v1863
    %v1865 = vmul.f32 %v1757, 1.442695
    %v1866 = vpow.pop %v1865
    %v1867 = vmul.f32 %v1758, 1.442695
    %v1868 = vpow.pop %v1867
    %v1869 = vmul.f32 %v1759, 1.442695
    %v1870 = vpow.pop %v1869
    %v1871 = vmul.f32 %v1760, 1.442695
    %v1872 = vpow.pop %v1871
    %v1873 = vmul.f32 %v1761, 1.442695
    %v1874 = vpow.pop %v1873
    %v1875 = vmul.f32 %v1762, 1.442695
    %v1876 = vpow.pop %v1875
    %v1877 = vmul.f32 %v1763, 1.442695
    %v1878 = vpow.pop %v1877
    %v1879 = vmul.f32 %v1764, 1.442695
    %v1880 = vpow.pop %v1879
    %v1881 = vmul.f32 %v1765, 1.442695
    %v1882 = vpow.pop %v1881
    %v1883 = vmul.f32 %v1766, 1.442695
    %v1884 = vpow.pop %v1883
    %v1885 = vmul.f32 %v1767, 1.442695
    %v1886 = vpow.pop %v1885
    %v1887 = vmul.f32 %v1768, 1.442695
    %v1888 = vpow.pop %v1887
    %v1889 = vmul.f32 %v1769, 1.442695
    %v1890 = vpow.pop %v1889
    %v1891 = vmul.f32 %v1770, 1.442695
    %v1892 = vpow.pop %v1891
    %v1893 = vmul.f32 %v1771, 1.442695
    %v1894 = vpow.pop %v1893
    %v1895 = vmul.f32 %v1772, 1.442695
    %v1896 = vpow.pop %v1895
    %v1897 = vmul.f32 %v1773, 1.442695
    %v1898 = vpow.pop %v1897
    %v1899 = vmul.f32 %v1774, 1.442695
    %v1900 = vpow.pop %v1899
    %v1901 = vmul.f32 %v1775, 1.442695
    %v1902 = vpow.pop %v1901
    %v1903 = vmul.f32 %v1776, 1.442695
    %v1904 = vpow.pop %v1903
    %1906 = vset.pattern.permute.xlu0 0
    %1907 = vperm.xlu0 %1906, %v1649
    %v1908 = vpop.permute.xlu0 %1907
    %1911 = vset.pattern.permute.xlu0 0
    %1912 = vperm.xlu0 %1911, %v1650
    %v1913 = vpop.permute.xlu0 %1912
    %1916 = vset.pattern.permute.xlu0 0
    %1917 = vperm.xlu0 %1916, %v1651
    %v1918 = vpop.permute.xlu0 %1917
    %1921 = vset.pattern.permute.xlu0 0
    %1922 = vperm.xlu0 %1921, %v1652
    %v1923 = vpop.permute.xlu0 %1922
    %1926 = vset.pattern.permute.xlu0 0
    %1927 = vperm.xlu0 %1926, %v1653
    %v1928 = vpop.permute.xlu0 %1927
    %1931 = vset.pattern.permute.xlu0 0
    %1932 = vperm.xlu0 %1931, %v1654
    %v1933 = vpop.permute.xlu0 %1932
    %1936 = vset.pattern.permute.xlu0 0
    %1937 = vperm.xlu0 %1936, %v1655
    %v1938 = vpop.permute.xlu0 %1937
    %1941 = vset.pattern.permute.xlu0 0
    %1942 = vperm.xlu0 %1941, %v1656
    %v1943 = vpop.permute.xlu0 %1942
    %1946 = vset.pattern.permute.xlu0 0
    %1947 = vperm.xlu0 %1946, %v1657
    %v1948 = vpop.permute.xlu0 %1947
    %1951 = vset.pattern.permute.xlu0 0
    %1952 = vperm.xlu0 %1951, %v1658
    %v1953 = vpop.permute.xlu0 %1952
    %1956 = vset.pattern.permute.xlu0 0
    %1957 = vperm.xlu0 %1956, %v1659
    %v1958 = vpop.permute.xlu0 %1957
    %1961 = vset.pattern.permute.xlu0 0
    %1962 = vperm.xlu0 %1961, %v1660
    %v1963 = vpop.permute.xlu0 %1962
    %1966 = vset.pattern.permute.xlu0 0
    %1967 = vperm.xlu0 %1966, %v1661
    %v1968 = vpop.permute.xlu0 %1967
    %1971 = vset.pattern.permute.xlu0 0
    %1972 = vperm.xlu0 %1971, %v1662
    %v1973 = vpop.permute.xlu0 %1972
    %1976 = vset.pattern.permute.xlu0 0
    %1977 = vperm.xlu0 %1976, %v1663
    %v1978 = vpop.permute.xlu0 %1977
    %1981 = vset.pattern.permute.xlu0 0
    %1982 = vperm.xlu0 %1981, %v1664
    %v1983 = vpop.permute.xlu0 %1982
    %1986 = vset.pattern.permute.xlu0 0
    %1987 = vperm.xlu0 %1986, %v1665
    %v1988 = vpop.permute.xlu0 %1987
    %1991 = vset.pattern.permute.xlu0 0
    %1992 = vperm.xlu0 %1991, %v1666
    %v1993 = vpop.permute.xlu0 %1992
    %1996 = vset.pattern.permute.xlu0 0
    %1997 = vperm.xlu0 %1996, %v1667
    %v1998 = vpop.permute.xlu0 %1997
    %2001 = vset.pattern.permute.xlu0 0
    %2002 = vperm.xlu0 %2001, %v1668
    %v2003 = vpop.permute.xlu0 %2002
    %2006 = vset.pattern.permute.xlu0 0
    %2007 = vperm.xlu0 %2006, %v1669
    %v2008 = vpop.permute.xlu0 %2007
    %2011 = vset.pattern.permute.xlu0 0
    %2012 = vperm.xlu0 %2011, %v1670
    %v2013 = vpop.permute.xlu0 %2012
    %2016 = vset.pattern.permute.xlu0 0
    %2017 = vperm.xlu0 %2016, %v1671
    %v2018 = vpop.permute.xlu0 %2017
    %2021 = vset.pattern.permute.xlu0 0
    %2022 = vperm.xlu0 %2021, %v1672
    %v2023 = vpop.permute.xlu0 %2022
    %2026 = vset.pattern.permute.xlu0 0
    %2027 = vperm.xlu0 %2026, %v1673
    %v2028 = vpop.permute.xlu0 %2027
    %2031 = vset.pattern.permute.xlu0 0
    %2032 = vperm.xlu0 %2031, %v1674
    %v2033 = vpop.permute.xlu0 %2032
    %2036 = vset.pattern.permute.xlu0 0
    %2037 = vperm.xlu0 %2036, %v1675
    %v2038 = vpop.permute.xlu0 %2037
    %2041 = vset.pattern.permute.xlu0 0
    %2042 = vperm.xlu0 %2041, %v1676
    %v2043 = vpop.permute.xlu0 %2042
    %2046 = vset.pattern.permute.xlu0 0
    %2047 = vperm.xlu0 %2046, %v1677
    %v2048 = vpop.permute.xlu0 %2047
    %2051 = vset.pattern.permute.xlu0 0
    %2052 = vperm.xlu0 %2051, %v1678
    %v2053 = vpop.permute.xlu0 %2052
    %2056 = vset.pattern.permute.xlu0 0
    %2057 = vperm.xlu0 %2056, %v1679
    %v2058 = vpop.permute.xlu0 %2057
    %2061 = vset.pattern.permute.xlu0 0
    %2062 = vperm.xlu0 %2061, %v1680
    %v2063 = vpop.permute.xlu0 %2062
    %2066 = vset.pattern.permute.xlu0 0
    %2067 = vperm.xlu0 %2066, %v1681
    %v2068 = vpop.permute.xlu0 %2067
    %2071 = vset.pattern.permute.xlu0 0
    %2072 = vperm.xlu0 %2071, %v1682
    %v2073 = vpop.permute.xlu0 %2072
    %2076 = vset.pattern.permute.xlu0 0
    %2077 = vperm.xlu0 %2076, %v1683
    %v2078 = vpop.permute.xlu0 %2077
    %2081 = vset.pattern.permute.xlu0 0
    %2082 = vperm.xlu0 %2081, %v1684
    %v2083 = vpop.permute.xlu0 %2082
    %2086 = vset.pattern.permute.xlu0 0
    %2087 = vperm.xlu0 %2086, %v1685
    %v2088 = vpop.permute.xlu0 %2087
    %2091 = vset.pattern.permute.xlu0 0
    %2092 = vperm.xlu0 %2091, %v1686
    %v2093 = vpop.permute.xlu0 %2092
    %2096 = vset.pattern.permute.xlu0 0
    %2097 = vperm.xlu0 %2096, %v1687
    %v2098 = vpop.permute.xlu0 %2097
    %2101 = vset.pattern.permute.xlu0 0
    %2102 = vperm.xlu0 %2101, %v1688
    %v2103 = vpop.permute.xlu0 %2102
    %2106 = vset.pattern.permute.xlu0 0
    %2107 = vperm.xlu0 %2106, %v1689
    %v2108 = vpop.permute.xlu0 %2107
    %2111 = vset.pattern.permute.xlu0 0
    %2112 = vperm.xlu0 %2111, %v1690
    %v2113 = vpop.permute.xlu0 %2112
    %2116 = vset.pattern.permute.xlu0 0
    %2117 = vperm.xlu0 %2116, %v1691
    %v2118 = vpop.permute.xlu0 %2117
    %2121 = vset.pattern.permute.xlu0 0
    %2122 = vperm.xlu0 %2121, %v1692
    %v2123 = vpop.permute.xlu0 %2122
    %2126 = vset.pattern.permute.xlu0 0
    %2127 = vperm.xlu0 %2126, %v1693
    %v2128 = vpop.permute.xlu0 %2127
    %2131 = vset.pattern.permute.xlu0 0
    %2132 = vperm.xlu0 %2131, %v1694
    %v2133 = vpop.permute.xlu0 %2132
    %2136 = vset.pattern.permute.xlu0 0
    %2137 = vperm.xlu0 %2136, %v1695
    %v2138 = vpop.permute.xlu0 %2137
    %2141 = vset.pattern.permute.xlu0 0
    %2142 = vperm.xlu0 %2141, %v1696
    %v2143 = vpop.permute.xlu0 %2142
    %2146 = vset.pattern.permute.xlu0 0
    %2147 = vperm.xlu0 %2146, %v1697
    %v2148 = vpop.permute.xlu0 %2147
    %2151 = vset.pattern.permute.xlu0 0
    %2152 = vperm.xlu0 %2151, %v1698
    %v2153 = vpop.permute.xlu0 %2152
    %2156 = vset.pattern.permute.xlu0 0
    %2157 = vperm.xlu0 %2156, %v1699
    %v2158 = vpop.permute.xlu0 %2157
    %2161 = vset.pattern.permute.xlu0 0
    %2162 = vperm.xlu0 %2161, %v1700
    %v2163 = vpop.permute.xlu0 %2162
    %2166 = vset.pattern.permute.xlu0 0
    %2167 = vperm.xlu0 %2166, %v1701
    %v2168 = vpop.permute.xlu0 %2167
    %2171 = vset.pattern.permute.xlu0 0
    %2172 = vperm.xlu0 %2171, %v1702
    %v2173 = vpop.permute.xlu0 %2172
    %2176 = vset.pattern.permute.xlu0 0
    %2177 = vperm.xlu0 %2176, %v1703
    %v2178 = vpop.permute.xlu0 %2177
    %2181 = vset.pattern.permute.xlu0 0
    %2182 = vperm.xlu0 %2181, %v1704
    %v2183 = vpop.permute.xlu0 %2182
    %2186 = vset.pattern.permute.xlu0 0
    %2187 = vperm.xlu0 %2186, %v1705
    %v2188 = vpop.permute.xlu0 %2187
    %2191 = vset.pattern.permute.xlu0 0
    %2192 = vperm.xlu0 %2191, %v1706
    %v2193 = vpop.permute.xlu0 %2192
    %2196 = vset.pattern.permute.xlu0 0
    %2197 = vperm.xlu0 %2196, %v1707
    %v2198 = vpop.permute.xlu0 %2197
    %2201 = vset.pattern.permute.xlu0 0
    %2202 = vperm.xlu0 %2201, %v1708
    %v2203 = vpop.permute.xlu0 %2202
    %2206 = vset.pattern.permute.xlu0 0
    %2207 = vperm.xlu0 %2206, %v1709
    %v2208 = vpop.permute.xlu0 %2207
    %2211 = vset.pattern.permute.xlu0 0
    %2212 = vperm.xlu0 %2211, %v1710
    %v2213 = vpop.permute.xlu0 %2212
    %2216 = vset.pattern.permute.xlu0 0
    %2217 = vperm.xlu0 %2216, %v1711
    %v2218 = vpop.permute.xlu0 %2217
    %2221 = vset.pattern.permute.xlu0 0
    %2222 = vperm.xlu0 %2221, %v1712
    %v2223 = vpop.permute.xlu0 %2222
    %v2225 = vsub.f32 %v1393, %v1908
    %v2226 = vsub.f32 %v1394, %v1913
    %v2227 = vsub.f32 %v1395, %v1918
    %v2228 = vsub.f32 %v1396, %v1923
    %v2229 = vsub.f32 %v1397, %v1928
    %v2230 = vsub.f32 %v1398, %v1933
    %v2231 = vsub.f32 %v1399, %v1938
    %v2232 = vsub.f32 %v1400, %v1943
    %v2233 = vsub.f32 %v1401, %v1948
    %v2234 = vsub.f32 %v1402, %v1953
    %v2235 = vsub.f32 %v1403, %v1958
    %v2236 = vsub.f32 %v1404, %v1963
    %v2237 = vsub.f32 %v1405, %v1968
    %v2238 = vsub.f32 %v1406, %v1973
    %v2239 = vsub.f32 %v1407, %v1978
    %v2240 = vsub.f32 %v1408, %v1983
    %v2241 = vsub.f32 %v1409, %v1988
    %v2242 = vsub.f32 %v1410, %v1993
    %v2243 = vsub.f32 %v1411, %v1998
    %v2244 = vsub.f32 %v1412, %v2003
    %v2245 = vsub.f32 %v1413, %v2008
    %v2246 = vsub.f32 %v1414, %v2013
    %v2247 = vsub.f32 %v1415, %v2018
    %v2248 = vsub.f32 %v1416, %v2023
    %v2249 = vsub.f32 %v1417, %v2028
    %v2250 = vsub.f32 %v1418, %v2033
    %v2251 = vsub.f32 %v1419, %v2038
    %v2252 = vsub.f32 %v1420, %v2043
    %v2253 = vsub.f32 %v1421, %v2048
    %v2254 = vsub.f32 %v1422, %v2053
    %v2255 = vsub.f32 %v1423, %v2058
    %v2256 = vsub.f32 %v1424, %v2063
    %v2257 = vsub.f32 %v1425, %v2068
    %v2258 = vsub.f32 %v1426, %v2073
    %v2259 = vsub.f32 %v1427, %v2078
    %v2260 = vsub.f32 %v1428, %v2083
    %v2261 = vsub.f32 %v1429, %v2088
    %v2262 = vsub.f32 %v1430, %v2093
    %v2263 = vsub.f32 %v1431, %v2098
    %v2264 = vsub.f32 %v1432, %v2103
    %v2265 = vsub.f32 %v1433, %v2108
    %v2266 = vsub.f32 %v1434, %v2113
    %v2267 = vsub.f32 %v1435, %v2118
    %v2268 = vsub.f32 %v1436, %v2123
    %v2269 = vsub.f32 %v1437, %v2128
    %v2270 = vsub.f32 %v1438, %v2133
    %v2271 = vsub.f32 %v1439, %v2138
    %v2272 = vsub.f32 %v1440, %v2143
    %v2273 = vsub.f32 %v1441, %v2148
    %v2274 = vsub.f32 %v1442, %v2153
    %v2275 = vsub.f32 %v1443, %v2158
    %v2276 = vsub.f32 %v1444, %v2163
    %v2277 = vsub.f32 %v1445, %v2168
    %v2278 = vsub.f32 %v1446, %v2173
    %v2279 = vsub.f32 %v1447, %v2178
    %v2280 = vsub.f32 %v1448, %v2183
    %v2281 = vsub.f32 %v1449, %v2188
    %v2282 = vsub.f32 %v1450, %v2193
    %v2283 = vsub.f32 %v1451, %v2198
    %v2284 = vsub.f32 %v1452, %v2203
    %v2285 = vsub.f32 %v1453, %v2208
    %v2286 = vsub.f32 %v1454, %v2213
    %v2287 = vsub.f32 %v1455, %v2218
    %v2288 = vsub.f32 %v1456, %v2223
    %v2289 = vmul.f32 %v2225, 1.442695
    %v2290 = vpow.pop %v2289
    %v2291 = vmul.f32 %v2226, 1.442695
    %v2292 = vpow.pop %v2291
    %v2293 = vmul.f32 %v2227, 1.442695
    %v2294 = vpow.pop %v2293
    %v2295 = vmul.f32 %v2228, 1.442695
    %v2296 = vpow.pop %v2295
    %v2297 = vmul.f32 %v2229, 1.442695
    %v2298 = vpow.pop %v2297
    %v2299 = vmul.f32 %v2230, 1.442695
    %v2300 = vpow.pop %v2299
    %v2301 = vmul.f32 %v2231, 1.442695
    %v2302 = vpow.pop %v2301
    %v2303 = vmul.f32 %v2232, 1.442695
    %v2304 = vpow.pop %v2303
    %v2305 = vmul.f32 %v2233, 1.442695
    %v2306 = vpow.pop %v2305
    %v2307 = vmul.f32 %v2234, 1.442695
    %v2308 = vpow.pop %v2307
    %v2309 = vmul.f32 %v2235, 1.442695
    %v2310 = vpow.pop %v2309
    %v2311 = vmul.f32 %v2236, 1.442695
    %v2312 = vpow.pop %v2311
    %v2313 = vmul.f32 %v2237, 1.442695
    %v2314 = vpow.pop %v2313
    %v2315 = vmul.f32 %v2238, 1.442695
    %v2316 = vpow.pop %v2315
    %v2317 = vmul.f32 %v2239, 1.442695
    %v2318 = vpow.pop %v2317
    %v2319 = vmul.f32 %v2240, 1.442695
    %v2320 = vpow.pop %v2319
    %v2321 = vmul.f32 %v2241, 1.442695
    %v2322 = vpow.pop %v2321
    %v2323 = vmul.f32 %v2242, 1.442695
    %v2324 = vpow.pop %v2323
    %v2325 = vmul.f32 %v2243, 1.442695
    %v2326 = vpow.pop %v2325
    %v2327 = vmul.f32 %v2244, 1.442695
    %v2328 = vpow.pop %v2327
    %v2329 = vmul.f32 %v2245, 1.442695
    %v2330 = vpow.pop %v2329
    %v2331 = vmul.f32 %v2246, 1.442695
    %v2332 = vpow.pop %v2331
    %v2333 = vmul.f32 %v2247, 1.442695
    %v2334 = vpow.pop %v2333
    %v2335 = vmul.f32 %v2248, 1.442695
    %v2336 = vpow.pop %v2335
    %v2337 = vmul.f32 %v2249, 1.442695
    %v2338 = vpow.pop %v2337
    %v2339 = vmul.f32 %v2250, 1.442695
    %v2340 = vpow.pop %v2339
    %v2341 = vmul.f32 %v2251, 1.442695
    %v2342 = vpow.pop %v2341
    %v2343 = vmul.f32 %v2252, 1.442695
    %v2344 = vpow.pop %v2343
    %v2345 = vmul.f32 %v2253, 1.442695
    %v2346 = vpow.pop %v2345
    %v2347 = vmul.f32 %v2254, 1.442695
    %v2348 = vpow.pop %v2347
    %v2349 = vmul.f32 %v2255, 1.442695
    %v2350 = vpow.pop %v2349
    %v2351 = vmul.f32 %v2256, 1.442695
    %v2352 = vpow.pop %v2351
    %v2353 = vmul.f32 %v2257, 1.442695
    %v2354 = vpow.pop %v2353
    %v2355 = vmul.f32 %v2258, 1.442695
    %v2356 = vpow.pop %v2355
    %v2357 = vmul.f32 %v2259, 1.442695
    %v2358 = vpow.pop %v2357
    %v2359 = vmul.f32 %v2260, 1.442695
    %v2360 = vpow.pop %v2359
    %v2361 = vmul.f32 %v2261, 1.442695
    %v2362 = vpow.pop %v2361
    %v2363 = vmul.f32 %v2262, 1.442695
    %v2364 = vpow.pop %v2363
    %v2365 = vmul.f32 %v2263, 1.442695
    %v2366 = vpow.pop %v2365
    %v2367 = vmul.f32 %v2264, 1.442695
    %v2368 = vpow.pop %v2367
    %v2369 = vmul.f32 %v2265, 1.442695
    %v2370 = vpow.pop %v2369
    %v2371 = vmul.f32 %v2266, 1.442695
    %v2372 = vpow.pop %v2371
    %v2373 = vmul.f32 %v2267, 1.442695
    %v2374 = vpow.pop %v2373
    %v2375 = vmul.f32 %v2268, 1.442695
    %v2376 = vpow.pop %v2375
    %v2377 = vmul.f32 %v2269, 1.442695
    %v2378 = vpow.pop %v2377
    %v2379 = vmul.f32 %v2270, 1.442695
    %v2380 = vpow.pop %v2379
    %v2381 = vmul.f32 %v2271, 1.442695
    %v2382 = vpow.pop %v2381
    %v2383 = vmul.f32 %v2272, 1.442695
    %v2384 = vpow.pop %v2383
    %v2385 = vmul.f32 %v2273, 1.442695
    %v2386 = vpow.pop %v2385
    %v2387 = vmul.f32 %v2274, 1.442695
    %v2388 = vpow.pop %v2387
    %v2389 = vmul.f32 %v2275, 1.442695
    %v2390 = vpow.pop %v2389
    %v2391 = vmul.f32 %v2276, 1.442695
    %v2392 = vpow.pop %v2391
    %v2393 = vmul.f32 %v2277, 1.442695
    %v2394 = vpow.pop %v2393
    %v2395 = vmul.f32 %v2278, 1.442695
    %v2396 = vpow.pop %v2395
    %v2397 = vmul.f32 %v2279, 1.442695
    %v2398 = vpow.pop %v2397
    %v2399 = vmul.f32 %v2280, 1.442695
    %v2400 = vpow.pop %v2399
    %v2401 = vmul.f32 %v2281, 1.442695
    %v2402 = vpow.pop %v2401
    %v2403 = vmul.f32 %v2282, 1.442695
    %v2404 = vpow.pop %v2403
    %v2405 = vmul.f32 %v2283, 1.442695
    %v2406 = vpow.pop %v2405
    %v2407 = vmul.f32 %v2284, 1.442695
    %v2408 = vpow.pop %v2407
    %v2409 = vmul.f32 %v2285, 1.442695
    %v2410 = vpow.pop %v2409
    %v2411 = vmul.f32 %v2286, 1.442695
    %v2412 = vpow.pop %v2411
    %v2413 = vmul.f32 %v2287, 1.442695
    %v2414 = vpow.pop %v2413
    %v2415 = vmul.f32 %v2288, 1.442695
    %v2416 = vpow.pop %v2415
    %v2417 = vld [vmem:[#allocation3] sm:$0xff]
    %v2418 = vld [vmem:[#allocation3 + $0x8] sm:$0xff]
    %v2419 = vld [vmem:[#allocation3 + $0x10] sm:$0xff]
    %v2420 = vld [vmem:[#allocation3 + $0x18] sm:$0xff]
    %v2421 = vld [vmem:[#allocation3 + $0x20] sm:$0xff]
    %v2422 = vld [vmem:[#allocation3 + $0x28] sm:$0xff]
    %v2423 = vld [vmem:[#allocation3 + $0x30] sm:$0xff]
    %v2424 = vld [vmem:[#allocation3 + $0x38] sm:$0xff]
    %v2425 = vld [vmem:[#allocation3 + $0x40] sm:$0xff]
    %v2426 = vld [vmem:[#allocation3 + $0x48] sm:$0xff]
    %v2427 = vld [vmem:[#allocation3 + $0x50] sm:$0xff]
    %v2428 = vld [vmem:[#allocation3 + $0x58] sm:$0xff]
    %v2429 = vld [vmem:[#allocation3 + $0x60] sm:$0xff]
    %v2430 = vld [vmem:[#allocation3 + $0x68] sm:$0xff]
    %v2431 = vld [vmem:[#allocation3 + $0x70] sm:$0xff]
    %v2432 = vld [vmem:[#allocation3 + $0x78] sm:$0xff]
    %v2433 = vld [vmem:[#allocation3 + $0x80] sm:$0xff]
    %v2434 = vld [vmem:[#allocation3 + $0x88] sm:$0xff]
    %v2435 = vld [vmem:[#allocation3 + $0x90] sm:$0xff]
    %v2436 = vld [vmem:[#allocation3 + $0x98] sm:$0xff]
    %v2437 = vld [vmem:[#allocation3 + $0xa0] sm:$0xff]
    %v2438 = vld [vmem:[#allocation3 + $0xa8] sm:$0xff]
    %v2439 = vld [vmem:[#allocation3 + $0xb0] sm:$0xff]
    %v2440 = vld [vmem:[#allocation3 + $0xb8] sm:$0xff]
    %v2441 = vld [vmem:[#allocation3 + $0xc0] sm:$0xff]
    %v2442 = vld [vmem:[#allocation3 + $0xc8] sm:$0xff]
    %v2443 = vld [vmem:[#allocation3 + $0xd0] sm:$0xff]
    %v2444 = vld [vmem:[#allocation3 + $0xd8] sm:$0xff]
    %v2445 = vld [vmem:[#allocation3 + $0xe0] sm:$0xff]
    %v2446 = vld [vmem:[#allocation3 + $0xe8] sm:$0xff]
    %v2447 = vld [vmem:[#allocation3 + $0xf0] sm:$0xff]
    %v2448 = vld [vmem:[#allocation3 + $0xf8] sm:$0xff]
    %v2449 = vld [vmem:[#allocation3 + $0x100] sm:$0xff]
    %v2450 = vld [vmem:[#allocation3 + $0x108] sm:$0xff]
    %v2451 = vld [vmem:[#allocation3 + $0x110] sm:$0xff]
    %v2452 = vld [vmem:[#allocation3 + $0x118] sm:$0xff]
    %v2453 = vld [vmem:[#allocation3 + $0x120] sm:$0xff]
    %v2454 = vld [vmem:[#allocation3 + $0x128] sm:$0xff]
    %v2455 = vld [vmem:[#allocation3 + $0x130] sm:$0xff]
    %v2456 = vld [vmem:[#allocation3 + $0x138] sm:$0xff]
    %v2457 = vld [vmem:[#allocation3 + $0x140] sm:$0xff]
    %v2458 = vld [vmem:[#allocation3 + $0x148] sm:$0xff]
    %v2459 = vld [vmem:[#allocation3 + $0x150] sm:$0xff]
    %v2460 = vld [vmem:[#allocation3 + $0x158] sm:$0xff]
    %v2461 = vld [vmem:[#allocation3 + $0x160] sm:$0xff]
    %v2462 = vld [vmem:[#allocation3 + $0x168] sm:$0xff]
    %v2463 = vld [vmem:[#allocation3 + $0x170] sm:$0xff]
    %v2464 = vld [vmem:[#allocation3 + $0x178] sm:$0xff]
    %v2465 = vld [vmem:[#allocation3 + $0x180] sm:$0xff]
    %v2466 = vld [vmem:[#allocation3 + $0x188] sm:$0xff]
    %v2467 = vld [vmem:[#allocation3 + $0x190] sm:$0xff]
    %v2468 = vld [vmem:[#allocation3 + $0x198] sm:$0xff]
    %v2469 = vld [vmem:[#allocation3 + $0x1a0] sm:$0xff]
    %v2470 = vld [vmem:[#allocation3 + $0x1a8] sm:$0xff]
    %v2471 = vld [vmem:[#allocation3 + $0x1b0] sm:$0xff]
    %v2472 = vld [vmem:[#allocation3 + $0x1b8] sm:$0xff]
    %v2473 = vld [vmem:[#allocation3 + $0x1c0] sm:$0xff]
    %v2474 = vld [vmem:[#allocation3 + $0x1c8] sm:$0xff]
    %v2475 = vld [vmem:[#allocation3 + $0x1d0] sm:$0xff]
    %v2476 = vld [vmem:[#allocation3 + $0x1d8] sm:$0xff]
    %v2477 = vld [vmem:[#allocation3 + $0x1e0] sm:$0xff]
    %v2478 = vld [vmem:[#allocation3 + $0x1e8] sm:$0xff]
    %v2479 = vld [vmem:[#allocation3 + $0x1f0] sm:$0xff]
    %v2480 = vld [vmem:[#allocation3 + $0x1f8] sm:$0xff]
    %v2481 = vmul.f32 %v1778, %v2417
    %v2482 = vmul.f32 %v1780, %v2418
    %v2483 = vmul.f32 %v1782, %v2419
    %v2484 = vmul.f32 %v1784, %v2420
    %v2485 = vmul.f32 %v1786, %v2421
    %v2486 = vmul.f32 %v1788, %v2422
    %v2487 = vmul.f32 %v1790, %v2423
    %v2488 = vmul.f32 %v1792, %v2424
    %v2489 = vmul.f32 %v1794, %v2425
    %v2490 = vmul.f32 %v1796, %v2426
    %v2491 = vmul.f32 %v1798, %v2427
    %v2492 = vmul.f32 %v1800, %v2428
    %v2493 = vmul.f32 %v1802, %v2429
    %v2494 = vmul.f32 %v1804, %v2430
    %v2495 = vmul.f32 %v1806, %v2431
    %v2496 = vmul.f32 %v1808, %v2432
    %v2497 = vmul.f32 %v1810, %v2433
    %v2498 = vmul.f32 %v1812, %v2434
    %v2499 = vmul.f32 %v1814, %v2435
    %v2500 = vmul.f32 %v1816, %v2436
    %v2501 = vmul.f32 %v1818, %v2437
    %v2502 = vmul.f32 %v1820, %v2438
    %v2503 = vmul.f32 %v1822, %v2439
    %v2504 = vmul.f32 %v1824, %v2440
    %v2505 = vmul.f32 %v1826, %v2441
    %v2506 = vmul.f32 %v1828, %v2442
    %v2507 = vmul.f32 %v1830, %v2443
    %v2508 = vmul.f32 %v1832, %v2444
    %v2509 = vmul.f32 %v1834, %v2445
    %v2510 = vmul.f32 %v1836, %v2446
    %v2511 = vmul.f32 %v1838, %v2447
    %v2512 = vmul.f32 %v1840, %v2448
    %v2513 = vmul.f32 %v1842, %v2449
    %v2514 = vmul.f32 %v1844, %v2450
    %v2515 = vmul.f32 %v1846, %v2451
    %v2516 = vmul.f32 %v1848, %v2452
    %v2517 = vmul.f32 %v1850, %v2453
    %v2518 = vmul.f32 %v1852, %v2454
    %v2519 = vmul.f32 %v1854, %v2455
    %v2520 = vmul.f32 %v1856, %v2456
    %v2521 = vmul.f32 %v1858, %v2457
    %v2522 = vmul.f32 %v1860, %v2458
    %v2523 = vmul.f32 %v1862, %v2459
    %v2524 = vmul.f32 %v1864, %v2460
    %v2525 = vmul.f32 %v1866, %v2461
    %v2526 = vmul.f32 %v1868, %v2462
    %v2527 = vmul.f32 %v1870, %v2463
    %v2528 = vmul.f32 %v1872, %v2464
    %v2529 = vmul.f32 %v1874, %v2465
    %v2530 = vmul.f32 %v1876, %v2466
    %v2531 = vmul.f32 %v1878, %v2467
    %v2532 = vmul.f32 %v1880, %v2468
    %v2533 = vmul.f32 %v1882, %v2469
    %v2534 = vmul.f32 %v1884, %v2470
    %v2535 = vmul.f32 %v1886, %v2471
    %v2536 = vmul.f32 %v1888, %v2472
    %v2537 = vmul.f32 %v1890, %v2473
    %v2538 = vmul.f32 %v1892, %v2474
    %v2539 = vmul.f32 %v1894, %v2475
    %v2540 = vmul.f32 %v1896, %v2476
    %v2541 = vmul.f32 %v1898, %v2477
    %v2542 = vmul.f32 %v1900, %v2478
    %v2543 = vmul.f32 %v1902, %v2479
    %v2544 = vmul.f32 %v1904, %v2480
    %2545 = vadd.xlane.f32.xlu0 %v2290
    %v2546 = vpop.xlane.xlu0 %2545
    %2547 = vadd.xlane.f32.xlu0 %v2292
    %v2548 = vpop.xlane.xlu0 %2547
    %2549 = vadd.xlane.f32.xlu0 %v2294
    %v2550 = vpop.xlane.xlu0 %2549
    %2551 = vadd.xlane.f32.xlu0 %v2296
    %v2552 = vpop.xlane.xlu0 %2551
    %2553 = vadd.xlane.f32.xlu0 %v2298
    %v2554 = vpop.xlane.xlu0 %2553
    %2555 = vadd.xlane.f32.xlu0 %v2300
    %v2556 = vpop.xlane.xlu0 %2555
    %2557 = vadd.xlane.f32.xlu0 %v2302
    %v2558 = vpop.xlane.xlu0 %2557
    %2559 = vadd.xlane.f32.xlu0 %v2304
    %v2560 = vpop.xlane.xlu0 %2559
    %2561 = vadd.xlane.f32.xlu0 %v2306
    %v2562 = vpop.xlane.xlu0 %2561
    %2563 = vadd.xlane.f32.xlu0 %v2308
    %v2564 = vpop.xlane.xlu0 %2563
    %2565 = vadd.xlane.f32.xlu0 %v2310
    %v2566 = vpop.xlane.xlu0 %2565
    %2567 = vadd.xlane.f32.xlu0 %v2312
    %v2568 = vpop.xlane.xlu0 %2567
    %2569 = vadd.xlane.f32.xlu0 %v2314
    %v2570 = vpop.xlane.xlu0 %2569
    %2571 = vadd.xlane.f32.xlu0 %v2316
    %v2572 = vpop.xlane.xlu0 %2571
    %2573 = vadd.xlane.f32.xlu0 %v2318
    %v2574 = vpop.xlane.xlu0 %2573
    %2575 = vadd.xlane.f32.xlu0 %v2320
    %v2576 = vpop.xlane.xlu0 %2575
    %2577 = vadd.xlane.f32.xlu0 %v2322
    %v2578 = vpop.xlane.xlu0 %2577
    %2579 = vadd.xlane.f32.xlu0 %v2324
    %v2580 = vpop.xlane.xlu0 %2579
    %2581 = vadd.xlane.f32.xlu0 %v2326
    %v2582 = vpop.xlane.xlu0 %2581
    %2583 = vadd.xlane.f32.xlu0 %v2328
    %v2584 = vpop.xlane.xlu0 %2583
    %2585 = vadd.xlane.f32.xlu0 %v2330
    %v2586 = vpop.xlane.xlu0 %2585
    %2587 = vadd.xlane.f32.xlu0 %v2332
    %v2588 = vpop.xlane.xlu0 %2587
    %2589 = vadd.xlane.f32.xlu0 %v2334
    %v2590 = vpop.xlane.xlu0 %2589
    %2591 = vadd.xlane.f32.xlu0 %v2336
    %v2592 = vpop.xlane.xlu0 %2591
    %2593 = vadd.xlane.f32.xlu0 %v2338
    %v2594 = vpop.xlane.xlu0 %2593
    %2595 = vadd.xlane.f32.xlu0 %v2340
    %v2596 = vpop.xlane.xlu0 %2595
    %2597 = vadd.xlane.f32.xlu0 %v2342
    %v2598 = vpop.xlane.xlu0 %2597
    %2599 = vadd.xlane.f32.xlu0 %v2344
    %v2600 = vpop.xlane.xlu0 %2599
    %2601 = vadd.xlane.f32.xlu0 %v2346
    %v2602 = vpop.xlane.xlu0 %2601
    %2603 = vadd.xlane.f32.xlu0 %v2348
    %v2604 = vpop.xlane.xlu0 %2603
    %2605 = vadd.xlane.f32.xlu0 %v2350
    %v2606 = vpop.xlane.xlu0 %2605
    %2607 = vadd.xlane.f32.xlu0 %v2352
    %v2608 = vpop.xlane.xlu0 %2607
    %2609 = vadd.xlane.f32.xlu0 %v2354
    %v2610 = vpop.xlane.xlu0 %2609
    %2611 = vadd.xlane.f32.xlu0 %v2356
    %v2612 = vpop.xlane.xlu0 %2611
    %2613 = vadd.xlane.f32.xlu0 %v2358
    %v2614 = vpop.xlane.xlu0 %2613
    %2615 = vadd.xlane.f32.xlu0 %v2360
    %v2616 = vpop.xlane.xlu0 %2615
    %2617 = vadd.xlane.f32.xlu0 %v2362
    %v2618 = vpop.xlane.xlu0 %2617
    %2619 = vadd.xlane.f32.xlu0 %v2364
    %v2620 = vpop.xlane.xlu0 %2619
    %2621 = vadd.xlane.f32.xlu0 %v2366
    %v2622 = vpop.xlane.xlu0 %2621
    %2623 = vadd.xlane.f32.xlu0 %v2368
    %v2624 = vpop.xlane.xlu0 %2623
    %2625 = vadd.xlane.f32.xlu0 %v2370
    %v2626 = vpop.xlane.xlu0 %2625
    %2627 = vadd.xlane.f32.xlu0 %v2372
    %v2628 = vpop.xlane.xlu0 %2627
    %2629 = vadd.xlane.f32.xlu0 %v2374
    %v2630 = vpop.xlane.xlu0 %2629
    %2631 = vadd.xlane.f32.xlu0 %v2376
    %v2632 = vpop.xlane.xlu0 %2631
    %2633 = vadd.xlane.f32.xlu0 %v2378
    %v2634 = vpop.xlane.xlu0 %2633
    %2635 = vadd.xlane.f32.xlu0 %v2380
    %v2636 = vpop.xlane.xlu0 %2635
    %2637 = vadd.xlane.f32.xlu0 %v2382
    %v2638 = vpop.xlane.xlu0 %2637
    %2639 = vadd.xlane.f32.xlu0 %v2384
    %v2640 = vpop.xlane.xlu0 %2639
    %2641 = vadd.xlane.f32.xlu0 %v2386
    %v2642 = vpop.xlane.xlu0 %2641
    %2643 = vadd.xlane.f32.xlu0 %v2388
    %v2644 = vpop.xlane.xlu0 %2643
    %2645 = vadd.xlane.f32.xlu0 %v2390
    %v2646 = vpop.xlane.xlu0 %2645
    %2647 = vadd.xlane.f32.xlu0 %v2392
    %v2648 = vpop.xlane.xlu0 %2647
    %2649 = vadd.xlane.f32.xlu0 %v2394
    %v2650 = vpop.xlane.xlu0 %2649
    %2651 = vadd.xlane.f32.xlu0 %v2396
    %v2652 = vpop.xlane.xlu0 %2651
    %2653 = vadd.xlane.f32.xlu0 %v2398
    %v2654 = vpop.xlane.xlu0 %2653
    %2655 = vadd.xlane.f32.xlu0 %v2400
    %v2656 = vpop.xlane.xlu0 %2655
    %2657 = vadd.xlane.f32.xlu0 %v2402
    %v2658 = vpop.xlane.xlu0 %2657
    %2659 = vadd.xlane.f32.xlu0 %v2404
    %v2660 = vpop.xlane.xlu0 %2659
    %2661 = vadd.xlane.f32.xlu0 %v2406
    %v2662 = vpop.xlane.xlu0 %2661
    %2663 = vadd.xlane.f32.xlu0 %v2408
    %v2664 = vpop.xlane.xlu0 %2663
    %2665 = vadd.xlane.f32.xlu0 %v2410
    %v2666 = vpop.xlane.xlu0 %2665
    %2667 = vadd.xlane.f32.xlu0 %v2412
    %v2668 = vpop.xlane.xlu0 %2667
    %2669 = vadd.xlane.f32.xlu0 %v2414
    %v2670 = vpop.xlane.xlu0 %2669
    %2671 = vadd.xlane.f32.xlu0 %v2416
    %v2672 = vpop.xlane.xlu0 %2671
    %v2673 = vadd.f32 %v2481, %v2546
    %v2674 = vadd.f32 %v2482, %v2548
    %v2675 = vadd.f32 %v2483, %v2550
    %v2676 = vadd.f32 %v2484, %v2552
    %v2677 = vadd.f32 %v2485, %v2554
    %v2678 = vadd.f32 %v2486, %v2556
    %v2679 = vadd.f32 %v2487, %v2558
    %v2680 = vadd.f32 %v2488, %v2560
    %v2681 = vadd.f32 %v2489, %v2562
    %v2682 = vadd.f32 %v2490, %v2564
    %v2683 = vadd.f32 %v2491, %v2566
    %v2684 = vadd.f32 %v2492, %v2568
    %v2685 = vadd.f32 %v2493, %v2570
    %v2686 = vadd.f32 %v2494, %v2572
    %v2687 = vadd.f32 %v2495, %v2574
    %v2688 = vadd.f32 %v2496, %v2576
    %v2689 = vadd.f32 %v2497, %v2578
    %v2690 = vadd.f32 %v2498, %v2580
    %v2691 = vadd.f32 %v2499, %v2582
    %v2692 = vadd.f32 %v2500, %v2584
    %v2693 = vadd.f32 %v2501, %v2586
    %v2694 = vadd.f32 %v2502, %v2588
    %v2695 = vadd.f32 %v2503, %v2590
    %v2696 = vadd.f32 %v2504, %v2592
    %v2697 = vadd.f32 %v2505, %v2594
    %v2698 = vadd.f32 %v2506, %v2596
    %v2699 = vadd.f32 %v2507, %v2598
    %v2700 = vadd.f32 %v2508, %v2600
    %v2701 = vadd.f32 %v2509, %v2602
    %v2702 = vadd.f32 %v2510, %v2604
    %v2703 = vadd.f32 %v2511, %v2606
    %v2704 = vadd.f32 %v2512, %v2608
    %v2705 = vadd.f32 %v2513, %v2610
    %v2706 = vadd.f32 %v2514, %v2612
    %v2707 = vadd.f32 %v2515, %v2614
    %v2708 = vadd.f32 %v2516, %v2616
    %v2709 = vadd.f32 %v2517, %v2618
    %v2710 = vadd.f32 %v2518, %v2620
    %v2711 = vadd.f32 %v2519, %v2622
    %v2712 = vadd.f32 %v2520, %v2624
    %v2713 = vadd.f32 %v2521, %v2626
    %v2714 = vadd.f32 %v2522, %v2628
    %v2715 = vadd.f32 %v2523, %v2630
    %v2716 = vadd.f32 %v2524, %v2632
    %v2717 = vadd.f32 %v2525, %v2634
    %v2718 = vadd.f32 %v2526, %v2636
    %v2719 = vadd.f32 %v2527, %v2638
    %v2720 = vadd.f32 %v2528, %v2640
    %v2721 = vadd.f32 %v2529, %v2642
    %v2722 = vadd.f32 %v2530, %v2644
    %v2723 = vadd.f32 %v2531, %v2646
    %v2724 = vadd.f32 %v2532, %v2648
    %v2725 = vadd.f32 %v2533, %v2650
    %v2726 = vadd.f32 %v2534, %v2652
    %v2727 = vadd.f32 %v2535, %v2654
    %v2728 = vadd.f32 %v2536, %v2656
    %v2729 = vadd.f32 %v2537, %v2658
    %v2730 = vadd.f32 %v2538, %v2660
    %v2731 = vadd.f32 %v2539, %v2662
    %v2732 = vadd.f32 %v2540, %v2664
    %v2733 = vadd.f32 %v2541, %v2666
    %v2734 = vadd.f32 %v2542, %v2668
    %v2735 = vadd.f32 %v2543, %v2670
    %v2736 = vadd.f32 %v2544, %v2672
    %vm2737 = vcmask 7168
    %2738 = vst.msk [vmem:[#allocation3] sm:$0xff] %vm2737, %v2673
    %2739 = vst.msk [vmem:[#allocation3 + $0x8] sm:$0xff] %vm2737, %v2674
    %2740 = vst.msk [vmem:[#allocation3 + $0x10] sm:$0xff] %vm2737, %v2675
    %2741 = vst.msk [vmem:[#allocation3 + $0x18] sm:$0xff] %vm2737, %v2676
    %2742 = vst.msk [vmem:[#allocation3 + $0x20] sm:$0xff] %vm2737, %v2677
    %2743 = vst.msk [vmem:[#allocation3 + $0x28] sm:$0xff] %vm2737, %v2678
    %2744 = vst.msk [vmem:[#allocation3 + $0x30] sm:$0xff] %vm2737, %v2679
    %2745 = vst.msk [vmem:[#allocation3 + $0x38] sm:$0xff] %vm2737, %v2680
    %2746 = vst.msk [vmem:[#allocation3 + $0x40] sm:$0xff] %vm2737, %v2681
    %2747 = vst.msk [vmem:[#allocation3 + $0x48] sm:$0xff] %vm2737, %v2682
    %2748 = vst.msk [vmem:[#allocation3 + $0x50] sm:$0xff] %vm2737, %v2683
    %2749 = vst.msk [vmem:[#allocation3 + $0x58] sm:$0xff] %vm2737, %v2684
    %2750 = vst.msk [vmem:[#allocation3 + $0x60] sm:$0xff] %vm2737, %v2685
    %2751 = vst.msk [vmem:[#allocation3 + $0x68] sm:$0xff] %vm2737, %v2686
    %2752 = vst.msk [vmem:[#allocation3 + $0x70] sm:$0xff] %vm2737, %v2687
    %2753 = vst.msk [vmem:[#allocation3 + $0x78] sm:$0xff] %vm2737, %v2688
    %2754 = vst.msk [vmem:[#allocation3 + $0x80] sm:$0xff] %vm2737, %v2689
    %2755 = vst.msk [vmem:[#allocation3 + $0x88] sm:$0xff] %vm2737, %v2690
    %2756 = vst.msk [vmem:[#allocation3 + $0x90] sm:$0xff] %vm2737, %v2691
    %2757 = vst.msk [vmem:[#allocation3 + $0x98] sm:$0xff] %vm2737, %v2692
    %2758 = vst.msk [vmem:[#allocation3 + $0xa0] sm:$0xff] %vm2737, %v2693
    %2759 = vst.msk [vmem:[#allocation3 + $0xa8] sm:$0xff] %vm2737, %v2694
    %2760 = vst.msk [vmem:[#allocation3 + $0xb0] sm:$0xff] %vm2737, %v2695
    %2761 = vst.msk [vmem:[#allocation3 + $0xb8] sm:$0xff] %vm2737, %v2696
    %2762 = vst.msk [vmem:[#allocation3 + $0xc0] sm:$0xff] %vm2737, %v2697
    %2763 = vst.msk [vmem:[#allocation3 + $0xc8] sm:$0xff] %vm2737, %v2698
    %2764 = vst.msk [vmem:[#allocation3 + $0xd0] sm:$0xff] %vm2737, %v2699
    %2765 = vst.msk [vmem:[#allocation3 + $0xd8] sm:$0xff] %vm2737, %v2700
    %2766 = vst.msk [vmem:[#allocation3 + $0xe0] sm:$0xff] %vm2737, %v2701
    %2767 = vst.msk [vmem:[#allocation3 + $0xe8] sm:$0xff] %vm2737, %v2702
    %2768 = vst.msk [vmem:[#allocation3 + $0xf0] sm:$0xff] %vm2737, %v2703
    %2769 = vst.msk [vmem:[#allocation3 + $0xf8] sm:$0xff] %vm2737, %v2704
    %2770 = vst.msk [vmem:[#allocation3 + $0x100] sm:$0xff] %vm2737, %v2705
    %2771 = vst.msk [vmem:[#allocation3 + $0x108] sm:$0xff] %vm2737, %v2706
    %2772 = vst.msk [vmem:[#allocation3 + $0x110] sm:$0xff] %vm2737, %v2707
    %2773 = vst.msk [vmem:[#allocation3 + $0x118] sm:$0xff] %vm2737, %v2708
    %2774 = vst.msk [vmem:[#allocation3 + $0x120] sm:$0xff] %vm2737, %v2709
    %2775 = vst.msk [vmem:[#allocation3 + $0x128] sm:$0xff] %vm2737, %v2710
    %2776 = vst.msk [vmem:[#allocation3 + $0x130] sm:$0xff] %vm2737, %v2711
    %2777 = vst.msk [vmem:[#allocation3 + $0x138] sm:$0xff] %vm2737, %v2712
    %2778 = vst.msk [vmem:[#allocation3 + $0x140] sm:$0xff] %vm2737, %v2713
    %2779 = vst.msk [vmem:[#allocation3 + $0x148] sm:$0xff] %vm2737, %v2714
    %2780 = vst.msk [vmem:[#allocation3 + $0x150] sm:$0xff] %vm2737, %v2715
    %2781 = vst.msk [vmem:[#allocation3 + $0x158] sm:$0xff] %vm2737, %v2716
    %2782 = vst.msk [vmem:[#allocation3 + $0x160] sm:$0xff] %vm2737, %v2717
    %2783 = vst.msk [vmem:[#allocation3 + $0x168] sm:$0xff] %vm2737, %v2718
    %2784 = vst.msk [vmem:[#allocation3 + $0x170] sm:$0xff] %vm2737, %v2719
    %2785 = vst.msk [vmem:[#allocation3 + $0x178] sm:$0xff] %vm2737, %v2720
    %2786 = vst.msk [vmem:[#allocation3 + $0x180] sm:$0xff] %vm2737, %v2721
    %2787 = vst.msk [vmem:[#allocation3 + $0x188] sm:$0xff] %vm2737, %v2722
    %2788 = vst.msk [vmem:[#allocation3 + $0x190] sm:$0xff] %vm2737, %v2723
    %2789 = vst.msk [vmem:[#allocation3 + $0x198] sm:$0xff] %vm2737, %v2724
    %2790 = vst.msk [vmem:[#allocation3 + $0x1a0] sm:$0xff] %vm2737, %v2725
    %2791 = vst.msk [vmem:[#allocation3 + $0x1a8] sm:$0xff] %vm2737, %v2726
    %2792 = vst.msk [vmem:[#allocation3 + $0x1b0] sm:$0xff] %vm2737, %v2727
    %2793 = vst.msk [vmem:[#allocation3 + $0x1b8] sm:$0xff] %vm2737, %v2728
    %2794 = vst.msk [vmem:[#allocation3 + $0x1c0] sm:$0xff] %vm2737, %v2729
    %2795 = vst.msk [vmem:[#allocation3 + $0x1c8] sm:$0xff] %vm2737, %v2730
    %2796 = vst.msk [vmem:[#allocation3 + $0x1d0] sm:$0xff] %vm2737, %v2731
    %2797 = vst.msk [vmem:[#allocation3 + $0x1d8] sm:$0xff] %vm2737, %v2732
    %2798 = vst.msk [vmem:[#allocation3 + $0x1e0] sm:$0xff] %vm2737, %v2733
    %2799 = vst.msk [vmem:[#allocation3 + $0x1e8] sm:$0xff] %vm2737, %v2734
    %2800 = vst.msk [vmem:[#allocation3 + $0x1f0] sm:$0xff] %vm2737, %v2735
    %2801 = vst.msk [vmem:[#allocation3 + $0x1f8] sm:$0xff] %vm2737, %v2736
    %2802 = vst.msk [vmem:[#allocation2] sm:$0xff] %vm2737, %v1649
    %2803 = vst.msk [vmem:[#allocation2 + $0x8] sm:$0xff] %vm2737, %v1650
    %2804 = vst.msk [vmem:[#allocation2 + $0x10] sm:$0xff] %vm2737, %v1651
    %2805 = vst.msk [vmem:[#allocation2 + $0x18] sm:$0xff] %vm2737, %v1652
    %2806 = vst.msk [vmem:[#allocation2 + $0x20] sm:$0xff] %vm2737, %v1653
    %2807 = vst.msk [vmem:[#allocation2 + $0x28] sm:$0xff] %vm2737, %v1654
    %2808 = vst.msk [vmem:[#allocation2 + $0x30] sm:$0xff] %vm2737, %v1655
    %2809 = vst.msk [vmem:[#allocation2 + $0x38] sm:$0xff] %vm2737, %v1656
    %2810 = vst.msk [vmem:[#allocation2 + $0x40] sm:$0xff] %vm2737, %v1657
    %2811 = vst.msk [vmem:[#allocation2 + $0x48] sm:$0xff] %vm2737, %v1658
    %2812 = vst.msk [vmem:[#allocation2 + $0x50] sm:$0xff] %vm2737, %v1659
    %2813 = vst.msk [vmem:[#allocation2 + $0x58] sm:$0xff] %vm2737, %v1660
    %2814 = vst.msk [vmem:[#allocation2 + $0x60] sm:$0xff] %vm2737, %v1661
    %2815 = vst.msk [vmem:[#allocation2 + $0x68] sm:$0xff] %vm2737, %v1662
    %2816 = vst.msk [vmem:[#allocation2 + $0x70] sm:$0xff] %vm2737, %v1663
    %2817 = vst.msk [vmem:[#allocation2 + $0x78] sm:$0xff] %vm2737, %v1664
    %2818 = vst.msk [vmem:[#allocation2 + $0x80] sm:$0xff] %vm2737, %v1665
    %2819 = vst.msk [vmem:[#allocation2 + $0x88] sm:$0xff] %vm2737, %v1666
    %2820 = vst.msk [vmem:[#allocation2 + $0x90] sm:$0xff] %vm2737, %v1667
    %2821 = vst.msk [vmem:[#allocation2 + $0x98] sm:$0xff] %vm2737, %v1668
    %2822 = vst.msk [vmem:[#allocation2 + $0xa0] sm:$0xff] %vm2737, %v1669
    %2823 = vst.msk [vmem:[#allocation2 + $0xa8] sm:$0xff] %vm2737, %v1670
    %2824 = vst.msk [vmem:[#allocation2 + $0xb0] sm:$0xff] %vm2737, %v1671
    %2825 = vst.msk [vmem:[#allocation2 + $0xb8] sm:$0xff] %vm2737, %v1672
    %2826 = vst.msk [vmem:[#allocation2 + $0xc0] sm:$0xff] %vm2737, %v1673
    %2827 = vst.msk [vmem:[#allocation2 + $0xc8] sm:$0xff] %vm2737, %v1674
    %2828 = vst.msk [vmem:[#allocation2 + $0xd0] sm:$0xff] %vm2737, %v1675
    %2829 = vst.msk [vmem:[#allocation2 + $0xd8] sm:$0xff] %vm2737, %v1676
    %2830 = vst.msk [vmem:[#allocation2 + $0xe0] sm:$0xff] %vm2737, %v1677
    %2831 = vst.msk [vmem:[#allocation2 + $0xe8] sm:$0xff] %vm2737, %v1678
    %2832 = vst.msk [vmem:[#allocation2 + $0xf0] sm:$0xff] %vm2737, %v1679
    %2833 = vst.msk [vmem:[#allocation2 + $0xf8] sm:$0xff] %vm2737, %v1680
    %2834 = vst.msk [vmem:[#allocation2 + $0x100] sm:$0xff] %vm2737, %v1681
    %2835 = vst.msk [vmem:[#allocation2 + $0x108] sm:$0xff] %vm2737, %v1682
    %2836 = vst.msk [vmem:[#allocation2 + $0x110] sm:$0xff] %vm2737, %v1683
    %2837 = vst.msk [vmem:[#allocation2 + $0x118] sm:$0xff] %vm2737, %v1684
    %2838 = vst.msk [vmem:[#allocation2 + $0x120] sm:$0xff] %vm2737, %v1685
    %2839 = vst.msk [vmem:[#allocation2 + $0x128] sm:$0xff] %vm2737, %v1686
    %2840 = vst.msk [vmem:[#allocation2 + $0x130] sm:$0xff] %vm2737, %v1687
    %2841 = vst.msk [vmem:[#allocation2 + $0x138] sm:$0xff] %vm2737, %v1688
    %2842 = vst.msk [vmem:[#allocation2 + $0x140] sm:$0xff] %vm2737, %v1689
    %2843 = vst.msk [vmem:[#allocation2 + $0x148] sm:$0xff] %vm2737, %v1690
    %2844 = vst.msk [vmem:[#allocation2 + $0x150] sm:$0xff] %vm2737, %v1691
    %2845 = vst.msk [vmem:[#allocation2 + $0x158] sm:$0xff] %vm2737, %v1692
    %2846 = vst.msk [vmem:[#allocation2 + $0x160] sm:$0xff] %vm2737, %v1693
    %2847 = vst.msk [vmem:[#allocation2 + $0x168] sm:$0xff] %vm2737, %v1694
    %2848 = vst.msk [vmem:[#allocation2 + $0x170] sm:$0xff] %vm2737, %v1695
    %2849 = vst.msk [vmem:[#allocation2 + $0x178] sm:$0xff] %vm2737, %v1696
    %2850 = vst.msk [vmem:[#allocation2 + $0x180] sm:$0xff] %vm2737, %v1697
    %2851 = vst.msk [vmem:[#allocation2 + $0x188] sm:$0xff] %vm2737, %v1698
    %2852 = vst.msk [vmem:[#allocation2 + $0x190] sm:$0xff] %vm2737, %v1699
    %2853 = vst.msk [vmem:[#allocation2 + $0x198] sm:$0xff] %vm2737, %v1700
    %2854 = vst.msk [vmem:[#allocation2 + $0x1a0] sm:$0xff] %vm2737, %v1701
    %2855 = vst.msk [vmem:[#allocation2 + $0x1a8] sm:$0xff] %vm2737, %v1702
    %2856 = vst.msk [vmem:[#allocation2 + $0x1b0] sm:$0xff] %vm2737, %v1703
    %2857 = vst.msk [vmem:[#allocation2 + $0x1b8] sm:$0xff] %vm2737, %v1704
    %2858 = vst.msk [vmem:[#allocation2 + $0x1c0] sm:$0xff] %vm2737, %v1705
    %2859 = vst.msk [vmem:[#allocation2 + $0x1c8] sm:$0xff] %vm2737, %v1706
    %2860 = vst.msk [vmem:[#allocation2 + $0x1d0] sm:$0xff] %vm2737, %v1707
    %2861 = vst.msk [vmem:[#allocation2 + $0x1d8] sm:$0xff] %vm2737, %v1708
    %2862 = vst.msk [vmem:[#allocation2 + $0x1e0] sm:$0xff] %vm2737, %v1709
    %2863 = vst.msk [vmem:[#allocation2 + $0x1e8] sm:$0xff] %vm2737, %v1710
    %2864 = vst.msk [vmem:[#allocation2 + $0x1f0] sm:$0xff] %vm2737, %v1711
    %2865 = vst.msk [vmem:[#allocation2 + $0x1f8] sm:$0xff] %vm2737, %v1712
    %2866 = vmatprep.subr.mxu0 0.0
    %2867 = vmatpush1.msra.mxu0 %v359
    %2868 = vmatprep.subr.mxu0 0.0
    %2869 = vmatpush1.msra.mxu0 %v360
    %2870 = vmatprep.subr.mxu0 0.0
    %2871 = vmatpush1.msra.mxu0 %v361
    %2872 = vmatprep.subr.mxu0 0.0
    %2873 = vmatpush1.msra.mxu0 %v362
    %2874 = vmatprep.subr.mxu0 0.0
    %2875 = vmatpush1.msra.mxu0 %v363
    %2876 = vmatprep.subr.mxu0 0.0
    %2877 = vmatpush1.msra.mxu0 %v364
    %2878 = vmatprep.subr.mxu0 0.0
    %2879 = vmatpush1.msra.mxu0 %v365
    %2880 = vmatprep.subr.mxu0 0.0
    %2881 = vmatpush1.msra.mxu0 %v366
    %2882 = vmatprep.subr.mxu0 0.0
    %2883 = vmatpush1.msra.mxu0 %v367
    %2884 = vmatprep.subr.mxu0 0.0
    %2885 = vmatpush1.msra.mxu0 %v368
    %2886 = vmatprep.subr.mxu0 0.0
    %2887 = vmatpush1.msra.mxu0 %v369
    %2888 = vmatprep.subr.mxu0 0.0
    %2889 = vmatpush1.msra.mxu0 %v370
    %2890 = vmatprep.subr.mxu0 0.0
    %2891 = vmatpush1.msra.mxu0 %v371
    %2892 = vmatprep.subr.mxu0 0.0
    %2893 = vmatpush1.msra.mxu0 %v372
    %2894 = vmatprep.subr.mxu0 0.0
    %2895 = vmatpush1.msra.mxu0 %v373
    %2896 = vmatprep.subr.mxu0 0.0
    %2897 = vmatpush1.msra.mxu0 %v374
    %2898 = vmatprep.subr.mxu0 0.0
    %2899 = vmatpush1.msra.mxu0 0.0
    %2900 = vmatprep.subr.mxu0 0.0
    %2901 = vmatpush1.msra.mxu0 0.0
    %2902 = vmatprep.subr.mxu0 0.0
    %2903 = vmatpush1.msra.mxu0 0.0
    %2904 = vmatprep.subr.mxu0 0.0
    %2905 = vmatpush1.msra.mxu0 0.0
    %2906 = vmatprep.subr.mxu0 0.0
    %2907 = vmatpush1.msra.mxu0 0.0
    %2908 = vmatprep.subr.mxu0 0.0
    %2909 = vmatpush1.msra.mxu0 0.0
    %2910 = vmatprep.subr.mxu0 0.0
    %2911 = vmatpush1.msra.mxu0 0.0
    %2912 = vmatprep.subr.mxu0 0.0
    %2913 = vmatpush1.msra.mxu0 0.0
    %2914 = vmatprep.subr.mxu0 0.0
    %2915 = vmatpush1.msra.mxu0 0.0
    %2916 = vmatprep.subr.mxu0 0.0
    %2917 = vmatpush1.msra.mxu0 0.0
    %2918 = vmatprep.subr.mxu0 0.0
    %2919 = vmatpush1.msra.mxu0 0.0
    %2920 = vmatprep.subr.mxu0 0.0
    %2921 = vmatpush1.msra.mxu0 0.0
    %2922 = vmatprep.subr.mxu0 0.0
    %2923 = vmatpush1.msra.mxu0 0.0
    %2924 = vmatprep.subr.mxu0 0.0
    %2925 = vmatpush1.msra.mxu0 0.0
    %2926 = vmatprep.subr.mxu0 0.0
    %2927 = vmatpush1.msra.mxu0 0.0
    %2928 = vmatprep.subr.mxu0 0.0
    %2929 = vmatpush1.msra.mxu0 0.0
    %2930 = vmatprep.mubr.f32.mxu0 0.0
    %2931 = vmatmul.mubr.f32.gmra.mrb[0].mxu0 %v2290
    %v2932 = vpop.f32.mrb[0].mxu0
    %v2933 = vadd.f32 0.0, %v2932
    %v2934 = vpop.f32.mrb[0].mxu0
    %2935 = vmatprep.mubr.f32.mxu0 0.0
    %2936 = vmatmul.mubr.f32.gmra.mrb[0].mxu0 %v2292
    %v2937 = vpop.f32.mrb[0].mxu0
    %v2938 = vadd.f32 0.0, %v2937
    %v2939 = vpop.f32.mrb[0].mxu0
    %2940 = vmatprep.mubr.f32.mxu0 0.0
    %2941 = vmatmul.mubr.f32.gmra.mrb[0].mxu0 %v2294
    %v2942 = vpop.f32.mrb[0].mxu0
    %v2943 = vadd.f32 0.0, %v2942
    %v2944 = vpop.f32.mrb[0].mxu0
    %2945 = vmatprep.mubr.f32.mxu0 0.0
    %2946 = vmatmul.mubr.f32.gmra.mrb[0].mxu0 %v2296
    %v2947 = vpop.f32.mrb[0].mxu0
    %v2948 = vadd.f32 0.0, %v2947
    %v2949 = vpop.f32.mrb[0].mxu0
    %2950 = vmatprep.mubr.f32.mxu0 0.0
    %2951 = vmatmul.mubr.f32.gmra.mrb[0].mxu0 %v2298
    %v2952 = vpop.f32.mrb[0].mxu0
    %v2953 = vadd.f32 0.0, %v2952
    %v2954 = vpop.f32.mrb[0].mxu0
    %2955 = vmatprep.mubr.f32.mxu0 0.0
    %2956 = vmatmul.mubr.f32.gmra.mrb[0].mxu0 %v2300
    %v2957 = vpop.f32.mrb[0].mxu0
    %v2958 = vadd.f32 0.0, %v2957
    %v2959 = vpop.f32.mrb[0].mxu0
    %2960 = vmatprep.mubr.f32.mxu0 0.0
    %2961 = vmatmul.mubr.f32.gmra.mrb[0].mxu0 %v2302
    %v2962 = vpop.f32.mrb[0].mxu0
    %v2963 = vadd.f32 0.0, %v2962
    %v2964 = vpop.f32.mrb[0].mxu0
    %2965 = vmatprep.mubr.f32.mxu0 0.0
    %2966 = vmatmul.mubr.f32.gmra.mrb[0].mxu0 %v2304
    %v2967 = vpop.f32.mrb[0].mxu0
    %v2968 = vadd.f32 0.0, %v2967
    %v2969 = vpop.f32.mrb[0].mxu0
    %2970 = vmatprep.mubr.f32.mxu0 0.0
    %2971 = vmatmul.mubr.f32.gmra.mrb[0].mxu0 %v2306
    %v2972 = vpop.f32.mrb[0].mxu0
    %v2973 = vadd.f32 0.0, %v2972
    %v2974 = vpop.f32.mrb[0].mxu0
    %2975 = vmatprep.mubr.f32.mxu0 0.0
    %2976 = vmatmul.mubr.f32.gmra.mrb[0].mxu0 %v2308
    %v2977 = vpop.f32.mrb[0].mxu0
    %v2978 = vadd.f32 0.0, %v2977
    %v2979 = vpop.f32.mrb[0].mxu0
    %2980 = vmatprep.mubr.f32.mxu0 0.0
    %2981 = vmatmul.mubr.f32.gmra.mrb[0].mxu0 %v2310
    %v2982 = vpop.f32.mrb[0].mxu0
    %v2983 = vadd.f32 0.0, %v2982
    %v2984 = vpop.f32.mrb[0].mxu0
    %2985 = vmatprep.mubr.f32.mxu0 0.0
    %2986 = vmatmul.mubr.f32.gmra.mrb[0].mxu0 %v2312
    %v2987 = vpop.f32.mrb[0].mxu0
    %v2988 = vadd.f32 0.0, %v2987
    %v2989 = vpop.f32.mrb[0].mxu0
    %2990 = vmatprep.mubr.f32.mxu0 0.0
    %2991 = vmatmul.mubr.f32.gmra.mrb[0].mxu0 %v2314
    %v2992 = vpop.f32.mrb[0].mxu0
    %v2993 = vadd.f32 0.0, %v2992
    %v2994 = vpop.f32.mrb[0].mxu0
    %2995 = vmatprep.mubr.f32.mxu0 0.0
    %2996 = vmatmul.mubr.f32.gmra.mrb[0].mxu0 %v2316
    %v2997 = vpop.f32.mrb[0].mxu0
    %v2998 = vadd.f32 0.0, %v2997
    %v2999 = vpop.f32.mrb[0].mxu0
    %3000 = vmatprep.mubr.f32.mxu0 0.0
    %3001 = vmatmul.mubr.f32.gmra.mrb[0].mxu0 %v2318
    %v3002 = vpop.f32.mrb[0].mxu0
    %v3003 = vadd.f32 0.0, %v3002
    %v3004 = vpop.f32.mrb[0].mxu0
    %3005 = vmatprep.mubr.f32.mxu0 0.0
    %3006 = vmatmul.mubr.f32.gmra.mrb[0].mxu0 %v2320
    %v3007 = vpop.f32.mrb[0].mxu0
    %v3008 = vadd.f32 0.0, %v3007
    %v3009 = vpop.f32.mrb[0].mxu0
    %3010 = vdwg.mxu0
    %3011 = vmatprep.subr.mxu0 0.0
    %3012 = vmatpush1.msra.mxu0 %v375
    %3013 = vmatprep.subr.mxu0 0.0
    %3014 = vmatpush1.msra.mxu0 %v376
    %3015 = vmatprep.subr.mxu0 0.0
    %3016 = vmatpush1.msra.mxu0 %v377
    %3017 = vmatprep.subr.mxu0 0.0
    %3018 = vmatpush1.msra.mxu0 %v378
    %3019 = vmatprep.subr.mxu0 0.0
    %3020 = vmatpush1.msra.mxu0 %v379
    %3021 = vmatprep.subr.mxu0 0.0
    %3022 = vmatpush1.msra.mxu0 %v380
    %3023 = vmatprep.subr.mxu0 0.0
    %3024 = vmatpush1.msra.mxu0 %v381
    %3025 = vmatprep.subr.mxu0 0.0
    %3026 = vmatpush1.msra.mxu0 %v382
    %3027 = vmatprep.subr.mxu0 0.0
    %3028 = vmatpush1.msra.mxu0 %v383
    %3029 = vmatprep.subr.mxu0 0.0
    %3030 = vmatpush1.msra.mxu0 %v384
    %3031 = vmatprep.subr.mxu0 0.0
    %3032 = vmatpush1.msra.mxu0 %v385
    %3033 = vmatprep.subr.mxu0 0.0
    %3034 = vmatpush1.msra.mxu0 %v386
    %3035 = vmatprep.subr.mxu0 0.0
    %3036 = vmatpush1.msra.mxu0 %v387
    %3037 = vmatprep.subr.mxu0 0.0
    %3038 = vmatpush1.msra.mxu0 %v388
    %3039 = vmatprep.subr.mxu0 0.0
    %3040 = vmatpush1.msra.mxu0 %v389
    %3041 = vmatprep.subr.mxu0 0.0
    %3042 = vmatpush1.msra.mxu0 %v390
    %3043 = vmatprep.subr.mxu0 0.0
    %3044 = vmatpush1.msra.mxu0 0.0
    %3045 = vmatprep.subr.mxu0 0.0
    %3046 = vmatpush1.msra.mxu0 0.0
    %3047 = vmatprep.subr.mxu0 0.0
    %3048 = vmatpush1.msra.mxu0 0.0
    %3049 = vmatprep.subr.mxu0 0.0
    %3050 = vmatpush1.msra.mxu0 0.0
    %3051 = vmatprep.subr.mxu0 0.0
    %3052 = vmatpush1.msra.mxu0 0.0
    %3053 = vmatprep.subr.mxu0 0.0
    %3054 = vmatpush1.msra.mxu0 0.0
    %3055 = vmatprep.subr.mxu0 0.0
    %3056 = vmatpush1.msra.mxu0 0.0
    %3057 = vmatprep.subr.mxu0 0.0
    %3058 = vmatpush1.msra.mxu0 0.0
    %3059 = vmatprep.subr.mxu0 0.0
    %3060 = vmatpush1.msra.mxu0 0.0
    %3061 = vmatprep.subr.mxu0 0.0
    %3062 = vmatpush1.msra.mxu0 0.0
    %3063 = vmatprep.subr.mxu0 0.0
    %3064 = vmatpush1.msra.mxu0 0.0
    %3065 = vmatprep.subr.mxu0 0.0
    %3066 = vmatpush1.msra.mxu0 0.0
    %3067 = vmatprep.subr.mxu0 0.0
    %3068 = vmatpush1.msra.mxu0 0.0
    %3069 = vmatprep.subr.mxu0 0.0
    %3070 = vmatpush1.msra.mxu0 0.0
    %3071 = vmatprep.subr.mxu0 0.0
    %3072 = vmatpush1.msra.mxu0 0.0
    %3073 = vmatprep.subr.mxu0 0.0
    %3074 = vmatpush1.msra.mxu0 0.0
    %3075 = vmatprep.mubr.f32.mxu0 0.0
    %3076 = vmatmul.mubr.f32.gmra.mrb[0].mxu0 %v2322
    %v3077 = vpop.f32.mrb[0].mxu0
    %v3078 = vadd.f32 0.0, %v3077
    %v3079 = vpop.f32.mrb[0].mxu0
    %3080 = vmatprep.mubr.f32.mxu0 0.0
    %3081 = vmatmul.mubr.f32.gmra.mrb[0].mxu0 %v2324
    %v3082 = vpop.f32.mrb[0].mxu0
    %v3083 = vadd.f32 0.0, %v3082
    %v3084 = vpop.f32.mrb[0].mxu0
    %3085 = vmatprep.mubr.f32.mxu0 0.0
    %3086 = vmatmul.mubr.f32.gmra.mrb[0].mxu0 %v2326
    %v3087 = vpop.f32.mrb[0].mxu0
    %v3088 = vadd.f32 0.0, %v3087
    %v3089 = vpop.f32.mrb[0].mxu0
    %3090 = vmatprep.mubr.f32.mxu0 0.0
    %3091 = vmatmul.mubr.f32.gmra.mrb[0].mxu0 %v2328
    %v3092 = vpop.f32.mrb[0].mxu0
    %v3093 = vadd.f32 0.0, %v3092
    %v3094 = vpop.f32.mrb[0].mxu0
    %3095 = vmatprep.mubr.f32.mxu0 0.0
    %3096 = vmatmul.mubr.f32.gmra.mrb[0].mxu0 %v2330
    %v3097 = vpop.f32.mrb[0].mxu0
    %v3098 = vadd.f32 0.0, %v3097
    %v3099 = vpop.f32.mrb[0].mxu0
    %3100 = vmatprep.mubr.f32.mxu0 0.0
    %3101 = vmatmul.mubr.f32.gmra.mrb[0].mxu0 %v2332
    %v3102 = vpop.f32.mrb[0].mxu0
    %v3103 = vadd.f32 0.0, %v3102
    %v3104 = vpop.f32.mrb[0].mxu0
    %3105 = vmatprep.mubr.f32.mxu0 0.0
    %3106 = vmatmul.mubr.f32.gmra.mrb[0].mxu0 %v2334
    %v3107 = vpop.f32.mrb[0].mxu0
    %v3108 = vadd.f32 0.0, %v3107
    %v3109 = vpop.f32.mrb[0].mxu0
    %3110 = vmatprep.mubr.f32.mxu0 0.0
    %3111 = vmatmul.mubr.f32.gmra.mrb[0].mxu0 %v2336
    %v3112 = vpop.f32.mrb[0].mxu0
    %v3113 = vadd.f32 0.0, %v3112
    %v3114 = vpop.f32.mrb[0].mxu0
    %3115 = vmatprep.mubr.f32.mxu0 0.0
    %3116 = vmatmul.mubr.f32.gmra.mrb[0].mxu0 %v2338
    %v3117 = vpop.f32.mrb[0].mxu0
    %v3118 = vadd.f32 0.0, %v3117
    %v3119 = vpop.f32.mrb[0].mxu0
    %3120 = vmatprep.mubr.f32.mxu0 0.0
    %3121 = vmatmul.mubr.f32.gmra.mrb[0].mxu0 %v2340
    %v3122 = vpop.f32.mrb[0].mxu0
    %v3123 = vadd.f32 0.0, %v3122
    %v3124 = vpop.f32.mrb[0].mxu0
    %3125 = vmatprep.mubr.f32.mxu0 0.0
    %3126 = vmatmul.mubr.f32.gmra.mrb[0].mxu0 %v2342
    %v3127 = vpop.f32.mrb[0].mxu0
    %v3128 = vadd.f32 0.0, %v3127
    %v3129 = vpop.f32.mrb[0].mxu0
    %3130 = vmatprep.mubr.f32.mxu0 0.0
    %3131 = vmatmul.mubr.f32.gmra.mrb[0].mxu0 %v2344
    %v3132 = vpop.f32.mrb[0].mxu0
    %v3133 = vadd.f32 0.0, %v3132
    %v3134 = vpop.f32.mrb[0].mxu0
    %3135 = vmatprep.mubr.f32.mxu0 0.0
    %3136 = vmatmul.mubr.f32.gmra.mrb[0].mxu0 %v2346
    %v3137 = vpop.f32.mrb[0].mxu0
    %v3138 = vadd.f32 0.0, %v3137
    %v3139 = vpop.f32.mrb[0].mxu0
    %3140 = vmatprep.mubr.f32.mxu0 0.0
    %3141 = vmatmul.mubr.f32.gmra.mrb[0].mxu0 %v2348
    %v3142 = vpop.f32.mrb[0].mxu0
    %v3143 = vadd.f32 0.0, %v3142
    %v3144 = vpop.f32.mrb[0].mxu0
    %3145 = vmatprep.mubr.f32.mxu0 0.0
    %3146 = vmatmul.mubr.f32.gmra.mrb[0].mxu0 %v2350
    %v3147 = vpop.f32.mrb[0].mxu0
    %v3148 = vadd.f32 0.0, %v3147
    %v3149 = vpop.f32.mrb[0].mxu0
    %3150 = vmatprep.mubr.f32.mxu0 0.0
    %3151 = vmatmul.mubr.f32.gmra.mrb[0].mxu0 %v2352
    %v3152 = vpop.f32.mrb[0].mxu0
    %v3153 = vadd.f32 0.0, %v3152
    %v3154 = vpop.f32.mrb[0].mxu0
    %3155 = vdwg.mxu0
    %3156 = vmatprep.subr.mxu0 0.0
    %3157 = vmatpush1.msra.mxu0 %v391
    %3158 = vmatprep.subr.mxu0 0.0
    %3159 = vmatpush1.msra.mxu0 %v392
    %3160 = vmatprep.subr.mxu0 0.0
    %3161 = vmatpush1.msra.mxu0 %v393
    %3162 = vmatprep.subr.mxu0 0.0
    %3163 = vmatpush1.msra.mxu0 %v394
    %3164 = vmatprep.subr.mxu0 0.0
    %3165 = vmatpush1.msra.mxu0 %v395
    %3166 = vmatprep.subr.mxu0 0.0
    %3167 = vmatpush1.msra.mxu0 %v396
    %3168 = vmatprep.subr.mxu0 0.0
    %3169 = vmatpush1.msra.mxu0 %v397
    %3170 = vmatprep.subr.mxu0 0.0
    %3171 = vmatpush1.msra.mxu0 %v398
    %3172 = vmatprep.subr.mxu0 0.0
    %3173 = vmatpush1.msra.mxu0 %v399
    %3174 = vmatprep.subr.mxu0 0.0
    %3175 = vmatpush1.msra.mxu0 %v400
    %3176 = vmatprep.subr.mxu0 0.0
    %3177 = vmatpush1.msra.mxu0 %v401
    %3178 = vmatprep.subr.mxu0 0.0
    %3179 = vmatpush1.msra.mxu0 %v402
    %3180 = vmatprep.subr.mxu0 0.0
    %3181 = vmatpush1.msra.mxu0 %v403
    %3182 = vmatprep.subr.mxu0 0.0
    %3183 = vmatpush1.msra.mxu0 %v404
    %3184 = vmatprep.subr.mxu0 0.0
    %3185 = vmatpush1.msra.mxu0 %v405
    %3186 = vmatprep.subr.mxu0 0.0
    %3187 = vmatpush1.msra.mxu0 %v406
    %3188 = vmatprep.subr.mxu0 0.0
    %3189 = vmatpush1.msra.mxu0 0.0
    %3190 = vmatprep.subr.mxu0 0.0
    %3191 = vmatpush1.msra.mxu0 0.0
    %3192 = vmatprep.subr.mxu0 0.0
    %3193 = vmatpush1.msra.mxu0 0.0
    %3194 = vmatprep.subr.mxu0 0.0
    %3195 = vmatpush1.msra.mxu0 0.0
    %3196 = vmatprep.subr.mxu0 0.0
    %3197 = vmatpush1.msra.mxu0 0.0
    %3198 = vmatprep.subr.mxu0 0.0
    %3199 = vmatpush1.msra.mxu0 0.0
    %3200 = vmatprep.subr.mxu0 0.0
    %3201 = vmatpush1.msra.mxu0 0.0
    %3202 = vmatprep.subr.mxu0 0.0
    %3203 = vmatpush1.msra.mxu0 0.0
    %3204 = vmatprep.subr.mxu0 0.0
    %3205 = vmatpush1.msra.mxu0 0.0
    %3206 = vmatprep.subr.mxu0 0.0
    %3207 = vmatpush1.msra.mxu0 0.0
    %3208 = vmatprep.subr.mxu0 0.0
    %3209 = vmatpush1.msra.mxu0 0.0
    %3210 = vmatprep.subr.mxu0 0.0
    %3211 = vmatpush1.msra.mxu0 0.0
    %3212 = vmatprep.subr.mxu0 0.0
    %3213 = vmatpush1.msra.mxu0 0.0
    %3214 = vmatprep.subr.mxu0 0.0
    %3215 = vmatpush1.msra.mxu0 0.0
    %3216 = vmatprep.subr.mxu0 0.0
    %3217 = vmatpush1.msra.mxu0 0.0
    %3218 = vmatprep.subr.mxu0 0.0
    %3219 = vmatpush1.msra.mxu0 0.0
    %3220 = vmatprep.mubr.f32.mxu0 0.0
    %3221 = vmatmul.mubr.f32.gmra.mrb[0].mxu0 %v2354
    %v3222 = vpop.f32.mrb[0].mxu0
    %v3223 = vadd.f32 0.0, %v3222
    %v3224 = vpop.f32.mrb[0].mxu0
    %3225 = vmatprep.mubr.f32.mxu0 0.0
    %3226 = vmatmul.mubr.f32.gmra.mrb[0].mxu0 %v2356
    %v3227 = vpop.f32.mrb[0].mxu0
    %v3228 = vadd.f32 0.0, %v3227
    %v3229 = vpop.f32.mrb[0].mxu0
    %3230 = vmatprep.mubr.f32.mxu0 0.0
    %3231 = vmatmul.mubr.f32.gmra.mrb[0].mxu0 %v2358
    %v3232 = vpop.f32.mrb[0].mxu0
    %v3233 = vadd.f32 0.0, %v3232
    %v3234 = vpop.f32.mrb[0].mxu0
    %3235 = vmatprep.mubr.f32.mxu0 0.0
    %3236 = vmatmul.mubr.f32.gmra.mrb[0].mxu0 %v2360
    %v3237 = vpop.f32.mrb[0].mxu0
    %v3238 = vadd.f32 0.0, %v3237
    %v3239 = vpop.f32.mrb[0].mxu0
    %3240 = vmatprep.mubr.f32.mxu0 0.0
    %3241 = vmatmul.mubr.f32.gmra.mrb[0].mxu0 %v2362
    %v3242 = vpop.f32.mrb[0].mxu0
    %v3243 = vadd.f32 0.0, %v3242
    %v3244 = vpop.f32.mrb[0].mxu0
    %3245 = vmatprep.mubr.f32.mxu0 0.0
    %3246 = vmatmul.mubr.f32.gmra.mrb[0].mxu0 %v2364
    %v3247 = vpop.f32.mrb[0].mxu0
    %v3248 = vadd.f32 0.0, %v3247
    %v3249 = vpop.f32.mrb[0].mxu0
    %3250 = vmatprep.mubr.f32.mxu0 0.0
    %3251 = vmatmul.mubr.f32.gmra.mrb[0].mxu0 %v2366
    %v3252 = vpop.f32.mrb[0].mxu0
    %v3253 = vadd.f32 0.0, %v3252
    %v3254 = vpop.f32.mrb[0].mxu0
    %3255 = vmatprep.mubr.f32.mxu0 0.0
    %3256 = vmatmul.mubr.f32.gmra.mrb[0].mxu0 %v2368
    %v3257 = vpop.f32.mrb[0].mxu0
    %v3258 = vadd.f32 0.0, %v3257
    %v3259 = vpop.f32.mrb[0].mxu0
    %3260 = vmatprep.mubr.f32.mxu0 0.0
    %3261 = vmatmul.mubr.f32.gmra.mrb[0].mxu0 %v2370
    %v3262 = vpop.f32.mrb[0].mxu0
    %v3263 = vadd.f32 0.0, %v3262
    %v3264 = vpop.f32.mrb[0].mxu0
    %3265 = vmatprep.mubr.f32.mxu0 0.0
    %3266 = vmatmul.mubr.f32.gmra.mrb[0].mxu0 %v2372
    %v3267 = vpop.f32.mrb[0].mxu0
    %v3268 = vadd.f32 0.0, %v3267
    %v3269 = vpop.f32.mrb[0].mxu0
    %3270 = vmatprep.mubr.f32.mxu0 0.0
    %3271 = vmatmul.mubr.f32.gmra.mrb[0].mxu0 %v2374
    %v3272 = vpop.f32.mrb[0].mxu0
    %v3273 = vadd.f32 0.0, %v3272
    %v3274 = vpop.f32.mrb[0].mxu0
    %3275 = vmatprep.mubr.f32.mxu0 0.0
    %3276 = vmatmul.mubr.f32.gmra.mrb[0].mxu0 %v2376
    %v3277 = vpop.f32.mrb[0].mxu0
    %v3278 = vadd.f32 0.0, %v3277
    %v3279 = vpop.f32.mrb[0].mxu0
    %3280 = vmatprep.mubr.f32.mxu0 0.0
    %3281 = vmatmul.mubr.f32.gmra.mrb[0].mxu0 %v2378
    %v3282 = vpop.f32.mrb[0].mxu0
    %v3283 = vadd.f32 0.0, %v3282
    %v3284 = vpop.f32.mrb[0].mxu0
    %3285 = vmatprep.mubr.f32.mxu0 0.0
    %3286 = vmatmul.mubr.f32.gmra.mrb[0].mxu0 %v2380
    %v3287 = vpop.f32.mrb[0].mxu0
    %v3288 = vadd.f32 0.0, %v3287
    %v3289 = vpop.f32.mrb[0].mxu0
    %3290 = vmatprep.mubr.f32.mxu0 0.0
    %3291 = vmatmul.mubr.f32.gmra.mrb[0].mxu0 %v2382
    %v3292 = vpop.f32.mrb[0].mxu0
    %v3293 = vadd.f32 0.0, %v3292
    %v3294 = vpop.f32.mrb[0].mxu0
    %3295 = vmatprep.mubr.f32.mxu0 0.0
    %3296 = vmatmul.mubr.f32.gmra.mrb[0].mxu0 %v2384
    %v3297 = vpop.f32.mrb[0].mxu0
    %v3298 = vadd.f32 0.0, %v3297
    %v3299 = vpop.f32.mrb[0].mxu0
    %3300 = vdwg.mxu0
    %3301 = vmatprep.subr.mxu0 0.0
    %3302 = vmatpush1.msra.mxu0 %v407
    %3303 = vmatprep.subr.mxu0 0.0
    %3304 = vmatpush1.msra.mxu0 %v408
    %3305 = vmatprep.subr.mxu0 0.0
    %3306 = vmatpush1.msra.mxu0 %v409
    %3307 = vmatprep.subr.mxu0 0.0
    %3308 = vmatpush1.msra.mxu0 %v410
    %3309 = vmatprep.subr.mxu0 0.0
    %3310 = vmatpush1.msra.mxu0 %v411
    %3311 = vmatprep.subr.mxu0 0.0
    %3312 = vmatpush1.msra.mxu0 %v412
    %3313 = vmatprep.subr.mxu0 0.0
    %3314 = vmatpush1.msra.mxu0 %v413
    %3315 = vmatprep.subr.mxu0 0.0
    %3316 = vmatpush1.msra.mxu0 %v414
    %3317 = vmatprep.subr.mxu0 0.0
    %3318 = vmatpush1.msra.mxu0 %v415
    %3319 = vmatprep.subr.mxu0 0.0
    %3320 = vmatpush1.msra.mxu0 %v416
    %3321 = vmatprep.subr.mxu0 0.0
    %3322 = vmatpush1.msra.mxu0 %v417
    %3323 = vmatprep.subr.mxu0 0.0
    %3324 = vmatpush1.msra.mxu0 %v418
    %3325 = vmatprep.subr.mxu0 0.0
    %3326 = vmatpush1.msra.mxu0 %v419
    %3327 = vmatprep.subr.mxu0 0.0
    %3328 = vmatpush1.msra.mxu0 %v420
    %3329 = vmatprep.subr.mxu0 0.0
    %3330 = vmatpush1.msra.mxu0 %v421
    %3331 = vmatprep.subr.mxu0 0.0
    %3332 = vmatpush1.msra.mxu0 %v422
    %3333 = vmatprep.subr.mxu0 0.0
    %3334 = vmatpush1.msra.mxu0 0.0
    %3335 = vmatprep.subr.mxu0 0.0
    %3336 = vmatpush1.msra.mxu0 0.0
    %3337 = vmatprep.subr.mxu0 0.0
    %3338 = vmatpush1.msra.mxu0 0.0
    %3339 = vmatprep.subr.mxu0 0.0
    %3340 = vmatpush1.msra.mxu0 0.0
    %3341 = vmatprep.subr.mxu0 0.0
    %3342 = vmatpush1.msra.mxu0 0.0
    %3343 = vmatprep.subr.mxu0 0.0
    %3344 = vmatpush1.msra.mxu0 0.0
    %3345 = vmatprep.subr.mxu0 0.0
    %3346 = vmatpush1.msra.mxu0 0.0
    %3347 = vmatprep.subr.mxu0 0.0
    %3348 = vmatpush1.msra.mxu0 0.0
    %3349 = vmatprep.subr.mxu0 0.0
    %3350 = vmatpush1.msra.mxu0 0.0
    %3351 = vmatprep.subr.mxu0 0.0
    %3352 = vmatpush1.msra.mxu0 0.0
    %3353 = vmatprep.subr.mxu0 0.0
    %3354 = vmatpush1.msra.mxu0 0.0
    %3355 = vmatprep.subr.mxu0 0.0
    %3356 = vmatpush1.msra.mxu0 0.0
    %3357 = vmatprep.subr.mxu0 0.0
    %3358 = vmatpush1.msra.mxu0 0.0
    %3359 = vmatprep.subr.mxu0 0.0
    %3360 = vmatpush1.msra.mxu0 0.0
    %3361 = vmatprep.subr.mxu0 0.0
    %3362 = vmatpush1.msra.mxu0 0.0
    %3363 = vmatprep.subr.mxu0 0.0
    %3364 = vmatpush1.msra.mxu0 0.0
    %3365 = vmatprep.mubr.f32.mxu0 0.0
    %3366 = vmatmul.mubr.f32.gmra.mrb[0].mxu0 %v2386
    %v3367 = vpop.f32.mrb[0].mxu0
    %v3368 = vadd.f32 0.0, %v3367
    %v3369 = vpop.f32.mrb[0].mxu0
    %3370 = vmatprep.mubr.f32.mxu0 0.0
    %3371 = vmatmul.mubr.f32.gmra.mrb[0].mxu0 %v2388
    %v3372 = vpop.f32.mrb[0].mxu0
    %v3373 = vadd.f32 0.0, %v3372
    %v3374 = vpop.f32.mrb[0].mxu0
    %3375 = vmatprep.mubr.f32.mxu0 0.0
    %3376 = vmatmul.mubr.f32.gmra.mrb[0].mxu0 %v2390
    %v3377 = vpop.f32.mrb[0].mxu0
    %v3378 = vadd.f32 0.0, %v3377
    %v3379 = vpop.f32.mrb[0].mxu0
    %3380 = vmatprep.mubr.f32.mxu0 0.0
    %3381 = vmatmul.mubr.f32.gmra.mrb[0].mxu0 %v2392
    %v3382 = vpop.f32.mrb[0].mxu0
    %v3383 = vadd.f32 0.0, %v3382
    %v3384 = vpop.f32.mrb[0].mxu0
    %3385 = vmatprep.mubr.f32.mxu0 0.0
    %3386 = vmatmul.mubr.f32.gmra.mrb[0].mxu0 %v2394
    %v3387 = vpop.f32.mrb[0].mxu0
    %v3388 = vadd.f32 0.0, %v3387
    %v3389 = vpop.f32.mrb[0].mxu0
    %3390 = vmatprep.mubr.f32.mxu0 0.0
    %3391 = vmatmul.mubr.f32.gmra.mrb[0].mxu0 %v2396
    %v3392 = vpop.f32.mrb[0].mxu0
    %v3393 = vadd.f32 0.0, %v3392
    %v3394 = vpop.f32.mrb[0].mxu0
    %3395 = vmatprep.mubr.f32.mxu0 0.0
    %3396 = vmatmul.mubr.f32.gmra.mrb[0].mxu0 %v2398
    %v3397 = vpop.f32.mrb[0].mxu0
    %v3398 = vadd.f32 0.0, %v3397
    %v3399 = vpop.f32.mrb[0].mxu0
    %3400 = vmatprep.mubr.f32.mxu0 0.0
    %3401 = vmatmul.mubr.f32.gmra.mrb[0].mxu0 %v2400
    %v3402 = vpop.f32.mrb[0].mxu0
    %v3403 = vadd.f32 0.0, %v3402
    %v3404 = vpop.f32.mrb[0].mxu0
    %3405 = vmatprep.mubr.f32.mxu0 0.0
    %3406 = vmatmul.mubr.f32.gmra.mrb[0].mxu0 %v2402
    %v3407 = vpop.f32.mrb[0].mxu0
    %v3408 = vadd.f32 0.0, %v3407
    %v3409 = vpop.f32.mrb[0].mxu0
    %3410 = vmatprep.mubr.f32.mxu0 0.0
    %3411 = vmatmul.mubr.f32.gmra.mrb[0].mxu0 %v2404
    %v3412 = vpop.f32.mrb[0].mxu0
    %v3413 = vadd.f32 0.0, %v3412
    %v3414 = vpop.f32.mrb[0].mxu0
    %3415 = vmatprep.mubr.f32.mxu0 0.0
    %3416 = vmatmul.mubr.f32.gmra.mrb[0].mxu0 %v2406
    %v3417 = vpop.f32.mrb[0].mxu0
    %v3418 = vadd.f32 0.0, %v3417
    %v3419 = vpop.f32.mrb[0].mxu0
    %3420 = vmatprep.mubr.f32.mxu0 0.0
    %3421 = vmatmul.mubr.f32.gmra.mrb[0].mxu0 %v2408
    %v3422 = vpop.f32.mrb[0].mxu0
    %v3423 = vadd.f32 0.0, %v3422
    %v3424 = vpop.f32.mrb[0].mxu0
    %3425 = vmatprep.mubr.f32.mxu0 0.0
    %3426 = vmatmul.mubr.f32.gmra.mrb[0].mxu0 %v2410
    %v3427 = vpop.f32.mrb[0].mxu0
    %v3428 = vadd.f32 0.0, %v3427
    %v3429 = vpop.f32.mrb[0].mxu0
    %3430 = vmatprep.mubr.f32.mxu0 0.0
    %3431 = vmatmul.mubr.f32.gmra.mrb[0].mxu0 %v2412
    %v3432 = vpop.f32.mrb[0].mxu0
    %v3433 = vadd.f32 0.0, %v3432
    %v3434 = vpop.f32.mrb[0].mxu0
    %3435 = vmatprep.mubr.f32.mxu0 0.0
    %3436 = vmatmul.mubr.f32.gmra.mrb[0].mxu0 %v2414
    %v3437 = vpop.f32.mrb[0].mxu0
    %v3438 = vadd.f32 0.0, %v3437
    %v3439 = vpop.f32.mrb[0].mxu0
    %3440 = vmatprep.mubr.f32.mxu0 0.0
    %3441 = vmatmul.mubr.f32.gmra.mrb[0].mxu0 %v2416
    %v3442 = vpop.f32.mrb[0].mxu0
    %v3443 = vadd.f32 0.0, %v3442
    %v3444 = vpop.f32.mrb[0].mxu0
    %3445 = vdwg.mxu0
    %v3446 = vld [vmem:[#allocation4] sm:$0xff]
    %v3447 = vld [vmem:[#allocation4 + $0x8] sm:$0xff]
    %v3448 = vld [vmem:[#allocation4 + $0x10] sm:$0xff]
    %v3449 = vld [vmem:[#allocation4 + $0x18] sm:$0xff]
    %v3450 = vld [vmem:[#allocation4 + $0x20] sm:$0xff]
    %v3451 = vld [vmem:[#allocation4 + $0x28] sm:$0xff]
    %v3452 = vld [vmem:[#allocation4 + $0x30] sm:$0xff]
    %v3453 = vld [vmem:[#allocation4 + $0x38] sm:$0xff]
    %v3454 = vld [vmem:[#allocation4 + $0x40] sm:$0xff]
    %v3455 = vld [vmem:[#allocation4 + $0x48] sm:$0xff]
    %v3456 = vld [vmem:[#allocation4 + $0x50] sm:$0xff]
    %v3457 = vld [vmem:[#allocation4 + $0x58] sm:$0xff]
    %v3458 = vld [vmem:[#allocation4 + $0x60] sm:$0xff]
    %v3459 = vld [vmem:[#allocation4 + $0x68] sm:$0xff]
    %v3460 = vld [vmem:[#allocation4 + $0x70] sm:$0xff]
    %v3461 = vld [vmem:[#allocation4 + $0x78] sm:$0xff]
    %3463 = vset.pattern.permute.xlu0 0
    %3464 = vperm.xlu0 %3463, %v1778
    %v3465 = vpop.permute.xlu0 %3464
    %3468 = vset.pattern.permute.xlu0 0
    %3469 = vperm.xlu0 %3468, %v1780
    %v3470 = vpop.permute.xlu0 %3469
    %3473 = vset.pattern.permute.xlu0 0
    %3474 = vperm.xlu0 %3473, %v1782
    %v3475 = vpop.permute.xlu0 %3474
    %3478 = vset.pattern.permute.xlu0 0
    %3479 = vperm.xlu0 %3478, %v1784
    %v3480 = vpop.permute.xlu0 %3479
    %3483 = vset.pattern.permute.xlu0 0
    %3484 = vperm.xlu0 %3483, %v1786
    %v3485 = vpop.permute.xlu0 %3484
    %3488 = vset.pattern.permute.xlu0 0
    %3489 = vperm.xlu0 %3488, %v1788
    %v3490 = vpop.permute.xlu0 %3489
    %3493 = vset.pattern.permute.xlu0 0
    %3494 = vperm.xlu0 %3493, %v1790
    %v3495 = vpop.permute.xlu0 %3494
    %3498 = vset.pattern.permute.xlu0 0
    %3499 = vperm.xlu0 %3498, %v1792
    %v3500 = vpop.permute.xlu0 %3499
    %3503 = vset.pattern.permute.xlu0 0
    %3504 = vperm.xlu0 %3503, %v1794
    %v3505 = vpop.permute.xlu0 %3504
    %3508 = vset.pattern.permute.xlu0 0
    %3509 = vperm.xlu0 %3508, %v1796
    %v3510 = vpop.permute.xlu0 %3509
    %3513 = vset.pattern.permute.xlu0 0
    %3514 = vperm.xlu0 %3513, %v1798
    %v3515 = vpop.permute.xlu0 %3514
    %3518 = vset.pattern.permute.xlu0 0
    %3519 = vperm.xlu0 %3518, %v1800
    %v3520 = vpop.permute.xlu0 %3519
    %3523 = vset.pattern.permute.xlu0 0
    %3524 = vperm.xlu0 %3523, %v1802
    %v3525 = vpop.permute.xlu0 %3524
    %3528 = vset.pattern.permute.xlu0 0
    %3529 = vperm.xlu0 %3528, %v1804
    %v3530 = vpop.permute.xlu0 %3529
    %3533 = vset.pattern.permute.xlu0 0
    %3534 = vperm.xlu0 %3533, %v1806
    %v3535 = vpop.permute.xlu0 %3534
    %3538 = vset.pattern.permute.xlu0 0
    %3539 = vperm.xlu0 %3538, %v1808
    %v3540 = vpop.permute.xlu0 %3539
    %v3542 = vmul.f32 %v3465, %v3446
    %v3543 = vmul.f32 %v3470, %v3447
    %v3544 = vmul.f32 %v3475, %v3448
    %v3545 = vmul.f32 %v3480, %v3449
    %v3546 = vmul.f32 %v3485, %v3450
    %v3547 = vmul.f32 %v3490, %v3451
    %v3548 = vmul.f32 %v3495, %v3452
    %v3549 = vmul.f32 %v3500, %v3453
    %v3550 = vmul.f32 %v3505, %v3454
    %v3551 = vmul.f32 %v3510, %v3455
    %v3552 = vmul.f32 %v3515, %v3456
    %v3553 = vmul.f32 %v3520, %v3457
    %v3554 = vmul.f32 %v3525, %v3458
    %v3555 = vmul.f32 %v3530, %v3459
    %v3556 = vmul.f32 %v3535, %v3460
    %v3557 = vmul.f32 %v3540, %v3461
    %v3558 = vadd.f32 %v3542, %v2933
    %v3559 = vadd.f32 %v3543, %v2938
    %v3560 = vadd.f32 %v3544, %v2943
    %v3561 = vadd.f32 %v3545, %v2948
    %v3562 = vadd.f32 %v3546, %v2953
    %v3563 = vadd.f32 %v3547, %v2958
    %v3564 = vadd.f32 %v3548, %v2963
    %v3565 = vadd.f32 %v3549, %v2968
    %v3566 = vadd.f32 %v3550, %v2973
    %v3567 = vadd.f32 %v3551, %v2978
    %v3568 = vadd.f32 %v3552, %v2983
    %v3569 = vadd.f32 %v3553, %v2988
    %v3570 = vadd.f32 %v3554, %v2993
    %v3571 = vadd.f32 %v3555, %v2998
    %v3572 = vadd.f32 %v3556, %v3003
    %v3573 = vadd.f32 %v3557, %v3008
    %3574 = vst.msk [vmem:[#allocation4] sm:$0xff] %vm423, %v3558
    %3575 = vst.msk [vmem:[#allocation4 + $0x8] sm:$0xff] %vm423, %v3559
    %3576 = vst.msk [vmem:[#allocation4 + $0x10] sm:$0xff] %vm423, %v3560
    %3577 = vst.msk [vmem:[#allocation4 + $0x18] sm:$0xff] %vm423, %v3561
    %3578 = vst.msk [vmem:[#allocation4 + $0x20] sm:$0xff] %vm423, %v3562
    %3579 = vst.msk [vmem:[#allocation4 + $0x28] sm:$0xff] %vm423, %v3563
    %3580 = vst.msk [vmem:[#allocation4 + $0x30] sm:$0xff] %vm423, %v3564
    %3581 = vst.msk [vmem:[#allocation4 + $0x38] sm:$0xff] %vm423, %v3565
    %3582 = vst.msk [vmem:[#allocation4 + $0x40] sm:$0xff] %vm423, %v3566
    %3583 = vst.msk [vmem:[#allocation4 + $0x48] sm:$0xff] %vm423, %v3567
    %3584 = vst.msk [vmem:[#allocation4 + $0x50] sm:$0xff] %vm423, %v3568
    %3585 = vst.msk [vmem:[#allocation4 + $0x58] sm:$0xff] %vm423, %v3569
    %3586 = vst.msk [vmem:[#allocation4 + $0x60] sm:$0xff] %vm423, %v3570
    %3587 = vst.msk [vmem:[#allocation4 + $0x68] sm:$0xff] %vm423, %v3571
    %3588 = vst.msk [vmem:[#allocation4 + $0x70] sm:$0xff] %vm423, %v3572
    %3589 = vst.msk [vmem:[#allocation4 + $0x78] sm:$0xff] %vm423, %v3573
    %v3590 = vld [vmem:[#allocation4] sm:$0xff]
    %v3591 = vld [vmem:[#allocation4 + $0x8] sm:$0xff]
    %v3592 = vld [vmem:[#allocation4 + $0x10] sm:$0xff]
    %v3593 = vld [vmem:[#allocation4 + $0x18] sm:$0xff]
    %v3594 = vld [vmem:[#allocation4 + $0x20] sm:$0xff]
    %v3595 = vld [vmem:[#allocation4 + $0x28] sm:$0xff]
    %v3596 = vld [vmem:[#allocation4 + $0x30] sm:$0xff]
    %v3597 = vld [vmem:[#allocation4 + $0x38] sm:$0xff]
    %v3598 = vld [vmem:[#allocation4 + $0x40] sm:$0xff]
    %v3599 = vld [vmem:[#allocation4 + $0x48] sm:$0xff]
    %v3600 = vld [vmem:[#allocation4 + $0x50] sm:$0xff]
    %v3601 = vld [vmem:[#allocation4 + $0x58] sm:$0xff]
    %v3602 = vld [vmem:[#allocation4 + $0x60] sm:$0xff]
    %v3603 = vld [vmem:[#allocation4 + $0x68] sm:$0xff]
    %v3604 = vld [vmem:[#allocation4 + $0x70] sm:$0xff]
    %v3605 = vld [vmem:[#allocation4 + $0x78] sm:$0xff]
    %3607 = vset.pattern.permute.xlu0 0
    %3608 = vperm.xlu0 %3607, %v1810
    %v3609 = vpop.permute.xlu0 %3608
    %3612 = vset.pattern.permute.xlu0 0
    %3613 = vperm.xlu0 %3612, %v1812
    %v3614 = vpop.permute.xlu0 %3613
    %3617 = vset.pattern.permute.xlu0 0
    %3618 = vperm.xlu0 %3617, %v1814
    %v3619 = vpop.permute.xlu0 %3618
    %3622 = vset.pattern.permute.xlu0 0
    %3623 = vperm.xlu0 %3622, %v1816
    %v3624 = vpop.permute.xlu0 %3623
    %3627 = vset.pattern.permute.xlu0 0
    %3628 = vperm.xlu0 %3627, %v1818
    %v3629 = vpop.permute.xlu0 %3628
    %3632 = vset.pattern.permute.xlu0 0
    %3633 = vperm.xlu0 %3632, %v1820
    %v3634 = vpop.permute.xlu0 %3633
    %3637 = vset.pattern.permute.xlu0 0
    %3638 = vperm.xlu0 %3637, %v1822
    %v3639 = vpop.permute.xlu0 %3638
    %3642 = vset.pattern.permute.xlu0 0
    %3643 = vperm.xlu0 %3642, %v1824
    %v3644 = vpop.permute.xlu0 %3643
    %3647 = vset.pattern.permute.xlu0 0
    %3648 = vperm.xlu0 %3647, %v1826
    %v3649 = vpop.permute.xlu0 %3648
    %3652 = vset.pattern.permute.xlu0 0
    %3653 = vperm.xlu0 %3652, %v1828
    %v3654 = vpop.permute.xlu0 %3653
    %3657 = vset.pattern.permute.xlu0 0
    %3658 = vperm.xlu0 %3657, %v1830
    %v3659 = vpop.permute.xlu0 %3658
    %3662 = vset.pattern.permute.xlu0 0
    %3663 = vperm.xlu0 %3662, %v1832
    %v3664 = vpop.permute.xlu0 %3663
    %3667 = vset.pattern.permute.xlu0 0
    %3668 = vperm.xlu0 %3667, %v1834
    %v3669 = vpop.permute.xlu0 %3668
    %3672 = vset.pattern.permute.xlu0 0
    %3673 = vperm.xlu0 %3672, %v1836
    %v3674 = vpop.permute.xlu0 %3673
    %3677 = vset.pattern.permute.xlu0 0
    %3678 = vperm.xlu0 %3677, %v1838
    %v3679 = vpop.permute.xlu0 %3678
    %3682 = vset.pattern.permute.xlu0 0
    %3683 = vperm.xlu0 %3682, %v1840
    %v3684 = vpop.permute.xlu0 %3683
    %v3686 = vmul.f32 %v3609, %v3590
    %v3687 = vmul.f32 %v3614, %v3591
    %v3688 = vmul.f32 %v3619, %v3592
    %v3689 = vmul.f32 %v3624, %v3593
    %v3690 = vmul.f32 %v3629, %v3594
    %v3691 = vmul.f32 %v3634, %v3595
    %v3692 = vmul.f32 %v3639, %v3596
    %v3693 = vmul.f32 %v3644, %v3597
    %v3694 = vmul.f32 %v3649, %v3598
    %v3695 = vmul.f32 %v3654, %v3599
    %v3696 = vmul.f32 %v3659, %v3600
    %v3697 = vmul.f32 %v3664, %v3601
    %v3698 = vmul.f32 %v3669, %v3602
    %v3699 = vmul.f32 %v3674, %v3603
    %v3700 = vmul.f32 %v3679, %v3604
    %v3701 = vmul.f32 %v3684, %v3605
    %3718 = vrot.lane.b32.xlu0 %v3078, 32
    %v3719 = vpop.permute.xlu0 %3718
    %3720 = vrot.lane.b32.xlu0 %v3083, 32
    %v3721 = vpop.permute.xlu0 %3720
    %3722 = vrot.lane.b32.xlu0 %v3088, 32
    %v3723 = vpop.permute.xlu0 %3722
    %3724 = vrot.lane.b32.xlu0 %v3093, 32
    %v3725 = vpop.permute.xlu0 %3724
    %3726 = vrot.lane.b32.xlu0 %v3098, 32
    %v3727 = vpop.permute.xlu0 %3726
    %3728 = vrot.lane.b32.xlu0 %v3103, 32
    %v3729 = vpop.permute.xlu0 %3728
    %3730 = vrot.lane.b32.xlu0 %v3108, 32
    %v3731 = vpop.permute.xlu0 %3730
    %3732 = vrot.lane.b32.xlu0 %v3113, 32
    %v3733 = vpop.permute.xlu0 %3732
    %3734 = vrot.lane.b32.xlu0 %v3118, 32
    %v3735 = vpop.permute.xlu0 %3734
    %3736 = vrot.lane.b32.xlu0 %v3123, 32
    %v3737 = vpop.permute.xlu0 %3736
    %3738 = vrot.lane.b32.xlu0 %v3128, 32
    %v3739 = vpop.permute.xlu0 %3738
    %3740 = vrot.lane.b32.xlu0 %v3133, 32
    %v3741 = vpop.permute.xlu0 %3740
    %3742 = vrot.lane.b32.xlu0 %v3138, 32
    %v3743 = vpop.permute.xlu0 %3742
    %3744 = vrot.lane.b32.xlu0 %v3143, 32
    %v3745 = vpop.permute.xlu0 %3744
    %3746 = vrot.lane.b32.xlu0 %v3148, 32
    %v3747 = vpop.permute.xlu0 %3746
    %3748 = vrot.lane.b32.xlu0 %v3153, 32
    %v3749 = vpop.permute.xlu0 %3748
    %v3766 = vadd.f32 %v3686, %v3719
    %v3767 = vadd.f32 %v3687, %v3721
    %v3768 = vadd.f32 %v3688, %v3723
    %v3769 = vadd.f32 %v3689, %v3725
    %v3770 = vadd.f32 %v3690, %v3727
    %v3771 = vadd.f32 %v3691, %v3729
    %v3772 = vadd.f32 %v3692, %v3731
    %v3773 = vadd.f32 %v3693, %v3733
    %v3774 = vadd.f32 %v3694, %v3735
    %v3775 = vadd.f32 %v3695, %v3737
    %v3776 = vadd.f32 %v3696, %v3739
    %v3777 = vadd.f32 %v3697, %v3741
    %v3778 = vadd.f32 %v3698, %v3743
    %v3779 = vadd.f32 %v3699, %v3745
    %v3780 = vadd.f32 %v3700, %v3747
    %v3781 = vadd.f32 %v3701, %v3749
    %vm3782 = vcmask 523520
    %3783 = vst.msk [vmem:[#allocation4] sm:$0xff] %vm3782, %v3766
    %3784 = vst.msk [vmem:[#allocation4 + $0x8] sm:$0xff] %vm3782, %v3767
    %3785 = vst.msk [vmem:[#allocation4 + $0x10] sm:$0xff] %vm3782, %v3768
    %3786 = vst.msk [vmem:[#allocation4 + $0x18] sm:$0xff] %vm3782, %v3769
    %3787 = vst.msk [vmem:[#allocation4 + $0x20] sm:$0xff] %vm3782, %v3770
    %3788 = vst.msk [vmem:[#allocation4 + $0x28] sm:$0xff] %vm3782, %v3771
    %3789 = vst.msk [vmem:[#allocation4 + $0x30] sm:$0xff] %vm3782, %v3772
    %3790 = vst.msk [vmem:[#allocation4 + $0x38] sm:$0xff] %vm3782, %v3773
    %3791 = vst.msk [vmem:[#allocation4 + $0x40] sm:$0xff] %vm3782, %v3774
    %3792 = vst.msk [vmem:[#allocation4 + $0x48] sm:$0xff] %vm3782, %v3775
    %3793 = vst.msk [vmem:[#allocation4 + $0x50] sm:$0xff] %vm3782, %v3776
    %3794 = vst.msk [vmem:[#allocation4 + $0x58] sm:$0xff] %vm3782, %v3777
    %3795 = vst.msk [vmem:[#allocation4 + $0x60] sm:$0xff] %vm3782, %v3778
    %3796 = vst.msk [vmem:[#allocation4 + $0x68] sm:$0xff] %vm3782, %v3779
    %3797 = vst.msk [vmem:[#allocation4 + $0x70] sm:$0xff] %vm3782, %v3780
    %3798 = vst.msk [vmem:[#allocation4 + $0x78] sm:$0xff] %vm3782, %v3781
    %v3799 = vld [vmem:[#allocation4] sm:$0xff]
    %v3800 = vld [vmem:[#allocation4 + $0x8] sm:$0xff]
    %v3801 = vld [vmem:[#allocation4 + $0x10] sm:$0xff]
    %v3802 = vld [vmem:[#allocation4 + $0x18] sm:$0xff]
    %v3803 = vld [vmem:[#allocation4 + $0x20] sm:$0xff]
    %v3804 = vld [vmem:[#allocation4 + $0x28] sm:$0xff]
    %v3805 = vld [vmem:[#allocation4 + $0x30] sm:$0xff]
    %v3806 = vld [vmem:[#allocation4 + $0x38] sm:$0xff]
    %v3807 = vld [vmem:[#allocation4 + $0x40] sm:$0xff]
    %v3808 = vld [vmem:[#allocation4 + $0x48] sm:$0xff]
    %v3809 = vld [vmem:[#allocation4 + $0x50] sm:$0xff]
    %v3810 = vld [vmem:[#allocation4 + $0x58] sm:$0xff]
    %v3811 = vld [vmem:[#allocation4 + $0x60] sm:$0xff]
    %v3812 = vld [vmem:[#allocation4 + $0x68] sm:$0xff]
    %v3813 = vld [vmem:[#allocation4 + $0x70] sm:$0xff]
    %v3814 = vld [vmem:[#allocation4 + $0x78] sm:$0xff]
    %3816 = vset.pattern.permute.xlu0 0
    %3817 = vperm.xlu0 %3816, %v1842
    %v3818 = vpop.permute.xlu0 %3817
    %3821 = vset.pattern.permute.xlu0 0
    %3822 = vperm.xlu0 %3821, %v1844
    %v3823 = vpop.permute.xlu0 %3822
    %3826 = vset.pattern.permute.xlu0 0
    %3827 = vperm.xlu0 %3826, %v1846
    %v3828 = vpop.permute.xlu0 %3827
    %3831 = vset.pattern.permute.xlu0 0
    %3832 = vperm.xlu0 %3831, %v1848
    %v3833 = vpop.permute.xlu0 %3832
    %3836 = vset.pattern.permute.xlu0 0
    %3837 = vperm.xlu0 %3836, %v1850
    %v3838 = vpop.permute.xlu0 %3837
    %3841 = vset.pattern.permute.xlu0 0
    %3842 = vperm.xlu0 %3841, %v1852
    %v3843 = vpop.permute.xlu0 %3842
    %3846 = vset.pattern.permute.xlu0 0
    %3847 = vperm.xlu0 %3846, %v1854
    %v3848 = vpop.permute.xlu0 %3847
    %3851 = vset.pattern.permute.xlu0 0
    %3852 = vperm.xlu0 %3851, %v1856
    %v3853 = vpop.permute.xlu0 %3852
    %3856 = vset.pattern.permute.xlu0 0
    %3857 = vperm.xlu0 %3856, %v1858
    %v3858 = vpop.permute.xlu0 %3857
    %3861 = vset.pattern.permute.xlu0 0
    %3862 = vperm.xlu0 %3861, %v1860
    %v3863 = vpop.permute.xlu0 %3862
    %3866 = vset.pattern.permute.xlu0 0
    %3867 = vperm.xlu0 %3866, %v1862
    %v3868 = vpop.permute.xlu0 %3867
    %3871 = vset.pattern.permute.xlu0 0
    %3872 = vperm.xlu0 %3871, %v1864
    %v3873 = vpop.permute.xlu0 %3872
    %3876 = vset.pattern.permute.xlu0 0
    %3877 = vperm.xlu0 %3876, %v1866
    %v3878 = vpop.permute.xlu0 %3877
    %3881 = vset.pattern.permute.xlu0 0
    %3882 = vperm.xlu0 %3881, %v1868
    %v3883 = vpop.permute.xlu0 %3882
    %3886 = vset.pattern.permute.xlu0 0
    %3887 = vperm.xlu0 %3886, %v1870
    %v3888 = vpop.permute.xlu0 %3887
    %3891 = vset.pattern.permute.xlu0 0
    %3892 = vperm.xlu0 %3891, %v1872
    %v3893 = vpop.permute.xlu0 %3892
    %v3895 = vmul.f32 %v3818, %v3799
    %v3896 = vmul.f32 %v3823, %v3800
    %v3897 = vmul.f32 %v3828, %v3801
    %v3898 = vmul.f32 %v3833, %v3802
    %v3899 = vmul.f32 %v3838, %v3803
    %v3900 = vmul.f32 %v3843, %v3804
    %v3901 = vmul.f32 %v3848, %v3805
    %v3902 = vmul.f32 %v3853, %v3806
    %v3903 = vmul.f32 %v3858, %v3807
    %v3904 = vmul.f32 %v3863, %v3808
    %v3905 = vmul.f32 %v3868, %v3809
    %v3906 = vmul.f32 %v3873, %v3810
    %v3907 = vmul.f32 %v3878, %v3811
    %v3908 = vmul.f32 %v3883, %v3812
    %v3909 = vmul.f32 %v3888, %v3813
    %v3910 = vmul.f32 %v3893, %v3814
    %3927 = vrot.lane.b32.xlu0 %v3223, 64
    %v3928 = vpop.permute.xlu0 %3927
    %3929 = vrot.lane.b32.xlu0 %v3228, 64
    %v3930 = vpop.permute.xlu0 %3929
    %3931 = vrot.lane.b32.xlu0 %v3233, 64
    %v3932 = vpop.permute.xlu0 %3931
    %3933 = vrot.lane.b32.xlu0 %v3238, 64
    %v3934 = vpop.permute.xlu0 %3933
    %3935 = vrot.lane.b32.xlu0 %v3243, 64
    %v3936 = vpop.permute.xlu0 %3935
    %3937 = vrot.lane.b32.xlu0 %v3248, 64
    %v3938 = vpop.permute.xlu0 %3937
    %3939 = vrot.lane.b32.xlu0 %v3253, 64
    %v3940 = vpop.permute.xlu0 %3939
    %3941 = vrot.lane.b32.xlu0 %v3258, 64
    %v3942 = vpop.permute.xlu0 %3941
    %3943 = vrot.lane.b32.xlu0 %v3263, 64
    %v3944 = vpop.permute.xlu0 %3943
    %3945 = vrot.lane.b32.xlu0 %v3268, 64
    %v3946 = vpop.permute.xlu0 %3945
    %3947 = vrot.lane.b32.xlu0 %v3273, 64
    %v3948 = vpop.permute.xlu0 %3947
    %3949 = vrot.lane.b32.xlu0 %v3278, 64
    %v3950 = vpop.permute.xlu0 %3949
    %3951 = vrot.lane.b32.xlu0 %v3283, 64
    %v3952 = vpop.permute.xlu0 %3951
    %3953 = vrot.lane.b32.xlu0 %v3288, 64
    %v3954 = vpop.permute.xlu0 %3953
    %3955 = vrot.lane.b32.xlu0 %v3293, 64
    %v3956 = vpop.permute.xlu0 %3955
    %3957 = vrot.lane.b32.xlu0 %v3298, 64
    %v3958 = vpop.permute.xlu0 %3957
    %v3975 = vadd.f32 %v3895, %v3928
    %v3976 = vadd.f32 %v3896, %v3930
    %v3977 = vadd.f32 %v3897, %v3932
    %v3978 = vadd.f32 %v3898, %v3934
    %v3979 = vadd.f32 %v3899, %v3936
    %v3980 = vadd.f32 %v3900, %v3938
    %v3981 = vadd.f32 %v3901, %v3940
    %v3982 = vadd.f32 %v3902, %v3942
    %v3983 = vadd.f32 %v3903, %v3944
    %v3984 = vadd.f32 %v3904, %v3946
    %v3985 = vadd.f32 %v3905, %v3948
    %v3986 = vadd.f32 %v3906, %v3950
    %v3987 = vadd.f32 %v3907, %v3952
    %v3988 = vadd.f32 %v3908, %v3954
    %v3989 = vadd.f32 %v3909, %v3956
    %v3990 = vadd.f32 %v3910, %v3958
    %vm3991 = vcmask 785920
    %3992 = vst.msk [vmem:[#allocation4] sm:$0xff] %vm3991, %v3975
    %3993 = vst.msk [vmem:[#allocation4 + $0x8] sm:$0xff] %vm3991, %v3976
    %3994 = vst.msk [vmem:[#allocation4 + $0x10] sm:$0xff] %vm3991, %v3977
    %3995 = vst.msk [vmem:[#allocation4 + $0x18] sm:$0xff] %vm3991, %v3978
    %3996 = vst.msk [vmem:[#allocation4 + $0x20] sm:$0xff] %vm3991, %v3979
    %3997 = vst.msk [vmem:[#allocation4 + $0x28] sm:$0xff] %vm3991, %v3980
    %3998 = vst.msk [vmem:[#allocation4 + $0x30] sm:$0xff] %vm3991, %v3981
    %3999 = vst.msk [vmem:[#allocation4 + $0x38] sm:$0xff] %vm3991, %v3982
    %4000 = vst.msk [vmem:[#allocation4 + $0x40] sm:$0xff] %vm3991, %v3983
    %4001 = vst.msk [vmem:[#allocation4 + $0x48] sm:$0xff] %vm3991, %v3984
    %4002 = vst.msk [vmem:[#allocation4 + $0x50] sm:$0xff] %vm3991, %v3985
    %4003 = vst.msk [vmem:[#allocation4 + $0x58] sm:$0xff] %vm3991, %v3986
    %4004 = vst.msk [vmem:[#allocation4 + $0x60] sm:$0xff] %vm3991, %v3987
    %4005 = vst.msk [vmem:[#allocation4 + $0x68] sm:$0xff] %vm3991, %v3988
    %4006 = vst.msk [vmem:[#allocation4 + $0x70] sm:$0xff] %vm3991, %v3989
    %4007 = vst.msk [vmem:[#allocation4 + $0x78] sm:$0xff] %vm3991, %v3990
    %v4008 = vld [vmem:[#allocation4] sm:$0xff]
    %v4009 = vld [vmem:[#allocation4 + $0x8] sm:$0xff]
    %v4010 = vld [vmem:[#allocation4 + $0x10] sm:$0xff]
    %v4011 = vld [vmem:[#allocation4 + $0x18] sm:$0xff]
    %v4012 = vld [vmem:[#allocation4 + $0x20] sm:$0xff]
    %v4013 = vld [vmem:[#allocation4 + $0x28] sm:$0xff]
    %v4014 = vld [vmem:[#allocation4 + $0x30] sm:$0xff]
    %v4015 = vld [vmem:[#allocation4 + $0x38] sm:$0xff]
    %v4016 = vld [vmem:[#allocation4 + $0x40] sm:$0xff]
    %v4017 = vld [vmem:[#allocation4 + $0x48] sm:$0xff]
    %v4018 = vld [vmem:[#allocation4 + $0x50] sm:$0xff]
    %v4019 = vld [vmem:[#allocation4 + $0x58] sm:$0xff]
    %v4020 = vld [vmem:[#allocation4 + $0x60] sm:$0xff]
    %v4021 = vld [vmem:[#allocation4 + $0x68] sm:$0xff]
    %v4022 = vld [vmem:[#allocation4 + $0x70] sm:$0xff]
    %v4023 = vld [vmem:[#allocation4 + $0x78] sm:$0xff]
    %4025 = vset.pattern.permute.xlu0 0
    %4026 = vperm.xlu0 %4025, %v1874
    %v4027 = vpop.permute.xlu0 %4026
    %4030 = vset.pattern.permute.xlu0 0
    %4031 = vperm.xlu0 %4030, %v1876
    %v4032 = vpop.permute.xlu0 %4031
    %4035 = vset.pattern.permute.xlu0 0
    %4036 = vperm.xlu0 %4035, %v1878
    %v4037 = vpop.permute.xlu0 %4036
    %4040 = vset.pattern.permute.xlu0 0
    %4041 = vperm.xlu0 %4040, %v1880
    %v4042 = vpop.permute.xlu0 %4041
    %4045 = vset.pattern.permute.xlu0 0
    %4046 = vperm.xlu0 %4045, %v1882
    %v4047 = vpop.permute.xlu0 %4046
    %4050 = vset.pattern.permute.xlu0 0
    %4051 = vperm.xlu0 %4050, %v1884
    %v4052 = vpop.permute.xlu0 %4051
    %4055 = vset.pattern.permute.xlu0 0
    %4056 = vperm.xlu0 %4055, %v1886
    %v4057 = vpop.permute.xlu0 %4056
    %4060 = vset.pattern.permute.xlu0 0
    %4061 = vperm.xlu0 %4060, %v1888
    %v4062 = vpop.permute.xlu0 %4061
    %4065 = vset.pattern.permute.xlu0 0
    %4066 = vperm.xlu0 %4065, %v1890
    %v4067 = vpop.permute.xlu0 %4066
    %4070 = vset.pattern.permute.xlu0 0
    %4071 = vperm.xlu0 %4070, %v1892
    %v4072 = vpop.permute.xlu0 %4071
    %4075 = vset.pattern.permute.xlu0 0
    %4076 = vperm.xlu0 %4075, %v1894
    %v4077 = vpop.permute.xlu0 %4076
    %4080 = vset.pattern.permute.xlu0 0
    %4081 = vperm.xlu0 %4080, %v1896
    %v4082 = vpop.permute.xlu0 %4081
    %4085 = vset.pattern.permute.xlu0 0
    %4086 = vperm.xlu0 %4085, %v1898
    %v4087 = vpop.permute.xlu0 %4086
    %4090 = vset.pattern.permute.xlu0 0
    %4091 = vperm.xlu0 %4090, %v1900
    %v4092 = vpop.permute.xlu0 %4091
    %4095 = vset.pattern.permute.xlu0 0
    %4096 = vperm.xlu0 %4095, %v1902
    %v4097 = vpop.permute.xlu0 %4096
    %4100 = vset.pattern.permute.xlu0 0
    %4101 = vperm.xlu0 %4100, %v1904
    %v4102 = vpop.permute.xlu0 %4101
    %v4104 = vmul.f32 %v4027, %v4008
    %v4105 = vmul.f32 %v4032, %v4009
    %v4106 = vmul.f32 %v4037, %v4010
    %v4107 = vmul.f32 %v4042, %v4011
    %v4108 = vmul.f32 %v4047, %v4012
    %v4109 = vmul.f32 %v4052, %v4013
    %v4110 = vmul.f32 %v4057, %v4014
    %v4111 = vmul.f32 %v4062, %v4015
    %v4112 = vmul.f32 %v4067, %v4016
    %v4113 = vmul.f32 %v4072, %v4017
    %v4114 = vmul.f32 %v4077, %v4018
    %v4115 = vmul.f32 %v4082, %v4019
    %v4116 = vmul.f32 %v4087, %v4020
    %v4117 = vmul.f32 %v4092, %v4021
    %v4118 = vmul.f32 %v4097, %v4022
    %v4119 = vmul.f32 %v4102, %v4023
    %4136 = vrot.lane.b32.xlu0 %v3368, 96
    %v4137 = vpop.permute.xlu0 %4136
    %4138 = vrot.lane.b32.xlu0 %v3373, 96
    %v4139 = vpop.permute.xlu0 %4138
    %4140 = vrot.lane.b32.xlu0 %v3378, 96
    %v4141 = vpop.permute.xlu0 %4140
    %4142 = vrot.lane.b32.xlu0 %v3383, 96
    %v4143 = vpop.permute.xlu0 %4142
    %4144 = vrot.lane.b32.xlu0 %v3388, 96
    %v4145 = vpop.permute.xlu0 %4144
    %4146 = vrot.lane.b32.xlu0 %v3393, 96
    %v4147 = vpop.permute.xlu0 %4146
    %4148 = vrot.lane.b32.xlu0 %v3398, 96
    %v4149 = vpop.permute.xlu0 %4148
    %4150 = vrot.lane.b32.xlu0 %v3403, 96
    %v4151 = vpop.permute.xlu0 %4150
    %4152 = vrot.lane.b32.xlu0 %v3408, 96
    %v4153 = vpop.permute.xlu0 %4152
    %4154 = vrot.lane.b32.xlu0 %v3413, 96
    %v4155 = vpop.permute.xlu0 %4154
    %4156 = vrot.lane.b32.xlu0 %v3418, 96
    %v4157 = vpop.permute.xlu0 %4156
    %4158 = vrot.lane.b32.xlu0 %v3423, 96
    %v4159 = vpop.permute.xlu0 %4158
    %4160 = vrot.lane.b32.xlu0 %v3428, 96
    %v4161 = vpop.permute.xlu0 %4160
    %4162 = vrot.lane.b32.xlu0 %v3433, 96
    %v4163 = vpop.permute.xlu0 %4162
    %4164 = vrot.lane.b32.xlu0 %v3438, 96
    %v4165 = vpop.permute.xlu0 %4164
    %4166 = vrot.lane.b32.xlu0 %v3443, 96
    %v4167 = vpop.permute.xlu0 %4166
    %v4184 = vadd.f32 %v4104, %v4137
    %v4185 = vadd.f32 %v4105, %v4139
    %v4186 = vadd.f32 %v4106, %v4141
    %v4187 = vadd.f32 %v4107, %v4143
    %v4188 = vadd.f32 %v4108, %v4145
    %v4189 = vadd.f32 %v4109, %v4147
    %v4190 = vadd.f32 %v4110, %v4149
    %v4191 = vadd.f32 %v4111, %v4151
    %v4192 = vadd.f32 %v4112, %v4153
    %v4193 = vadd.f32 %v4113, %v4155
    %v4194 = vadd.f32 %v4114, %v4157
    %v4195 = vadd.f32 %v4115, %v4159
    %v4196 = vadd.f32 %v4116, %v4161
    %v4197 = vadd.f32 %v4117, %v4163
    %v4198 = vadd.f32 %v4118, %v4165
    %v4199 = vadd.f32 %v4119, %v4167
    %vm4200 = vcmask 1048320
    %4201 = vst.msk [vmem:[#allocation4] sm:$0xff] %vm4200, %v4184
    %4202 = vst.msk [vmem:[#allocation4 + $0x8] sm:$0xff] %vm4200, %v4185
    %4203 = vst.msk [vmem:[#allocation4 + $0x10] sm:$0xff] %vm4200, %v4186
    %4204 = vst.msk [vmem:[#allocation4 + $0x18] sm:$0xff] %vm4200, %v4187
    %4205 = vst.msk [vmem:[#allocation4 + $0x20] sm:$0xff] %vm4200, %v4188
    %4206 = vst.msk [vmem:[#allocation4 + $0x28] sm:$0xff] %vm4200, %v4189
    %4207 = vst.msk [vmem:[#allocation4 + $0x30] sm:$0xff] %vm4200, %v4190
    %4208 = vst.msk [vmem:[#allocation4 + $0x38] sm:$0xff] %vm4200, %v4191
    %4209 = vst.msk [vmem:[#allocation4 + $0x40] sm:$0xff] %vm4200, %v4192
    %4210 = vst.msk [vmem:[#allocation4 + $0x48] sm:$0xff] %vm4200, %v4193
    %4211 = vst.msk [vmem:[#allocation4 + $0x50] sm:$0xff] %vm4200, %v4194
    %4212 = vst.msk [vmem:[#allocation4 + $0x58] sm:$0xff] %vm4200, %v4195
    %4213 = vst.msk [vmem:[#allocation4 + $0x60] sm:$0xff] %vm4200, %v4196
    %4214 = vst.msk [vmem:[#allocation4 + $0x68] sm:$0xff] %vm4200, %v4197
    %4215 = vst.msk [vmem:[#allocation4 + $0x70] sm:$0xff] %vm4200, %v4198
    %4216 = vst.msk [vmem:[#allocation4 + $0x78] sm:$0xff] %vm4200, %v4199
    // Predicated region
    $region18: #{tpu_custom_call.1} parent=1 // pred_check
      %p4217 = pneg %p15
    $region19: #{tpu_custom_call.1} parent=1 // pred_check_branch
      %4219 = sbr.rel (%p4217) target = $region21
    $region20: #{tpu_custom_call.1} parent=1 // pred_region
      %v4220 = vld [vmem:[#allocation3] sm:$0xff]
      %v4221 = vld [vmem:[#allocation3 + $0x8] sm:$0xff]
      %v4222 = vld [vmem:[#allocation3 + $0x10] sm:$0xff]
      %v4223 = vld [vmem:[#allocation3 + $0x18] sm:$0xff]
      %v4224 = vld [vmem:[#allocation3 + $0x20] sm:$0xff]
      %v4225 = vld [vmem:[#allocation3 + $0x28] sm:$0xff]
      %v4226 = vld [vmem:[#allocation3 + $0x30] sm:$0xff]
      %v4227 = vld [vmem:[#allocation3 + $0x38] sm:$0xff]
      %v4228 = vld [vmem:[#allocation3 + $0x40] sm:$0xff]
      %v4229 = vld [vmem:[#allocation3 + $0x48] sm:$0xff]
      %v4230 = vld [vmem:[#allocation3 + $0x50] sm:$0xff]
      %v4231 = vld [vmem:[#allocation3 + $0x58] sm:$0xff]
      %v4232 = vld [vmem:[#allocation3 + $0x60] sm:$0xff]
      %v4233 = vld [vmem:[#allocation3 + $0x68] sm:$0xff]
      %v4234 = vld [vmem:[#allocation3 + $0x70] sm:$0xff]
      %v4235 = vld [vmem:[#allocation3 + $0x78] sm:$0xff]
      %v4236 = vld [vmem:[#allocation3 + $0x80] sm:$0xff]
      %v4237 = vld [vmem:[#allocation3 + $0x88] sm:$0xff]
      %v4238 = vld [vmem:[#allocation3 + $0x90] sm:$0xff]
      %v4239 = vld [vmem:[#allocation3 + $0x98] sm:$0xff]
      %v4240 = vld [vmem:[#allocation3 + $0xa0] sm:$0xff]
      %v4241 = vld [vmem:[#allocation3 + $0xa8] sm:$0xff]
      %v4242 = vld [vmem:[#allocation3 + $0xb0] sm:$0xff]
      %v4243 = vld [vmem:[#allocation3 + $0xb8] sm:$0xff]
      %v4244 = vld [vmem:[#allocation3 + $0xc0] sm:$0xff]
      %v4245 = vld [vmem:[#allocation3 + $0xc8] sm:$0xff]
      %v4246 = vld [vmem:[#allocation3 + $0xd0] sm:$0xff]
      %v4247 = vld [vmem:[#allocation3 + $0xd8] sm:$0xff]
      %v4248 = vld [vmem:[#allocation3 + $0xe0] sm:$0xff]
      %v4249 = vld [vmem:[#allocation3 + $0xe8] sm:$0xff]
      %v4250 = vld [vmem:[#allocation3 + $0xf0] sm:$0xff]
      %v4251 = vld [vmem:[#allocation3 + $0xf8] sm:$0xff]
      %v4252 = vld [vmem:[#allocation3 + $0x100] sm:$0xff]
      %v4253 = vld [vmem:[#allocation3 + $0x108] sm:$0xff]
      %v4254 = vld [vmem:[#allocation3 + $0x110] sm:$0xff]
      %v4255 = vld [vmem:[#allocation3 + $0x118] sm:$0xff]
      %v4256 = vld [vmem:[#allocation3 + $0x120] sm:$0xff]
      %v4257 = vld [vmem:[#allocation3 + $0x128] sm:$0xff]
      %v4258 = vld [vmem:[#allocation3 + $0x130] sm:$0xff]
      %v4259 = vld [vmem:[#allocation3 + $0x138] sm:$0xff]
      %v4260 = vld [vmem:[#allocation3 + $0x140] sm:$0xff]
      %v4261 = vld [vmem:[#allocation3 + $0x148] sm:$0xff]
      %v4262 = vld [vmem:[#allocation3 + $0x150] sm:$0xff]
      %v4263 = vld [vmem:[#allocation3 + $0x158] sm:$0xff]
      %v4264 = vld [vmem:[#allocation3 + $0x160] sm:$0xff]
      %v4265 = vld [vmem:[#allocation3 + $0x168] sm:$0xff]
      %v4266 = vld [vmem:[#allocation3 + $0x170] sm:$0xff]
      %v4267 = vld [vmem:[#allocation3 + $0x178] sm:$0xff]
      %v4268 = vld [vmem:[#allocation3 + $0x180] sm:$0xff]
      %v4269 = vld [vmem:[#allocation3 + $0x188] sm:$0xff]
      %v4270 = vld [vmem:[#allocation3 + $0x190] sm:$0xff]
      %v4271 = vld [vmem:[#allocation3 + $0x198] sm:$0xff]
      %v4272 = vld [vmem:[#allocation3 + $0x1a0] sm:$0xff]
      %v4273 = vld [vmem:[#allocation3 + $0x1a8] sm:$0xff]
      %v4274 = vld [vmem:[#allocation3 + $0x1b0] sm:$0xff]
      %v4275 = vld [vmem:[#allocation3 + $0x1b8] sm:$0xff]
      %v4276 = vld [vmem:[#allocation3 + $0x1c0] sm:$0xff]
      %v4277 = vld [vmem:[#allocation3 + $0x1c8] sm:$0xff]
      %v4278 = vld [vmem:[#allocation3 + $0x1d0] sm:$0xff]
      %v4279 = vld [vmem:[#allocation3 + $0x1d8] sm:$0xff]
      %v4280 = vld [vmem:[#allocation3 + $0x1e0] sm:$0xff]
      %v4281 = vld [vmem:[#allocation3 + $0x1e8] sm:$0xff]
      %v4282 = vld [vmem:[#allocation3 + $0x1f0] sm:$0xff]
      %v4283 = vld [vmem:[#allocation3 + $0x1f8] sm:$0xff]
      %v4284 = vrcp.pop %v4220
      %v4285 = vrcp.pop %v4221
      %v4286 = vrcp.pop %v4222
      %v4287 = vrcp.pop %v4223
      %v4288 = vrcp.pop %v4224
      %v4289 = vrcp.pop %v4225
      %v4290 = vrcp.pop %v4226
      %v4291 = vrcp.pop %v4227
      %v4292 = vrcp.pop %v4228
      %v4293 = vrcp.pop %v4229
      %v4294 = vrcp.pop %v4230
      %v4295 = vrcp.pop %v4231
      %v4296 = vrcp.pop %v4232
      %v4297 = vrcp.pop %v4233
      %v4298 = vrcp.pop %v4234
      %v4299 = vrcp.pop %v4235
      %v4300 = vrcp.pop %v4236
      %v4301 = vrcp.pop %v4237
      %v4302 = vrcp.pop %v4238
      %v4303 = vrcp.pop %v4239
      %v4304 = vrcp.pop %v4240
      %v4305 = vrcp.pop %v4241
      %v4306 = vrcp.pop %v4242
      %v4307 = vrcp.pop %v4243
      %v4308 = vrcp.pop %v4244
      %v4309 = vrcp.pop %v4245
      %v4310 = vrcp.pop %v4246
      %v4311 = vrcp.pop %v4247
      %v4312 = vrcp.pop %v4248
      %v4313 = vrcp.pop %v4249
      %v4314 = vrcp.pop %v4250
      %v4315 = vrcp.pop %v4251
      %v4316 = vrcp.pop %v4252
      %v4317 = vrcp.pop %v4253
      %v4318 = vrcp.pop %v4254
      %v4319 = vrcp.pop %v4255
      %v4320 = vrcp.pop %v4256
      %v4321 = vrcp.pop %v4257
      %v4322 = vrcp.pop %v4258
      %v4323 = vrcp.pop %v4259
      %v4324 = vrcp.pop %v4260
      %v4325 = vrcp.pop %v4261
      %v4326 = vrcp.pop %v4262
      %v4327 = vrcp.pop %v4263
      %v4328 = vrcp.pop %v4264
      %v4329 = vrcp.pop %v4265
      %v4330 = vrcp.pop %v4266
      %v4331 = vrcp.pop %v4267
      %v4332 = vrcp.pop %v4268
      %v4333 = vrcp.pop %v4269
      %v4334 = vrcp.pop %v4270
      %v4335 = vrcp.pop %v4271
      %v4336 = vrcp.pop %v4272
      %v4337 = vrcp.pop %v4273
      %v4338 = vrcp.pop %v4274
      %v4339 = vrcp.pop %v4275
      %v4340 = vrcp.pop %v4276
      %v4341 = vrcp.pop %v4277
      %v4342 = vrcp.pop %v4278
      %v4343 = vrcp.pop %v4279
      %v4344 = vrcp.pop %v4280
      %v4345 = vrcp.pop %v4281
      %v4346 = vrcp.pop %v4282
      %v4347 = vrcp.pop %v4283
      %v4348 = vld [vmem:[#allocation4] sm:$0xff]
      %v4349 = vld [vmem:[#allocation4 + $0x8] sm:$0xff]
      %v4350 = vld [vmem:[#allocation4 + $0x10] sm:$0xff]
      %v4351 = vld [vmem:[#allocation4 + $0x18] sm:$0xff]
      %v4352 = vld [vmem:[#allocation4 + $0x20] sm:$0xff]
      %v4353 = vld [vmem:[#allocation4 + $0x28] sm:$0xff]
      %v4354 = vld [vmem:[#allocation4 + $0x30] sm:$0xff]
      %v4355 = vld [vmem:[#allocation4 + $0x38] sm:$0xff]
      %v4356 = vld [vmem:[#allocation4 + $0x40] sm:$0xff]
      %v4357 = vld [vmem:[#allocation4 + $0x48] sm:$0xff]
      %v4358 = vld [vmem:[#allocation4 + $0x50] sm:$0xff]
      %v4359 = vld [vmem:[#allocation4 + $0x58] sm:$0xff]
      %v4360 = vld [vmem:[#allocation4 + $0x60] sm:$0xff]
      %v4361 = vld [vmem:[#allocation4 + $0x68] sm:$0xff]
      %v4362 = vld [vmem:[#allocation4 + $0x70] sm:$0xff]
      %v4363 = vld [vmem:[#allocation4 + $0x78] sm:$0xff]
      %4365 = vset.pattern.permute.xlu0 0
      %4366 = vperm.xlu0 %4365, %v4284
      %v4367 = vpop.permute.xlu0 %4366
      %4370 = vset.pattern.permute.xlu0 0
      %4371 = vperm.xlu0 %4370, %v4285
      %v4372 = vpop.permute.xlu0 %4371
      %4375 = vset.pattern.permute.xlu0 0
      %4376 = vperm.xlu0 %4375, %v4286
      %v4377 = vpop.permute.xlu0 %4376
      %4380 = vset.pattern.permute.xlu0 0
      %4381 = vperm.xlu0 %4380, %v4287
      %v4382 = vpop.permute.xlu0 %4381
      %4385 = vset.pattern.permute.xlu0 0
      %4386 = vperm.xlu0 %4385, %v4288
      %v4387 = vpop.permute.xlu0 %4386
      %4390 = vset.pattern.permute.xlu0 0
      %4391 = vperm.xlu0 %4390, %v4289
      %v4392 = vpop.permute.xlu0 %4391
      %4395 = vset.pattern.permute.xlu0 0
      %4396 = vperm.xlu0 %4395, %v4290
      %v4397 = vpop.permute.xlu0 %4396
      %4400 = vset.pattern.permute.xlu0 0
      %4401 = vperm.xlu0 %4400, %v4291
      %v4402 = vpop.permute.xlu0 %4401
      %4405 = vset.pattern.permute.xlu0 0
      %4406 = vperm.xlu0 %4405, %v4292
      %v4407 = vpop.permute.xlu0 %4406
      %4410 = vset.pattern.permute.xlu0 0
      %4411 = vperm.xlu0 %4410, %v4293
      %v4412 = vpop.permute.xlu0 %4411
      %4415 = vset.pattern.permute.xlu0 0
      %4416 = vperm.xlu0 %4415, %v4294
      %v4417 = vpop.permute.xlu0 %4416
      %4420 = vset.pattern.permute.xlu0 0
      %4421 = vperm.xlu0 %4420, %v4295
      %v4422 = vpop.permute.xlu0 %4421
      %4425 = vset.pattern.permute.xlu0 0
      %4426 = vperm.xlu0 %4425, %v4296
      %v4427 = vpop.permute.xlu0 %4426
      %4430 = vset.pattern.permute.xlu0 0
      %4431 = vperm.xlu0 %4430, %v4297
      %v4432 = vpop.permute.xlu0 %4431
      %4435 = vset.pattern.permute.xlu0 0
      %4436 = vperm.xlu0 %4435, %v4298
      %v4437 = vpop.permute.xlu0 %4436
      %4440 = vset.pattern.permute.xlu0 0
      %4441 = vperm.xlu0 %4440, %v4299
      %v4442 = vpop.permute.xlu0 %4441
      %v4444 = vmul.f32 %v4348, %v4367
      %v4445 = vmul.f32 %v4349, %v4372
      %v4446 = vmul.f32 %v4350, %v4377
      %v4447 = vmul.f32 %v4351, %v4382
      %v4448 = vmul.f32 %v4352, %v4387
      %v4449 = vmul.f32 %v4353, %v4392
      %v4450 = vmul.f32 %v4354, %v4397
      %v4451 = vmul.f32 %v4355, %v4402
      %v4452 = vmul.f32 %v4356, %v4407
      %v4453 = vmul.f32 %v4357, %v4412
      %v4454 = vmul.f32 %v4358, %v4417
      %v4455 = vmul.f32 %v4359, %v4422
      %v4456 = vmul.f32 %v4360, %v4427
      %v4457 = vmul.f32 %v4361, %v4432
      %v4458 = vmul.f32 %v4362, %v4437
      %v4459 = vmul.f32 %v4363, %v4442
      %4460 = vst.msk [vmem:[#allocation4] sm:$0xff] %vm423, %v4444
      %4461 = vst.msk [vmem:[#allocation4 + $0x8] sm:$0xff] %vm423, %v4445
      %4462 = vst.msk [vmem:[#allocation4 + $0x10] sm:$0xff] %vm423, %v4446
      %4463 = vst.msk [vmem:[#allocation4 + $0x18] sm:$0xff] %vm423, %v4447
      %4464 = vst.msk [vmem:[#allocation4 + $0x20] sm:$0xff] %vm423, %v4448
      %4465 = vst.msk [vmem:[#allocation4 + $0x28] sm:$0xff] %vm423, %v4449
      %4466 = vst.msk [vmem:[#allocation4 + $0x30] sm:$0xff] %vm423, %v4450
      %4467 = vst.msk [vmem:[#allocation4 + $0x38] sm:$0xff] %vm423, %v4451
      %4468 = vst.msk [vmem:[#allocation4 + $0x40] sm:$0xff] %vm423, %v4452
      %4469 = vst.msk [vmem:[#allocation4 + $0x48] sm:$0xff] %vm423, %v4453
      %4470 = vst.msk [vmem:[#allocation4 + $0x50] sm:$0xff] %vm423, %v4454
      %4471 = vst.msk [vmem:[#allocation4 + $0x58] sm:$0xff] %vm423, %v4455
      %4472 = vst.msk [vmem:[#allocation4 + $0x60] sm:$0xff] %vm423, %v4456
      %4473 = vst.msk [vmem:[#allocation4 + $0x68] sm:$0xff] %vm423, %v4457
      %4474 = vst.msk [vmem:[#allocation4 + $0x70] sm:$0xff] %vm423, %v4458
      %4475 = vst.msk [vmem:[#allocation4 + $0x78] sm:$0xff] %vm423, %v4459
      %v4476 = vld [vmem:[#allocation4] sm:$0xff]
      %v4477 = vld [vmem:[#allocation4 + $0x8] sm:$0xff]
      %v4478 = vld [vmem:[#allocation4 + $0x10] sm:$0xff]
      %v4479 = vld [vmem:[#allocation4 + $0x18] sm:$0xff]
      %v4480 = vld [vmem:[#allocation4 + $0x20] sm:$0xff]
      %v4481 = vld [vmem:[#allocation4 + $0x28] sm:$0xff]
      %v4482 = vld [vmem:[#allocation4 + $0x30] sm:$0xff]
      %v4483 = vld [vmem:[#allocation4 + $0x38] sm:$0xff]
      %v4484 = vld [vmem:[#allocation4 + $0x40] sm:$0xff]
      %v4485 = vld [vmem:[#allocation4 + $0x48] sm:$0xff]
      %v4486 = vld [vmem:[#allocation4 + $0x50] sm:$0xff]
      %v4487 = vld [vmem:[#allocation4 + $0x58] sm:$0xff]
      %v4488 = vld [vmem:[#allocation4 + $0x60] sm:$0xff]
      %v4489 = vld [vmem:[#allocation4 + $0x68] sm:$0xff]
      %v4490 = vld [vmem:[#allocation4 + $0x70] sm:$0xff]
      %v4491 = vld [vmem:[#allocation4 + $0x78] sm:$0xff]
      %4493 = vset.pattern.permute.xlu0 0
      %4494 = vperm.xlu0 %4493, %v4300
      %v4495 = vpop.permute.xlu0 %4494
      %4498 = vset.pattern.permute.xlu0 0
      %4499 = vperm.xlu0 %4498, %v4301
      %v4500 = vpop.permute.xlu0 %4499
      %4503 = vset.pattern.permute.xlu0 0
      %4504 = vperm.xlu0 %4503, %v4302
      %v4505 = vpop.permute.xlu0 %4504
      %4508 = vset.pattern.permute.xlu0 0
      %4509 = vperm.xlu0 %4508, %v4303
      %v4510 = vpop.permute.xlu0 %4509
      %4513 = vset.pattern.permute.xlu0 0
      %4514 = vperm.xlu0 %4513, %v4304
      %v4515 = vpop.permute.xlu0 %4514
      %4518 = vset.pattern.permute.xlu0 0
      %4519 = vperm.xlu0 %4518, %v4305
      %v4520 = vpop.permute.xlu0 %4519
      %4523 = vset.pattern.permute.xlu0 0
      %4524 = vperm.xlu0 %4523, %v4306
      %v4525 = vpop.permute.xlu0 %4524
      %4528 = vset.pattern.permute.xlu0 0
      %4529 = vperm.xlu0 %4528, %v4307
      %v4530 = vpop.permute.xlu0 %4529
      %4533 = vset.pattern.permute.xlu0 0
      %4534 = vperm.xlu0 %4533, %v4308
      %v4535 = vpop.permute.xlu0 %4534
      %4538 = vset.pattern.permute.xlu0 0
      %4539 = vperm.xlu0 %4538, %v4309
      %v4540 = vpop.permute.xlu0 %4539
      %4543 = vset.pattern.permute.xlu0 0
      %4544 = vperm.xlu0 %4543, %v4310
      %v4545 = vpop.permute.xlu0 %4544
      %4548 = vset.pattern.permute.xlu0 0
      %4549 = vperm.xlu0 %4548, %v4311
      %v4550 = vpop.permute.xlu0 %4549
      %4553 = vset.pattern.permute.xlu0 0
      %4554 = vperm.xlu0 %4553, %v4312
      %v4555 = vpop.permute.xlu0 %4554
      %4558 = vset.pattern.permute.xlu0 0
      %4559 = vperm.xlu0 %4558, %v4313
      %v4560 = vpop.permute.xlu0 %4559
      %4563 = vset.pattern.permute.xlu0 0
      %4564 = vperm.xlu0 %4563, %v4314
      %v4565 = vpop.permute.xlu0 %4564
      %4568 = vset.pattern.permute.xlu0 0
      %4569 = vperm.xlu0 %4568, %v4315
      %v4570 = vpop.permute.xlu0 %4569
      %v4572 = vmul.f32 %v4476, %v4495
      %v4573 = vmul.f32 %v4477, %v4500
      %v4574 = vmul.f32 %v4478, %v4505
      %v4575 = vmul.f32 %v4479, %v4510
      %v4576 = vmul.f32 %v4480, %v4515
      %v4577 = vmul.f32 %v4481, %v4520
      %v4578 = vmul.f32 %v4482, %v4525
      %v4579 = vmul.f32 %v4483, %v4530
      %v4580 = vmul.f32 %v4484, %v4535
      %v4581 = vmul.f32 %v4485, %v4540
      %v4582 = vmul.f32 %v4486, %v4545
      %v4583 = vmul.f32 %v4487, %v4550
      %v4584 = vmul.f32 %v4488, %v4555
      %v4585 = vmul.f32 %v4489, %v4560
      %v4586 = vmul.f32 %v4490, %v4565
      %v4587 = vmul.f32 %v4491, %v4570
      %4588 = vst.msk [vmem:[#allocation4] sm:$0xff] %vm3782, %v4572
      %4589 = vst.msk [vmem:[#allocation4 + $0x8] sm:$0xff] %vm3782, %v4573
      %4590 = vst.msk [vmem:[#allocation4 + $0x10] sm:$0xff] %vm3782, %v4574
      %4591 = vst.msk [vmem:[#allocation4 + $0x18] sm:$0xff] %vm3782, %v4575
      %4592 = vst.msk [vmem:[#allocation4 + $0x20] sm:$0xff] %vm3782, %v4576
      %4593 = vst.msk [vmem:[#allocation4 + $0x28] sm:$0xff] %vm3782, %v4577
      %4594 = vst.msk [vmem:[#allocation4 + $0x30] sm:$0xff] %vm3782, %v4578
      %4595 = vst.msk [vmem:[#allocation4 + $0x38] sm:$0xff] %vm3782, %v4579
      %4596 = vst.msk [vmem:[#allocation4 + $0x40] sm:$0xff] %vm3782, %v4580
      %4597 = vst.msk [vmem:[#allocation4 + $0x48] sm:$0xff] %vm3782, %v4581
      %4598 = vst.msk [vmem:[#allocation4 + $0x50] sm:$0xff] %vm3782, %v4582
      %4599 = vst.msk [vmem:[#allocation4 + $0x58] sm:$0xff] %vm3782, %v4583
      %4600 = vst.msk [vmem:[#allocation4 + $0x60] sm:$0xff] %vm3782, %v4584
      %4601 = vst.msk [vmem:[#allocation4 + $0x68] sm:$0xff] %vm3782, %v4585
      %4602 = vst.msk [vmem:[#allocation4 + $0x70] sm:$0xff] %vm3782, %v4586
      %4603 = vst.msk [vmem:[#allocation4 + $0x78] sm:$0xff] %vm3782, %v4587
      %v4604 = vld [vmem:[#allocation4] sm:$0xff]
      %v4605 = vld [vmem:[#allocation4 + $0x8] sm:$0xff]
      %v4606 = vld [vmem:[#allocation4 + $0x10] sm:$0xff]
      %v4607 = vld [vmem:[#allocation4 + $0x18] sm:$0xff]
      %v4608 = vld [vmem:[#allocation4 + $0x20] sm:$0xff]
      %v4609 = vld [vmem:[#allocation4 + $0x28] sm:$0xff]
      %v4610 = vld [vmem:[#allocation4 + $0x30] sm:$0xff]
      %v4611 = vld [vmem:[#allocation4 + $0x38] sm:$0xff]
      %v4612 = vld [vmem:[#allocation4 + $0x40] sm:$0xff]
      %v4613 = vld [vmem:[#allocation4 + $0x48] sm:$0xff]
      %v4614 = vld [vmem:[#allocation4 + $0x50] sm:$0xff]
      %v4615 = vld [vmem:[#allocation4 + $0x58] sm:$0xff]
      %v4616 = vld [vmem:[#allocation4 + $0x60] sm:$0xff]
      %v4617 = vld [vmem:[#allocation4 + $0x68] sm:$0xff]
      %v4618 = vld [vmem:[#allocation4 + $0x70] sm:$0xff]
      %v4619 = vld [vmem:[#allocation4 + $0x78] sm:$0xff]
      %4621 = vset.pattern.permute.xlu0 0
      %4622 = vperm.xlu0 %4621, %v4316
      %v4623 = vpop.permute.xlu0 %4622
      %4626 = vset.pattern.permute.xlu0 0
      %4627 = vperm.xlu0 %4626, %v4317
      %v4628 = vpop.permute.xlu0 %4627
      %4631 = vset.pattern.permute.xlu0 0
      %4632 = vperm.xlu0 %4631, %v4318
      %v4633 = vpop.permute.xlu0 %4632
      %4636 = vset.pattern.permute.xlu0 0
      %4637 = vperm.xlu0 %4636, %v4319
      %v4638 = vpop.permute.xlu0 %4637
      %4641 = vset.pattern.permute.xlu0 0
      %4642 = vperm.xlu0 %4641, %v4320
      %v4643 = vpop.permute.xlu0 %4642
      %4646 = vset.pattern.permute.xlu0 0
      %4647 = vperm.xlu0 %4646, %v4321
      %v4648 = vpop.permute.xlu0 %4647
      %4651 = vset.pattern.permute.xlu0 0
      %4652 = vperm.xlu0 %4651, %v4322
      %v4653 = vpop.permute.xlu0 %4652
      %4656 = vset.pattern.permute.xlu0 0
      %4657 = vperm.xlu0 %4656, %v4323
      %v4658 = vpop.permute.xlu0 %4657
      %4661 = vset.pattern.permute.xlu0 0
      %4662 = vperm.xlu0 %4661, %v4324
      %v4663 = vpop.permute.xlu0 %4662
      %4666 = vset.pattern.permute.xlu0 0
      %4667 = vperm.xlu0 %4666, %v4325
      %v4668 = vpop.permute.xlu0 %4667
      %4671 = vset.pattern.permute.xlu0 0
      %4672 = vperm.xlu0 %4671, %v4326
      %v4673 = vpop.permute.xlu0 %4672
      %4676 = vset.pattern.permute.xlu0 0
      %4677 = vperm.xlu0 %4676, %v4327
      %v4678 = vpop.permute.xlu0 %4677
      %4681 = vset.pattern.permute.xlu0 0
      %4682 = vperm.xlu0 %4681, %v4328
      %v4683 = vpop.permute.xlu0 %4682
      %4686 = vset.pattern.permute.xlu0 0
      %4687 = vperm.xlu0 %4686, %v4329
      %v4688 = vpop.permute.xlu0 %4687
      %4691 = vset.pattern.permute.xlu0 0
      %4692 = vperm.xlu0 %4691, %v4330
      %v4693 = vpop.permute.xlu0 %4692
      %4696 = vset.pattern.permute.xlu0 0
      %4697 = vperm.xlu0 %4696, %v4331
      %v4698 = vpop.permute.xlu0 %4697
      %v4700 = vmul.f32 %v4604, %v4623
      %v4701 = vmul.f32 %v4605, %v4628
      %v4702 = vmul.f32 %v4606, %v4633
      %v4703 = vmul.f32 %v4607, %v4638
      %v4704 = vmul.f32 %v4608, %v4643
      %v4705 = vmul.f32 %v4609, %v4648
      %v4706 = vmul.f32 %v4610, %v4653
      %v4707 = vmul.f32 %v4611, %v4658
      %v4708 = vmul.f32 %v4612, %v4663
      %v4709 = vmul.f32 %v4613, %v4668
      %v4710 = vmul.f32 %v4614, %v4673
      %v4711 = vmul.f32 %v4615, %v4678
      %v4712 = vmul.f32 %v4616, %v4683
      %v4713 = vmul.f32 %v4617, %v4688
      %v4714 = vmul.f32 %v4618, %v4693
      %v4715 = vmul.f32 %v4619, %v4698
      %4716 = vst.msk [vmem:[#allocation4] sm:$0xff] %vm3991, %v4700
      %4717 = vst.msk [vmem:[#allocation4 + $0x8] sm:$0xff] %vm3991, %v4701
      %4718 = vst.msk [vmem:[#allocation4 + $0x10] sm:$0xff] %vm3991, %v4702
      %4719 = vst.msk [vmem:[#allocation4 + $0x18] sm:$0xff] %vm3991, %v4703
      %4720 = vst.msk [vmem:[#allocation4 + $0x20] sm:$0xff] %vm3991, %v4704
      %4721 = vst.msk [vmem:[#allocation4 + $0x28] sm:$0xff] %vm3991, %v4705
      %4722 = vst.msk [vmem:[#allocation4 + $0x30] sm:$0xff] %vm3991, %v4706
      %4723 = vst.msk [vmem:[#allocation4 + $0x38] sm:$0xff] %vm3991, %v4707
      %4724 = vst.msk [vmem:[#allocation4 + $0x40] sm:$0xff] %vm3991, %v4708
      %4725 = vst.msk [vmem:[#allocation4 + $0x48] sm:$0xff] %vm3991, %v4709
      %4726 = vst.msk [vmem:[#allocation4 + $0x50] sm:$0xff] %vm3991, %v4710
      %4727 = vst.msk [vmem:[#allocation4 + $0x58] sm:$0xff] %vm3991, %v4711
      %4728 = vst.msk [vmem:[#allocation4 + $0x60] sm:$0xff] %vm3991, %v4712
      %4729 = vst.msk [vmem:[#allocation4 + $0x68] sm:$0xff] %vm3991, %v4713
      %4730 = vst.msk [vmem:[#allocation4 + $0x70] sm:$0xff] %vm3991, %v4714
      %4731 = vst.msk [vmem:[#allocation4 + $0x78] sm:$0xff] %vm3991, %v4715
      %v4732 = vld [vmem:[#allocation4] sm:$0xff]
      %v4733 = vld [vmem:[#allocation4 + $0x8] sm:$0xff]
      %v4734 = vld [vmem:[#allocation4 + $0x10] sm:$0xff]
      %v4735 = vld [vmem:[#allocation4 + $0x18] sm:$0xff]
      %v4736 = vld [vmem:[#allocation4 + $0x20] sm:$0xff]
      %v4737 = vld [vmem:[#allocation4 + $0x28] sm:$0xff]
      %v4738 = vld [vmem:[#allocation4 + $0x30] sm:$0xff]
      %v4739 = vld [vmem:[#allocation4 + $0x38] sm:$0xff]
      %v4740 = vld [vmem:[#allocation4 + $0x40] sm:$0xff]
      %v4741 = vld [vmem:[#allocation4 + $0x48] sm:$0xff]
      %v4742 = vld [vmem:[#allocation4 + $0x50] sm:$0xff]
      %v4743 = vld [vmem:[#allocation4 + $0x58] sm:$0xff]
      %v4744 = vld [vmem:[#allocation4 + $0x60] sm:$0xff]
      %v4745 = vld [vmem:[#allocation4 + $0x68] sm:$0xff]
      %v4746 = vld [vmem:[#allocation4 + $0x70] sm:$0xff]
      %v4747 = vld [vmem:[#allocation4 + $0x78] sm:$0xff]
      %4749 = vset.pattern.permute.xlu0 0
      %4750 = vperm.xlu0 %4749, %v4332
      %v4751 = vpop.permute.xlu0 %4750
      %4754 = vset.pattern.permute.xlu0 0
      %4755 = vperm.xlu0 %4754, %v4333
      %v4756 = vpop.permute.xlu0 %4755
      %4759 = vset.pattern.permute.xlu0 0
      %4760 = vperm.xlu0 %4759, %v4334
      %v4761 = vpop.permute.xlu0 %4760
      %4764 = vset.pattern.permute.xlu0 0
      %4765 = vperm.xlu0 %4764, %v4335
      %v4766 = vpop.permute.xlu0 %4765
      %4769 = vset.pattern.permute.xlu0 0
      %4770 = vperm.xlu0 %4769, %v4336
      %v4771 = vpop.permute.xlu0 %4770
      %4774 = vset.pattern.permute.xlu0 0
      %4775 = vperm.xlu0 %4774, %v4337
      %v4776 = vpop.permute.xlu0 %4775
      %4779 = vset.pattern.permute.xlu0 0
      %4780 = vperm.xlu0 %4779, %v4338
      %v4781 = vpop.permute.xlu0 %4780
      %4784 = vset.pattern.permute.xlu0 0
      %4785 = vperm.xlu0 %4784, %v4339
      %v4786 = vpop.permute.xlu0 %4785
      %4789 = vset.pattern.permute.xlu0 0
      %4790 = vperm.xlu0 %4789, %v4340
      %v4791 = vpop.permute.xlu0 %4790
      %4794 = vset.pattern.permute.xlu0 0
      %4795 = vperm.xlu0 %4794, %v4341
      %v4796 = vpop.permute.xlu0 %4795
      %4799 = vset.pattern.permute.xlu0 0
      %4800 = vperm.xlu0 %4799, %v4342
      %v4801 = vpop.permute.xlu0 %4800
      %4804 = vset.pattern.permute.xlu0 0
      %4805 = vperm.xlu0 %4804, %v4343
      %v4806 = vpop.permute.xlu0 %4805
      %4809 = vset.pattern.permute.xlu0 0
      %4810 = vperm.xlu0 %4809, %v4344
      %v4811 = vpop.permute.xlu0 %4810
      %4814 = vset.pattern.permute.xlu0 0
      %4815 = vperm.xlu0 %4814, %v4345
      %v4816 = vpop.permute.xlu0 %4815
      %4819 = vset.pattern.permute.xlu0 0
      %4820 = vperm.xlu0 %4819, %v4346
      %v4821 = vpop.permute.xlu0 %4820
      %4824 = vset.pattern.permute.xlu0 0
      %4825 = vperm.xlu0 %4824, %v4347
      %v4826 = vpop.permute.xlu0 %4825
      %v4828 = vmul.f32 %v4732, %v4751
      %v4829 = vmul.f32 %v4733, %v4756
      %v4830 = vmul.f32 %v4734, %v4761
      %v4831 = vmul.f32 %v4735, %v4766
      %v4832 = vmul.f32 %v4736, %v4771
      %v4833 = vmul.f32 %v4737, %v4776
      %v4834 = vmul.f32 %v4738, %v4781
      %v4835 = vmul.f32 %v4739, %v4786
      %v4836 = vmul.f32 %v4740, %v4791
      %v4837 = vmul.f32 %v4741, %v4796
      %v4838 = vmul.f32 %v4742, %v4801
      %v4839 = vmul.f32 %v4743, %v4806
      %v4840 = vmul.f32 %v4744, %v4811
      %v4841 = vmul.f32 %v4745, %v4816
      %v4842 = vmul.f32 %v4746, %v4821
      %v4843 = vmul.f32 %v4747, %v4826
      %4844 = vst.msk [vmem:[#allocation4] sm:$0xff] %vm4200, %v4828
      %4845 = vst.msk [vmem:[#allocation4 + $0x8] sm:$0xff] %vm4200, %v4829
      %4846 = vst.msk [vmem:[#allocation4 + $0x10] sm:$0xff] %vm4200, %v4830
      %4847 = vst.msk [vmem:[#allocation4 + $0x18] sm:$0xff] %vm4200, %v4831
      %4848 = vst.msk [vmem:[#allocation4 + $0x20] sm:$0xff] %vm4200, %v4832
      %4849 = vst.msk [vmem:[#allocation4 + $0x28] sm:$0xff] %vm4200, %v4833
      %4850 = vst.msk [vmem:[#allocation4 + $0x30] sm:$0xff] %vm4200, %v4834
      %4851 = vst.msk [vmem:[#allocation4 + $0x38] sm:$0xff] %vm4200, %v4835
      %4852 = vst.msk [vmem:[#allocation4 + $0x40] sm:$0xff] %vm4200, %v4836
      %4853 = vst.msk [vmem:[#allocation4 + $0x48] sm:$0xff] %vm4200, %v4837
      %4854 = vst.msk [vmem:[#allocation4 + $0x50] sm:$0xff] %vm4200, %v4838
      %4855 = vst.msk [vmem:[#allocation4 + $0x58] sm:$0xff] %vm4200, %v4839
      %4856 = vst.msk [vmem:[#allocation4 + $0x60] sm:$0xff] %vm4200, %v4840
      %4857 = vst.msk [vmem:[#allocation4 + $0x68] sm:$0xff] %vm4200, %v4841
      %4858 = vst.msk [vmem:[#allocation4 + $0x70] sm:$0xff] %vm4200, %v4842
      %4859 = vst.msk [vmem:[#allocation4 + $0x78] sm:$0xff] %vm4200, %v4843
      %v4860 = vld [vmem:[#allocation4] sm:$0xff]
      %v4861 = vld [vmem:[#allocation4 + $0x8] sm:$0xff]
      %v4862 = vld [vmem:[#allocation4 + $0x10] sm:$0xff]
      %v4863 = vld [vmem:[#allocation4 + $0x18] sm:$0xff]
      %v4864 = vld [vmem:[#allocation4 + $0x20] sm:$0xff]
      %v4865 = vld [vmem:[#allocation4 + $0x28] sm:$0xff]
      %v4866 = vld [vmem:[#allocation4 + $0x30] sm:$0xff]
      %v4867 = vld [vmem:[#allocation4 + $0x38] sm:$0xff]
      %v4868 = vld [vmem:[#allocation4 + $0x40] sm:$0xff]
      %v4869 = vld [vmem:[#allocation4 + $0x48] sm:$0xff]
      %v4870 = vld [vmem:[#allocation4 + $0x50] sm:$0xff]
      %v4871 = vld [vmem:[#allocation4 + $0x58] sm:$0xff]
      %v4872 = vld [vmem:[#allocation4 + $0x60] sm:$0xff]
      %v4873 = vld [vmem:[#allocation4 + $0x68] sm:$0xff]
      %v4874 = vld [vmem:[#allocation4 + $0x70] sm:$0xff]
      %v4875 = vld [vmem:[#allocation4 + $0x78] sm:$0xff]
      %4876 = vst [vmem:[#allocation5] sm:$0xff] %v4860
      %4877 = vst [vmem:[#allocation5 + $0x8] sm:$0xff] %v4861
      %4878 = vst [vmem:[#allocation5 + $0x10] sm:$0xff] %v4862
      %4879 = vst [vmem:[#allocation5 + $0x18] sm:$0xff] %v4863
      %4880 = vst [vmem:[#allocation5 + $0x20] sm:$0xff] %v4864
      %4881 = vst [vmem:[#allocation5 + $0x28] sm:$0xff] %v4865
      %4882 = vst [vmem:[#allocation5 + $0x30] sm:$0xff] %v4866
      %4883 = vst [vmem:[#allocation5 + $0x38] sm:$0xff] %v4867
      %4884 = vst [vmem:[#allocation5 + $0x40] sm:$0xff] %v4868
      %4885 = vst [vmem:[#allocation5 + $0x48] sm:$0xff] %v4869
      %4886 = vst [vmem:[#allocation5 + $0x50] sm:$0xff] %v4870
      %4887 = vst [vmem:[#allocation5 + $0x58] sm:$0xff] %v4871
      %4888 = vst [vmem:[#allocation5 + $0x60] sm:$0xff] %v4872
      %4889 = vst [vmem:[#allocation5 + $0x68] sm:$0xff] %v4873
      %4890 = vst [vmem:[#allocation5 + $0x70] sm:$0xff] %v4874
      %4891 = vst [vmem:[#allocation5 + $0x78] sm:$0xff] %v4875
    $region21: #{tpu_custom_call.1} parent=1 // pred_fallthru
      _
    // Predicated region
    $region22: #{tpu_custom_call.1} parent=1 // pred_check
      _
    $region23: #{tpu_custom_call.1} parent=1 // pred_check_branch
      %4893 = sbr.rel (0) target = $region25
    $region24: #{tpu_custom_call.1} parent=1 // pred_region
      %s4895 = ssub.s32 2048, 2048
      %4896 = vsyncadd [#allocation6], %s4895
      %s4897 = sshll.u32 [#allocation5], 4
      %s4898 = int_to_ptr.vmem [resolvable:$true] %s4897
      %4903 = dma.vmem_to_hbm [thread:$0]  %s4898, 2048, %s3, [#allocation6], 128, 128, 8
    $region25: #{tpu_custom_call.1} parent=1 // pred_fallthru
      _
    // Predicated region
    $region26: #{tpu_custom_call.1} parent=1 // pred_check
      _
    $region27: #{tpu_custom_call.1} parent=1 // pred_check_branch
      %4905 = sbr.rel (0) target = $region29
    $region28: #{tpu_custom_call.1} parent=1 // pred_region
      %4906 = dma.done [#allocation6], 2048
    $region29: #{tpu_custom_call.1} parent=1 // pred_fallthru
      _
    %4907 = vsyncpa [#allocation6], 1

</llo_original>
